<compile_context>
chip_gen: v5e
topology: v5e:2x2
jax: 0.10.0
libtpu: 0.0.40
codegen_flags: <defaults>
</compile_context>

<pallas_src>
import jax
import jax.numpy as jnp
from jax import lax
from jax.experimental import pallas as pl
from jax.experimental.pallas import tpu as pltpu

F32 = jnp.float32


def gelu_tanh(v):
    c = 0.7978845608028654  # sqrt(2/pi)
    return 0.5 * v * (1.0 + jnp.tanh(c * (v + 0.044715 * v * v * v)))


# ----------------------------------------------------------------------------
# Kernel factory (one attention pass + one FFN pass per depth layer)
# ----------------------------------------------------------------------------
def make_layer_kernels(Bt, H, W, C, mm_dtype):
    C4 = C // 4
    use_sliced_shifts = (C4 % 128 == 0)   # lane-tile aligned channel quarters
    M = Bt * H * W

    def layernorm(v, g_ref, b_ref):
        mu = jnp.mean(v, axis=-1, keepdims=True)
        d = v - mu
        var = jnp.mean(d * d, axis=-1, keepdims=True)
        inv = lax.rsqrt(var + 1e-5)
        return (d * inv * g_ref[...].reshape(1, 1, 1, C)
                + b_ref[...].reshape(1, 1, 1, C))

    # ---- edge-preserving spatial shifts (spatial_shift1/2 semantics) -------
    def shift_h_fwd(v):   # out[h] = v[h-1], out[0] = v[0]
        return jnp.concatenate([v[:, :1], v[:, :H - 1]], axis=1)

    def shift_h_bwd(v):   # out[h] = v[h+1], out[-1] = v[-1]
        return jnp.concatenate([v[:, 1:], v[:, H - 1:]], axis=1)

    def shift_w_fwd(v):   # out[w] = v[w-1], out[0] = v[0]
        return jnp.concatenate([v[:, :, :1], v[:, :, :W - 1]], axis=2)

    def shift_w_bwd(v):   # out[w] = v[w+1], out[-1] = v[-1]
        return jnp.concatenate([v[:, :, 1:], v[:, :, W - 1:]], axis=2)

    def spatial_shift1(t, masks):
        if use_sliced_shifts:
            return jnp.concatenate(
                [shift_h_fwd(t[..., :C4]),
                 shift_h_bwd(t[..., C4:2 * C4]),
                 shift_w_fwd(t[..., 2 * C4:3 * C4]),
                 shift_w_bwd(t[..., 3 * C4:])], axis=-1)
        m0, m1, m2 = masks
        return jnp.where(m0, shift_h_fwd(t),
               jnp.where(m1, shift_h_bwd(t),
               jnp.where(m2, shift_w_fwd(t), shift_w_bwd(t))))

    def spatial_shift2(t, masks):
        if use_sliced_shifts:
            return jnp.concatenate(
                [shift_w_fwd(t[..., :C4]),
                 shift_w_bwd(t[..., C4:2 * C4]),
                 shift_h_fwd(t[..., 2 * C4:3 * C4]),
                 shift_h_bwd(t[..., 3 * C4:])], axis=-1)
        m0, m1, m2 = masks
        return jnp.where(m0, shift_w_fwd(t),
               jnp.where(m1, shift_w_bwd(t),
               jnp.where(m2, shift_h_fwd(t), shift_h_bwd(t))))

    # ---- depthwise 3x3 conv, zero padding -----------------------------------
    def dw_conv3x3(v, dww):
        # v: (Bt,H,W,C); dww: (9,C), row i*3+j = torch weight[c, 0, i, j]
        zrow = jnp.zeros((Bt, 1, W, C), F32)
        vh = (jnp.concatenate([zrow, v[:, :H - 1]], axis=1),   # v[h-1]
              v,                                               # v[h]
              jnp.concatenate([v[:, 1:], zrow], axis=1))       # v[h+1]

        def tap(r):
            return dww[r:r + 1, :].reshape(1, 1, 1, C)

        t = [tap(0 + j) * vh[0] + tap(3 + j) * vh[1] + tap(6 + j) * vh[2]
             for j in range(3)]
        zcol = jnp.zeros((Bt, H, 1, C), F32)
        left = jnp.concatenate([zcol, t[0][:, :, :W - 1]], axis=2)   # t0[w-1]
        right = jnp.concatenate([t[2][:, :, 1:], zcol], axis=2)      # t2[w+1]
        return left + t[1] + right

    # ------------------------------------------------------------------------
    # pass 1: PreNormResidual(S2Attention) + conv(LN2(x')) + partial BN stats
    # ------------------------------------------------------------------------
    def kernel_attn(x_ref,
                    ln1_g_ref, ln1_b_ref,
                    w_mlp1_ref, b_mlp1_ref,
                    wsa1_ref, wsa2_ref,
                    wm2_ref, bm2_ref,
                    ln2_g_ref, ln2_b_ref, dww_ref,
                    y_ref, conv_ref, stats_ref):
        x = x_ref[...].astype(F32)                               # (Bt,H,W,C)
        if use_sliced_shifts:
            masks = None
        else:
            ch = lax.broadcasted_iota(jnp.int32, (1, 1, 1, C), 3)
            masks = (ch < C4, ch < 2 * C4, ch < 3 * C4)

        # LN1 + fused mlp1 (C -> 3C) on the whole (Bt*H*W, C) slab
        yn = layernorm(x, ln1_g_ref, ln1_b_ref)
        t = jnp.dot(yn.reshape(M, C).astype(mm_dtype), w_mlp1_ref[...],
                    preferred_element_type=F32) + b_mlp1_ref[...]
        t = t.reshape(Bt, H, W, 3 * C)
        t1 = t[..., :C]
        t2 = t[..., C:2 * C]
        t3 = t[..., 2 * C:]

        x1 = spatial_shift1(t1, masks)
        x2 = spatial_shift2(t2, masks)
        x3 = t3

        # SplitAttention (k = 3), batched over the Bt images of this block
        xs = (x1 + x2 + x3).reshape(Bt, H * W, C)
        a = jnp.sum(xs, axis=1)                                  # (Bt, C)
        h1 = gelu_tanh(jnp.dot(a, wsa1_ref[...], preferred_element_type=F32))
        ha = jnp.dot(h1, wsa2_ref[...], preferred_element_type=F32)  # (Bt,3C)
        ha1, ha2, ha3 = ha[:, :C], ha[:, C:2 * C], ha[:, 2 * C:]
        mx = jnp.maximum(jnp.maximum(ha1, ha2), ha3)
        e1 = jnp.exp(ha1 - mx)
        e2 = jnp.exp(ha2 - mx)
        e3 = jnp.exp(ha3 - mx)
        den = e1 + e2 + e3
        b1 = (e1 / den).reshape(Bt, 1, 1, C)
        b2 = (e2 / den).reshape(Bt, 1, 1, C)
        b3 = (e3 / den).reshape(Bt, 1, 1, C)
        att = b1 * x1 + b2 * x2 + b3 * x3

        z = jnp.dot(att.reshape(M, C).astype(mm_dtype), wm2_ref[...],
                    preferred_element_type=F32) + bm2_ref[...]
        xo = x + z.reshape(Bt, H, W, C)
        y_ref[...] = xo.astype(y_ref.dtype)

        # LN2 + depthwise 3x3 conv (stored for pass 2) + partial BN statistics
        v = layernorm(xo, ln2_g_ref, ln2_b_ref)
        cv = dw_conv3x3(v, dww_ref[...])
        conv_ref[...] = cv.astype(conv_ref.dtype)
        c2 = cv.reshape(M, C)
        s1 = jnp.sum(c2, axis=0, keepdims=True)                  # (1, C)
        s2 = jnp.sum(c2 * c2, axis=0, keepdims=True)             # (1, C)
        stats_ref[0] = jnp.concatenate([s1, s2], axis=0)         # (2, C)

    # ------------------------------------------------------------------------
    # pass 2: out = y + fc2(GELU(conv @ fc1_w_eff + fc1_b_eff))
    #         (BatchNorm scale/shift already folded into fc1_w_eff/fc1_b_eff)
    # ------------------------------------------------------------------------
    def kernel_ffn(y_ref, conv_ref,
                   fc1w_ref, fc1b_ref, fc2w_ref, fc2b_ref,
                   o_ref):
        y = y_ref[...].astype(F32)
        cv = conv_ref[...].astype(F32).reshape(M, C)
        h = gelu_tanh(jnp.dot(cv.astype(mm_dtype), fc1w_ref[...],
                              preferred_element_type=F32) + fc1b_ref[...])
        f = jnp.dot(h.astype(mm_dtype), fc2w_ref[...],
                    preferred_element_type=F32) + fc2b_ref[...]
        o_ref[...] = (y + f.reshape(Bt, H, W, C)).astype(o_ref.dtype)

    return kernel_attn, kernel_ffn


# ----------------------------------------------------------------------------
# Wrapper
# ----------------------------------------------------------------------------
def _rep_spec(shape):
    n = len(shape)
    return pl.BlockSpec(tuple(shape), lambda b, n=n: (0,) * n)


def _tpu_vmem_capacity():
    try:
        return int(pltpu.get_tpu_info().vmem_capacity_bytes)
    except Exception:
        return 64 * 1024 * 1024          # v7x per-core physical VMEM (smallest)


def _choose_block_batch(B, H, W, C, vmem_cap):
    """Images per grid step: divisor of B that keeps the pass-1 working set in
    VMEM while giving the MXU an M of a few hundred rows per matmul."""
    act = H * W * C * 4                                   # one f32 slab / image
    per_image = act * (6 + 16)        # in/out blocks (double-buffered) + temps
    budget = vmem_cap // 2            # leave half for weights / compiler scratch
    cap_bt = max(1, budget // per_image)
    divs = [d for d in range(1, B + 1) if B % d == 0 and d <= cap_bt] or [1]
    target_m = 512
    best = divs[-1]
    for d in divs:
        if d * H * W >= target_m:
            best = d
            break
    # prefer >=2 grid steps (v7x megacore / pipelining) if M target still met
    if B // best < 2:
        for d in reversed(divs):
            if B // d >= 2 and d * H * W >= target_m:
                best = d
                break
    return best


def _vmem_limit_bytes(Bt, H, W, C, hid, mm_bytes, vmem_cap):
    act = Bt * H * W * C * 4
    p1 = act * (6 + 16)                                   # blocks + intermediates
    p2 = act * (6 + 2) + Bt * H * W * hid * 4 * 2         # + hidden slab
    w1 = 2 * (8 * C * C) * mm_bytes                       # double-buffered weights
    w2 = 2 * (2 * C * hid) * mm_bytes
    need = max(p1 + w1, p2 + w2) + (4 << 20)              # headroom
    return int(min(max(need, 16 << 20), vmem_cap * 3 // 4))


def s2block_forward(x_nchw, layers, *, matmul_dtype=jnp.bfloat16):
    """x_nchw: (B, C, H, W) float32.  Returns (B, C, H, W) float32."""
    B, C, H, W = x_nchw.shape
    assert C % 4 == 0, "channel count must be divisible by 4 (spatial shifts)"
    hid = layers[0]["fc1_w"].shape[1]

    vmem_cap = _tpu_vmem_capacity()
    Bt = _choose_block_batch(B, H, W, C, vmem_cap)
    nb = B // Bt
    mm_bytes = jnp.dtype(matmul_dtype).itemsize

    k_attn, k_ffn = make_layer_kernels(Bt, H, W, C, matmul_dtype)

    cparams = pltpu.CompilerParams(
        dimension_semantics=("parallel",),
        vmem_limit_bytes=_vmem_limit_bytes(Bt, H, W, C, hid, mm_bytes, vmem_cap),
    )

    act_spec = pl.BlockSpec((Bt, H, W, C), lambda b: (b, 0, 0, 0))
    stats_spec = pl.BlockSpec((1, 2, C), lambda b: (b, 0, 0))

    x = jnp.transpose(x_nchw, (0, 2, 3, 1)).astype(jnp.float32)    # NHWC
    npix = float(B * H * W)
    mm = lambda w: w.astype(matmul_dtype)

    for lp in layers:
        # -------- pass 1: attention + conv(LN2(x')) + partial BN stats ------
        attn_args = (x,
                     lp["ln1_g"], lp["ln1_b"],
                     mm(lp["w_mlp1"]), lp["b_mlp1"],
                     lp["wsa1"], lp["wsa2"],
                     mm(lp["wm2"]), lp["bm2"],
                     lp["ln2_g"], lp["ln2_b"], lp["dww"])
        y, conv, stats = pl.pallas_call(
            k_attn,
            out_shape=(jax.ShapeDtypeStruct((B, H, W, C), jnp.float32),
                       jax.ShapeDtypeStruct((B, H, W, C), jnp.float32),
                       jax.ShapeDtypeStruct((nb, 2, C), jnp.float32)),
            grid=(nb,),
            in_specs=[act_spec] + [_rep_spec(a.shape) for a in attn_args[1:]],
            out_specs=(act_spec, act_spec, stats_spec),
            input_output_aliases={0: 0},
            compiler_params=cparams,
        )(*attn_args)

        # -------- tiny cross-block BN stats (training-mode, biased variance),
        # -------- folded together with gamma/beta into fc1 -------------------
        tot = jnp.sum(stats, axis=0)                               # (2, C)
        mean = tot[0] / npix
        var = jnp.maximum(tot[1] / npix - mean * mean, 0.0)
        inv_std = lax.rsqrt(var + 1e-5)
        g = lp["bn_g"].reshape(-1)
        scale = g * inv_std                                        # (C,)
        shift = lp["bn_b"].reshape(-1) - mean * scale              # (C,)
        fc1_w_eff = scale[:, None] * lp["fc1_w"]                   # (C, HID)
        fc1_b_eff = lp["fc1_b"] + shift[None, :] @ lp["fc1_w"]     # (1, HID)

        # -------- pass 2: fc1/GELU/fc2 on the stored conv + residual ---------
        ffn_args = (y, conv,
                    mm(fc1_w_eff), fc1_b_eff,
                    mm(lp["fc2_w"]), lp["fc2_b"])
        x = pl.pallas_call(
            k_ffn,
            out_shape=jax.ShapeDtypeStruct((B, H, W, C), jnp.float32),
            grid=(nb,),
            in_specs=[act_spec, act_spec]
                     + [_rep_spec(a.shape) for a in ffn_args[2:]],
            out_specs=act_spec,
            input_output_aliases={0: 0},
            compiler_params=cparams,
        )(*ffn_args)

    return jnp.transpose(x, (0, 3, 1, 2))                          # NHWC -> NCHW


# ----------------------------------------------------------------------------
# Deterministic parameter init (torch-convention shapes -> kernel layout)
# ----------------------------------------------------------------------------
def init_params(key, d_model, depth, expansion_factor=4):
    C = d_model
    HID = expansion_factor * C
    layers = []
    for l in range(depth):
        ks = jax.random.split(jax.random.fold_in(key, l), 20)

        def rnd(k, shape, scale):
            return scale * jax.random.normal(k, shape, jnp.float32)

        mlp1_w = rnd(ks[0], (3 * C, C), 0.05)   # S2Attention.mlp1
        mlp1_b = rnd(ks[1], (3 * C,), 0.02)
        sa1_w = rnd(ks[2], (C, C), 0.05)        # SplitAttention.mlp1 (no bias)
        sa2_w = rnd(ks[3], (3 * C, C), 0.05)    # SplitAttention.mlp2 (no bias)
        mlp2_w = rnd(ks[4], (C, C), 0.05)       # S2Attention.mlp2
        mlp2_b = rnd(ks[5], (C,), 0.02)
        ln1_g = 1.0 + rnd(ks[6], (C,), 0.05)
        ln1_b = rnd(ks[7], (C,), 0.02)
        ln2_g = 1.0 + rnd(ks[8], (C,), 0.05)
        ln2_b = rnd(ks[9], (C,), 0.02)
        dw_w = rnd(ks[10], (C, 1, 3, 3), 0.1)   # depthwise conv, no bias
        bn_g = 1.0 + rnd(ks[11], (C,), 0.05)
        bn_b = rnd(ks[12], (C,), 0.02)
        fc1_w = rnd(ks[13], (HID, C), 0.05)     # 1x1 conv C -> 4C
        fc1_b = rnd(ks[14], (HID,), 0.02)
        fc2_w = rnd(ks[15], (C, HID), 0.05)     # 1x1 conv 4C -> C
        fc2_b = rnd(ks[16], (C,), 0.02)

        layers.append(dict(
            ln1_g=ln1_g.reshape(1, C), ln1_b=ln1_b.reshape(1, C),
            w_mlp1=mlp1_w.T,                       # (C, 3C)  fused t1|t2|t3
            b_mlp1=mlp1_b.reshape(1, 3 * C),
            wsa1=sa1_w.T,                          # (C, C)
            wsa2=sa2_w.T,                          # (C, 3C)  fused ha1|ha2|ha3
            wm2=mlp2_w.T, bm2=mlp2_b.reshape(1, C),
            ln2_g=ln2_g.reshape(1, C), ln2_b=ln2_b.reshape(1, C),
            dww=jnp.transpose(dw_w.reshape(C, 3, 3), (1, 2, 0)).reshape(9, C),
            bn_g=bn_g.reshape(1, C), bn_b=bn_b.reshape(1, C),
            fc1_w=fc1_w.T, fc1_b=fc1_b.reshape(1, HID),
            fc2_w=fc2_w.T, fc2_b=fc2_b.reshape(1, C),
        ))
    return layers


# ----------------------------------------------------------------------------
if __name__ == "__main__":
    key = jax.random.PRNGKey(0)
    kx, kp = jax.random.split(key)

    B, C, H, W = 2, 32, 8, 8          # d_model = 32
    depth, expansion = 2, 4

    x = jax.random.normal(kx, (B, C, H, W), jnp.float32)
    params = init_params(kp, C, depth, expansion)

    fwd = jax.jit(s2block_forward)
    out = jax.block_until_ready(fwd(x, params))

    assert out.shape == (B, C, H, W), out.shape
    assert out.dtype == jnp.float32
    assert bool(jnp.all(jnp.isfinite(out)))
    print("KERNEL_OK")
</pallas_src>

<mosaic_0001>
module attributes {stable_mosaic.version = 11 : i64} {
  func.func @kernel_attn(%arg0: i32, %arg1: memref<2x8x8x32xf32, #tpu.memory_space<vmem>>, %arg2: memref<1x32xf32, #tpu.memory_space<vmem>>, %arg3: memref<1x32xf32, #tpu.memory_space<vmem>>, %arg4: memref<32x96xbf16, #tpu.memory_space<vmem>>, %arg5: memref<1x96xf32, #tpu.memory_space<vmem>>, %arg6: memref<32x32xf32, #tpu.memory_space<vmem>>, %arg7: memref<32x96xf32, #tpu.memory_space<vmem>>, %arg8: memref<32x32xbf16, #tpu.memory_space<vmem>>, %arg9: memref<1x32xf32, #tpu.memory_space<vmem>>, %arg10: memref<1x32xf32, #tpu.memory_space<vmem>>, %arg11: memref<1x32xf32, #tpu.memory_space<vmem>>, %arg12: memref<9x32xf32, #tpu.memory_space<vmem>>, %arg13: memref<2x8x8x32xf32, #tpu.memory_space<vmem>>, %arg14: memref<2x8x8x32xf32, #tpu.memory_space<vmem>>, %arg15: memref<1x2x32xf32, #tpu.memory_space<vmem>>) attributes {dimension_semantics = [#tpu.dimension_semantics<parallel>], iteration_bounds = array<i64: 1>, scalar_prefetch = 0 : i64, scratch_operands = 0 : i64, tpu.core_type = #tpu.core_type<tc>, window_params = [{transform_indices = @transform_0, window_bounds = array<i64: 2, 8, 8, 32>}, {pipeline_mode = #tpu.pipeline_mode<synchronous>, transform_indices = @transform_1, window_bounds = array<i64: 1, 32>}, {pipeline_mode = #tpu.pipeline_mode<synchronous>, transform_indices = @transform_2, window_bounds = array<i64: 1, 32>}, {pipeline_mode = #tpu.pipeline_mode<synchronous>, transform_indices = @transform_3, window_bounds = array<i64: 32, 96>}, {pipeline_mode = #tpu.pipeline_mode<synchronous>, transform_indices = @transform_4, window_bounds = array<i64: 1, 96>}, {pipeline_mode = #tpu.pipeline_mode<synchronous>, transform_indices = @transform_5, window_bounds = array<i64: 32, 32>}, {pipeline_mode = #tpu.pipeline_mode<synchronous>, transform_indices = @transform_6, window_bounds = array<i64: 32, 96>}, {pipeline_mode = #tpu.pipeline_mode<synchronous>, transform_indices = @transform_7, window_bounds = array<i64: 32, 32>}, {pipeline_mode = #tpu.pipeline_mode<synchronous>, transform_indices = @transform_8, window_bounds = array<i64: 1, 32>}, {pipeline_mode = #tpu.pipeline_mode<synchronous>, transform_indices = @transform_9, window_bounds = array<i64: 1, 32>}, {pipeline_mode = #tpu.pipeline_mode<synchronous>, transform_indices = @transform_10, window_bounds = array<i64: 1, 32>}, {pipeline_mode = #tpu.pipeline_mode<synchronous>, transform_indices = @transform_11, window_bounds = array<i64: 9, 32>}, {transform_indices = @transform_12, window_bounds = array<i64: 2, 8, 8, 32>}, {transform_indices = @transform_13, window_bounds = array<i64: 2, 8, 8, 32>}, {transform_indices = @transform_14, window_bounds = array<i64: 1, 2, 32>}]} {
    %c0 = arith.constant 0 : index
    %c0_0 = arith.constant 0 : index
    %c0_1 = arith.constant 0 : index
    %c0_2 = arith.constant 0 : index
    %0 = vector.load %arg1[%c0, %c0_0, %c0_1, %c0_2] : memref<2x8x8x32xf32, #tpu.memory_space<vmem>>, vector<2x8x8x32xf32>
    %1 = tpu.iota {dimensions = array<i32: 3>} : vector<1x1x1x32xi32>
    %c8_i32 = arith.constant 8 : i32
    %2 = vector.broadcast %c8_i32 : i32 to vector<1x1x1x32xi32>
    %3 = arith.cmpi slt, %1, %2 : vector<1x1x1x32xi32>
    %c16_i32 = arith.constant 16 : i32
    %4 = vector.broadcast %c16_i32 : i32 to vector<1x1x1x32xi32>
    %5 = arith.cmpi slt, %1, %4 : vector<1x1x1x32xi32>
    %c24_i32 = arith.constant 24 : i32
    %6 = vector.broadcast %c24_i32 : i32 to vector<1x1x1x32xi32>
    %7 = arith.cmpi slt, %1, %6 : vector<1x1x1x32xi32>
    %cst = arith.constant dense<0.000000e+00> : vector<2x8x8xf32>
    %8 = vector.multi_reduction <add>, %0, %cst [3] : vector<2x8x8x32xf32> to vector<2x8x8xf32>
    %9 = vector.shape_cast %8 : vector<2x8x8xf32> to vector<2x8x8x1xf32>
    %cst_3 = arith.constant 3.200000e+01 : f32
    %10 = vector.broadcast %cst_3 : f32 to vector<2x8x8x1xf32>
    %11 = arith.divf %9, %10 : vector<2x8x8x1xf32>
    %12 = vector.broadcast %11 : vector<2x8x8x1xf32> to vector<2x8x8x32xf32>
    %13 = arith.subf %0, %12 : vector<2x8x8x32xf32>
    %14 = arith.mulf %13, %13 : vector<2x8x8x32xf32>
    %cst_4 = arith.constant dense<0.000000e+00> : vector<2x8x8xf32>
    %15 = vector.multi_reduction <add>, %14, %cst_4 [3] : vector<2x8x8x32xf32> to vector<2x8x8xf32>
    %16 = vector.shape_cast %15 : vector<2x8x8xf32> to vector<2x8x8x1xf32>
    %cst_5 = arith.constant 3.200000e+01 : f32
    %17 = vector.broadcast %cst_5 : f32 to vector<2x8x8x1xf32>
    %18 = arith.divf %16, %17 : vector<2x8x8x1xf32>
    %cst_6 = arith.constant 9.99999974E-6 : f32
    %19 = vector.broadcast %cst_6 : f32 to vector<2x8x8x1xf32>
    %20 = arith.addf %18, %19 : vector<2x8x8x1xf32>
    %21 = math.rsqrt %20 : vector<2x8x8x1xf32>
    %22 = vector.broadcast %21 : vector<2x8x8x1xf32> to vector<2x8x8x32xf32>
    %23 = arith.mulf %13, %22 : vector<2x8x8x32xf32>
    %c0_7 = arith.constant 0 : index
    %c0_8 = arith.constant 0 : index
    %24 = vector.load %arg2[%c0_7, %c0_8] : memref<1x32xf32, #tpu.memory_space<vmem>>, vector<1x32xf32>
    %25 = vector.shape_cast %24 : vector<1x32xf32> to vector<1x1x1x32xf32>
    %26 = vector.broadcast %25 : vector<1x1x1x32xf32> to vector<2x8x8x32xf32>
    %27 = arith.mulf %23, %26 : vector<2x8x8x32xf32>
    %c0_9 = arith.constant 0 : index
    %c0_10 = arith.constant 0 : index
    %28 = vector.load %arg3[%c0_9, %c0_10] : memref<1x32xf32, #tpu.memory_space<vmem>>, vector<1x32xf32>
    %29 = vector.shape_cast %28 : vector<1x32xf32> to vector<1x1x1x32xf32>
    %30 = vector.broadcast %29 : vector<1x1x1x32xf32> to vector<2x8x8x32xf32>
    %31 = arith.addf %27, %30 : vector<2x8x8x32xf32>
    %32 = vector.shape_cast %31 : vector<2x8x8x32xf32> to vector<128x32xf32>
    %33 = arith.truncf %32 : vector<128x32xf32> to vector<128x32xbf16>
    %c0_11 = arith.constant 0 : index
    %c0_12 = arith.constant 0 : index
    %34 = vector.load %arg4[%c0_11, %c0_12] : memref<32x96xbf16, #tpu.memory_space<vmem>>, vector<32x96xbf16>
    %cst_13 = arith.constant dense<0.000000e+00> : vector<128x96xf32>
    %35 = tpu.matmul %33, %34, %cst_13 {dimension_numbers = #tpu.dot_dimension_numbers<[1], [0], [0], [1], [0, 0, 1, 1], [], []>} : vector<128x32xbf16>, vector<32x96xbf16>, vector<128x96xf32> -> vector<128x96xf32>
    %c0_14 = arith.constant 0 : index
    %c0_15 = arith.constant 0 : index
    %36 = vector.load %arg5[%c0_14, %c0_15] : memref<1x96xf32, #tpu.memory_space<vmem>>, vector<1x96xf32>
    %37 = vector.broadcast %36 : vector<1x96xf32> to vector<128x96xf32>
    %38 = arith.addf %35, %37 : vector<128x96xf32>
    %39 = vector.shape_cast %38 : vector<128x96xf32> to vector<2x8x8x96xf32>
    %40 = vector.extract_strided_slice %39 {offsets = [0, 0, 0, 0], sizes = [2, 8, 8, 32], strides = [1, 1, 1, 1]} : vector<2x8x8x96xf32> to vector<2x8x8x32xf32>
    %41 = vector.extract_strided_slice %39 {offsets = [0, 0, 0, 32], sizes = [2, 8, 8, 32], strides = [1, 1, 1, 1]} : vector<2x8x8x96xf32> to vector<2x8x8x32xf32>
    %42 = vector.extract_strided_slice %39 {offsets = [0, 0, 0, 64], sizes = [2, 8, 8, 32], strides = [1, 1, 1, 1]} : vector<2x8x8x96xf32> to vector<2x8x8x32xf32>
    %43 = vector.extract_strided_slice %40 {offsets = [0, 0, 0, 0], sizes = [2, 1, 8, 32], strides = [1, 1, 1, 1]} : vector<2x8x8x32xf32> to vector<2x1x8x32xf32>
    %44 = vector.extract_strided_slice %40 {offsets = [0, 0, 0, 0], sizes = [2, 7, 8, 32], strides = [1, 1, 1, 1]} : vector<2x8x8x32xf32> to vector<2x7x8x32xf32>
    %45 = tpu.concatenate %43, %44 in 1 : vector<2x1x8x32xf32>, vector<2x7x8x32xf32> -> vector<2x8x8x32xf32>
    %46 = vector.extract_strided_slice %40 {offsets = [0, 1, 0, 0], sizes = [2, 7, 8, 32], strides = [1, 1, 1, 1]} : vector<2x8x8x32xf32> to vector<2x7x8x32xf32>
    %47 = vector.extract_strided_slice %40 {offsets = [0, 7, 0, 0], sizes = [2, 1, 8, 32], strides = [1, 1, 1, 1]} : vector<2x8x8x32xf32> to vector<2x1x8x32xf32>
    %48 = tpu.concatenate %46, %47 in 1 : vector<2x7x8x32xf32>, vector<2x1x8x32xf32> -> vector<2x8x8x32xf32>
    %49 = vector.extract_strided_slice %40 {offsets = [0, 0, 0, 0], sizes = [2, 8, 1, 32], strides = [1, 1, 1, 1]} : vector<2x8x8x32xf32> to vector<2x8x1x32xf32>
    %50 = vector.extract_strided_slice %40 {offsets = [0, 0, 0, 0], sizes = [2, 8, 7, 32], strides = [1, 1, 1, 1]} : vector<2x8x8x32xf32> to vector<2x8x7x32xf32>
    %51 = tpu.concatenate %49, %50 in 2 : vector<2x8x1x32xf32>, vector<2x8x7x32xf32> -> vector<2x8x8x32xf32>
    %52 = vector.extract_strided_slice %40 {offsets = [0, 0, 1, 0], sizes = [2, 8, 7, 32], strides = [1, 1, 1, 1]} : vector<2x8x8x32xf32> to vector<2x8x7x32xf32>
    %53 = vector.extract_strided_slice %40 {offsets = [0, 0, 7, 0], sizes = [2, 8, 1, 32], strides = [1, 1, 1, 1]} : vector<2x8x8x32xf32> to vector<2x8x1x32xf32>
    %54 = tpu.concatenate %52, %53 in 2 : vector<2x8x7x32xf32>, vector<2x8x1x32xf32> -> vector<2x8x8x32xf32>
    %55 = vector.shape_cast %7 : vector<1x1x1x32xi1> to vector<1x1x1x32xi1>
    %56 = vector.broadcast %55 : vector<1x1x1x32xi1> to vector<2x8x8x32xi1>
    %57 = arith.select %56, %51, %54 : vector<2x8x8x32xi1>, vector<2x8x8x32xf32>
    %58 = vector.shape_cast %5 : vector<1x1x1x32xi1> to vector<1x1x1x32xi1>
    %59 = vector.broadcast %58 : vector<1x1x1x32xi1> to vector<2x8x8x32xi1>
    %60 = arith.select %59, %48, %57 : vector<2x8x8x32xi1>, vector<2x8x8x32xf32>
    %61 = vector.shape_cast %3 : vector<1x1x1x32xi1> to vector<1x1x1x32xi1>
    %62 = vector.broadcast %61 : vector<1x1x1x32xi1> to vector<2x8x8x32xi1>
    %63 = arith.select %62, %45, %60 : vector<2x8x8x32xi1>, vector<2x8x8x32xf32>
    %64 = vector.extract_strided_slice %41 {offsets = [0, 0, 0, 0], sizes = [2, 8, 1, 32], strides = [1, 1, 1, 1]} : vector<2x8x8x32xf32> to vector<2x8x1x32xf32>
    %65 = vector.extract_strided_slice %41 {offsets = [0, 0, 0, 0], sizes = [2, 8, 7, 32], strides = [1, 1, 1, 1]} : vector<2x8x8x32xf32> to vector<2x8x7x32xf32>
    %66 = tpu.concatenate %64, %65 in 2 : vector<2x8x1x32xf32>, vector<2x8x7x32xf32> -> vector<2x8x8x32xf32>
    %67 = vector.extract_strided_slice %41 {offsets = [0, 0, 1, 0], sizes = [2, 8, 7, 32], strides = [1, 1, 1, 1]} : vector<2x8x8x32xf32> to vector<2x8x7x32xf32>
    %68 = vector.extract_strided_slice %41 {offsets = [0, 0, 7, 0], sizes = [2, 8, 1, 32], strides = [1, 1, 1, 1]} : vector<2x8x8x32xf32> to vector<2x8x1x32xf32>
    %69 = tpu.concatenate %67, %68 in 2 : vector<2x8x7x32xf32>, vector<2x8x1x32xf32> -> vector<2x8x8x32xf32>
    %70 = vector.extract_strided_slice %41 {offsets = [0, 0, 0, 0], sizes = [2, 1, 8, 32], strides = [1, 1, 1, 1]} : vector<2x8x8x32xf32> to vector<2x1x8x32xf32>
    %71 = vector.extract_strided_slice %41 {offsets = [0, 0, 0, 0], sizes = [2, 7, 8, 32], strides = [1, 1, 1, 1]} : vector<2x8x8x32xf32> to vector<2x7x8x32xf32>
    %72 = tpu.concatenate %70, %71 in 1 : vector<2x1x8x32xf32>, vector<2x7x8x32xf32> -> vector<2x8x8x32xf32>
    %73 = vector.extract_strided_slice %41 {offsets = [0, 1, 0, 0], sizes = [2, 7, 8, 32], strides = [1, 1, 1, 1]} : vector<2x8x8x32xf32> to vector<2x7x8x32xf32>
    %74 = vector.extract_strided_slice %41 {offsets = [0, 7, 0, 0], sizes = [2, 1, 8, 32], strides = [1, 1, 1, 1]} : vector<2x8x8x32xf32> to vector<2x1x8x32xf32>
    %75 = tpu.concatenate %73, %74 in 1 : vector<2x7x8x32xf32>, vector<2x1x8x32xf32> -> vector<2x8x8x32xf32>
    %76 = vector.shape_cast %7 : vector<1x1x1x32xi1> to vector<1x1x1x32xi1>
    %77 = vector.broadcast %76 : vector<1x1x1x32xi1> to vector<2x8x8x32xi1>
    %78 = arith.select %77, %72, %75 : vector<2x8x8x32xi1>, vector<2x8x8x32xf32>
    %79 = vector.shape_cast %5 : vector<1x1x1x32xi1> to vector<1x1x1x32xi1>
    %80 = vector.broadcast %79 : vector<1x1x1x32xi1> to vector<2x8x8x32xi1>
    %81 = arith.select %80, %69, %78 : vector<2x8x8x32xi1>, vector<2x8x8x32xf32>
    %82 = vector.shape_cast %3 : vector<1x1x1x32xi1> to vector<1x1x1x32xi1>
    %83 = vector.broadcast %82 : vector<1x1x1x32xi1> to vector<2x8x8x32xi1>
    %84 = arith.select %83, %66, %81 : vector<2x8x8x32xi1>, vector<2x8x8x32xf32>
    %85 = arith.addf %63, %84 : vector<2x8x8x32xf32>
    %86 = arith.addf %85, %42 : vector<2x8x8x32xf32>
    %87 = vector.shape_cast %86 : vector<2x8x8x32xf32> to vector<2x64x32xf32>
    %cst_16 = arith.constant dense<0.000000e+00> : vector<2x32xf32>
    %88 = vector.multi_reduction <add>, %87, %cst_16 [1] : vector<2x64x32xf32> to vector<2x32xf32>
    %c0_17 = arith.constant 0 : index
    %c0_18 = arith.constant 0 : index
    %89 = vector.load %arg6[%c0_17, %c0_18] : memref<32x32xf32, #tpu.memory_space<vmem>>, vector<32x32xf32>
    %cst_19 = arith.constant dense<0.000000e+00> : vector<2x32xf32>
    %90 = tpu.matmul %88, %89, %cst_19 {dimension_numbers = #tpu.dot_dimension_numbers<[1], [0], [0], [1], [0, 0, 1, 1], [], []>} : vector<2x32xf32>, vector<32x32xf32>, vector<2x32xf32> -> vector<2x32xf32>
    %cst_20 = arith.constant 5.000000e-01 : f32
    %91 = vector.broadcast %cst_20 : f32 to vector<2x32xf32>
    %92 = arith.mulf %91, %90 : vector<2x32xf32>
    %cst_21 = arith.constant 4.471500e-02 : f32
    %93 = vector.broadcast %cst_21 : f32 to vector<2x32xf32>
    %94 = arith.mulf %93, %90 : vector<2x32xf32>
    %95 = arith.mulf %94, %90 : vector<2x32xf32>
    %96 = arith.mulf %95, %90 : vector<2x32xf32>
    %97 = arith.addf %90, %96 : vector<2x32xf32>
    %cst_22 = arith.constant 0.797884583 : f32
    %98 = vector.broadcast %cst_22 : f32 to vector<2x32xf32>
    %99 = arith.mulf %98, %97 : vector<2x32xf32>
    %100 = math.tanh %99 : vector<2x32xf32>
    %cst_23 = arith.constant 1.000000e+00 : f32
    %101 = vector.broadcast %cst_23 : f32 to vector<2x32xf32>
    %102 = arith.addf %101, %100 : vector<2x32xf32>
    %103 = arith.mulf %92, %102 : vector<2x32xf32>
    %c0_24 = arith.constant 0 : index
    %c0_25 = arith.constant 0 : index
    %104 = vector.load %arg7[%c0_24, %c0_25] : memref<32x96xf32, #tpu.memory_space<vmem>>, vector<32x96xf32>
    %cst_26 = arith.constant dense<0.000000e+00> : vector<2x96xf32>
    %105 = tpu.matmul %103, %104, %cst_26 {dimension_numbers = #tpu.dot_dimension_numbers<[1], [0], [0], [1], [0, 0, 1, 1], [], []>} : vector<2x32xf32>, vector<32x96xf32>, vector<2x96xf32> -> vector<2x96xf32>
    %106 = vector.extract_strided_slice %105 {offsets = [0, 0], sizes = [2, 32], strides = [1, 1]} : vector<2x96xf32> to vector<2x32xf32>
    %107 = vector.extract_strided_slice %105 {offsets = [0, 32], sizes = [2, 32], strides = [1, 1]} : vector<2x96xf32> to vector<2x32xf32>
    %108 = vector.extract_strided_slice %105 {offsets = [0, 64], sizes = [2, 32], strides = [1, 1]} : vector<2x96xf32> to vector<2x32xf32>
    %109 = arith.maximumf %106, %107 : vector<2x32xf32>
    %110 = arith.maximumf %109, %108 : vector<2x32xf32>
    %111 = arith.subf %106, %110 : vector<2x32xf32>
    %112 = math.exp %111 : vector<2x32xf32>
    %113 = arith.subf %107, %110 : vector<2x32xf32>
    %114 = math.exp %113 : vector<2x32xf32>
    %115 = arith.subf %108, %110 : vector<2x32xf32>
    %116 = math.exp %115 : vector<2x32xf32>
    %117 = arith.addf %112, %114 : vector<2x32xf32>
    %118 = arith.addf %117, %116 : vector<2x32xf32>
    %119 = arith.divf %112, %118 : vector<2x32xf32>
    %120 = vector.shape_cast %119 : vector<2x32xf32> to vector<2x1x1x32xf32>
    %121 = arith.divf %114, %118 : vector<2x32xf32>
    %122 = vector.shape_cast %121 : vector<2x32xf32> to vector<2x1x1x32xf32>
    %123 = arith.divf %116, %118 : vector<2x32xf32>
    %124 = vector.shape_cast %123 : vector<2x32xf32> to vector<2x1x1x32xf32>
    %125 = vector.broadcast %120 : vector<2x1x1x32xf32> to vector<2x8x8x32xf32>
    %126 = arith.mulf %125, %63 : vector<2x8x8x32xf32>
    %127 = vector.broadcast %122 : vector<2x1x1x32xf32> to vector<2x8x8x32xf32>
    %128 = arith.mulf %127, %84 : vector<2x8x8x32xf32>
    %129 = arith.addf %126, %128 : vector<2x8x8x32xf32>
    %130 = vector.broadcast %124 : vector<2x1x1x32xf32> to vector<2x8x8x32xf32>
    %131 = arith.mulf %130, %42 : vector<2x8x8x32xf32>
    %132 = arith.addf %129, %131 : vector<2x8x8x32xf32>
    %133 = vector.shape_cast %132 : vector<2x8x8x32xf32> to vector<128x32xf32>
    %134 = arith.truncf %133 : vector<128x32xf32> to vector<128x32xbf16>
    %c0_27 = arith.constant 0 : index
    %c0_28 = arith.constant 0 : index
    %135 = vector.load %arg8[%c0_27, %c0_28] : memref<32x32xbf16, #tpu.memory_space<vmem>>, vector<32x32xbf16>
    %cst_29 = arith.constant dense<0.000000e+00> : vector<128x32xf32>
    %136 = tpu.matmul %134, %135, %cst_29 {dimension_numbers = #tpu.dot_dimension_numbers<[1], [0], [0], [1], [0, 0, 1, 1], [], []>} : vector<128x32xbf16>, vector<32x32xbf16>, vector<128x32xf32> -> vector<128x32xf32>
    %c0_30 = arith.constant 0 : index
    %c0_31 = arith.constant 0 : index
    %137 = vector.load %arg9[%c0_30, %c0_31] : memref<1x32xf32, #tpu.memory_space<vmem>>, vector<1x32xf32>
    %138 = vector.broadcast %137 : vector<1x32xf32> to vector<128x32xf32>
    %139 = arith.addf %136, %138 : vector<128x32xf32>
    %140 = vector.shape_cast %139 : vector<128x32xf32> to vector<2x8x8x32xf32>
    %141 = arith.addf %0, %140 : vector<2x8x8x32xf32>
    %c0_32 = arith.constant 0 : index
    %c0_33 = arith.constant 0 : index
    %c0_34 = arith.constant 0 : index
    %c0_35 = arith.constant 0 : index
    %142 = vector.load %arg13[%c0_32, %c0_33, %c0_34, %c0_35] : memref<2x8x8x32xf32, #tpu.memory_space<vmem>>, vector<2x8x8x32xf32>
    tpu.vector_store %arg13[%c0_32, %c0_33, %c0_34, %c0_35], %141 {strides = array<i32>} : memref<2x8x8x32xf32, #tpu.memory_space<vmem>>, vector<2x8x8x32xf32>,
    %cst_36 = arith.constant dense<0.000000e+00> : vector<2x8x8xf32>
    %143 = vector.multi_reduction <add>, %141, %cst_36 [3] : vector<2x8x8x32xf32> to vector<2x8x8xf32>
    %144 = vector.shape_cast %143 : vector<2x8x8xf32> to vector<2x8x8x1xf32>
    %cst_37 = arith.constant 3.200000e+01 : f32
    %145 = vector.broadcast %cst_37 : f32 to vector<2x8x8x1xf32>
    %146 = arith.divf %144, %145 : vector<2x8x8x1xf32>
    %147 = vector.broadcast %146 : vector<2x8x8x1xf32> to vector<2x8x8x32xf32>
    %148 = arith.subf %141, %147 : vector<2x8x8x32xf32>
    %149 = arith.mulf %148, %148 : vector<2x8x8x32xf32>
    %cst_38 = arith.constant dense<0.000000e+00> : vector<2x8x8xf32>
    %150 = vector.multi_reduction <add>, %149, %cst_38 [3] : vector<2x8x8x32xf32> to vector<2x8x8xf32>
    %151 = vector.shape_cast %150 : vector<2x8x8xf32> to vector<2x8x8x1xf32>
    %cst_39 = arith.constant 3.200000e+01 : f32
    %152 = vector.broadcast %cst_39 : f32 to vector<2x8x8x1xf32>
    %153 = arith.divf %151, %152 : vector<2x8x8x1xf32>
    %cst_40 = arith.constant 9.99999974E-6 : f32
    %154 = vector.broadcast %cst_40 : f32 to vector<2x8x8x1xf32>
    %155 = arith.addf %153, %154 : vector<2x8x8x1xf32>
    %156 = math.rsqrt %155 : vector<2x8x8x1xf32>
    %157 = vector.broadcast %156 : vector<2x8x8x1xf32> to vector<2x8x8x32xf32>
    %158 = arith.mulf %148, %157 : vector<2x8x8x32xf32>
    %c0_41 = arith.constant 0 : index
    %c0_42 = arith.constant 0 : index
    %159 = vector.load %arg10[%c0_41, %c0_42] : memref<1x32xf32, #tpu.memory_space<vmem>>, vector<1x32xf32>
    %160 = vector.shape_cast %159 : vector<1x32xf32> to vector<1x1x1x32xf32>
    %161 = vector.broadcast %160 : vector<1x1x1x32xf32> to vector<2x8x8x32xf32>
    %162 = arith.mulf %158, %161 : vector<2x8x8x32xf32>
    %c0_43 = arith.constant 0 : index
    %c0_44 = arith.constant 0 : index
    %163 = vector.load %arg11[%c0_43, %c0_44] : memref<1x32xf32, #tpu.memory_space<vmem>>, vector<1x32xf32>
    %164 = vector.shape_cast %163 : vector<1x32xf32> to vector<1x1x1x32xf32>
    %165 = vector.broadcast %164 : vector<1x1x1x32xf32> to vector<2x8x8x32xf32>
    %166 = arith.addf %162, %165 : vector<2x8x8x32xf32>
    %c0_45 = arith.constant 0 : index
    %c0_46 = arith.constant 0 : index
    %167 = vector.load %arg12[%c0_45, %c0_46] : memref<9x32xf32, #tpu.memory_space<vmem>>, vector<9x32xf32>
    %cst_47 = arith.constant 0.000000e+00 : f32
    %168 = vector.broadcast %cst_47 : f32 to vector<2x1x8x32xf32>
    %169 = vector.extract_strided_slice %166 {offsets = [0, 0, 0, 0], sizes = [2, 7, 8, 32], strides = [1, 1, 1, 1]} : vector<2x8x8x32xf32> to vector<2x7x8x32xf32>
    %170 = tpu.concatenate %168, %169 in 1 : vector<2x1x8x32xf32>, vector<2x7x8x32xf32> -> vector<2x8x8x32xf32>
    %171 = vector.extract_strided_slice %166 {offsets = [0, 1, 0, 0], sizes = [2, 7, 8, 32], strides = [1, 1, 1, 1]} : vector<2x8x8x32xf32> to vector<2x7x8x32xf32>
    %172 = tpu.concatenate %171, %168 in 1 : vector<2x7x8x32xf32>, vector<2x1x8x32xf32> -> vector<2x8x8x32xf32>
    %173 = vector.extract_strided_slice %167 {offsets = [0, 0], sizes = [1, 32], strides = [1, 1]} : vector<9x32xf32> to vector<1x32xf32>
    %174 = vector.shape_cast %173 : vector<1x32xf32> to vector<1x1x1x32xf32>
    %175 = vector.broadcast %174 : vector<1x1x1x32xf32> to vector<2x8x8x32xf32>
    %176 = arith.mulf %175, %170 : vector<2x8x8x32xf32>
    %177 = vector.extract_strided_slice %167 {offsets = [3, 0], sizes = [1, 32], strides = [1, 1]} : vector<9x32xf32> to vector<1x32xf32>
    %178 = vector.shape_cast %177 : vector<1x32xf32> to vector<1x1x1x32xf32>
    %179 = vector.broadcast %178 : vector<1x1x1x32xf32> to vector<2x8x8x32xf32>
    %180 = arith.mulf %179, %166 : vector<2x8x8x32xf32>
    %181 = arith.addf %176, %180 : vector<2x8x8x32xf32>
    %182 = vector.extract_strided_slice %167 {offsets = [6, 0], sizes = [1, 32], strides = [1, 1]} : vector<9x32xf32> to vector<1x32xf32>
    %183 = vector.shape_cast %182 : vector<1x32xf32> to vector<1x1x1x32xf32>
    %184 = vector.broadcast %183 : vector<1x1x1x32xf32> to vector<2x8x8x32xf32>
    %185 = arith.mulf %184, %172 : vector<2x8x8x32xf32>
    %186 = arith.addf %181, %185 : vector<2x8x8x32xf32>
    %187 = vector.extract_strided_slice %167 {offsets = [1, 0], sizes = [1, 32], strides = [1, 1]} : vector<9x32xf32> to vector<1x32xf32>
    %188 = vector.shape_cast %187 : vector<1x32xf32> to vector<1x1x1x32xf32>
    %189 = vector.broadcast %188 : vector<1x1x1x32xf32> to vector<2x8x8x32xf32>
    %190 = arith.mulf %189, %170 : vector<2x8x8x32xf32>
    %191 = vector.extract_strided_slice %167 {offsets = [4, 0], sizes = [1, 32], strides = [1, 1]} : vector<9x32xf32> to vector<1x32xf32>
    %192 = vector.shape_cast %191 : vector<1x32xf32> to vector<1x1x1x32xf32>
    %193 = vector.broadcast %192 : vector<1x1x1x32xf32> to vector<2x8x8x32xf32>
    %194 = arith.mulf %193, %166 : vector<2x8x8x32xf32>
    %195 = arith.addf %190, %194 : vector<2x8x8x32xf32>
    %196 = vector.extract_strided_slice %167 {offsets = [7, 0], sizes = [1, 32], strides = [1, 1]} : vector<9x32xf32> to vector<1x32xf32>
    %197 = vector.shape_cast %196 : vector<1x32xf32> to vector<1x1x1x32xf32>
    %198 = vector.broadcast %197 : vector<1x1x1x32xf32> to vector<2x8x8x32xf32>
    %199 = arith.mulf %198, %172 : vector<2x8x8x32xf32>
    %200 = arith.addf %195, %199 : vector<2x8x8x32xf32>
    %201 = vector.extract_strided_slice %167 {offsets = [2, 0], sizes = [1, 32], strides = [1, 1]} : vector<9x32xf32> to vector<1x32xf32>
    %202 = vector.shape_cast %201 : vector<1x32xf32> to vector<1x1x1x32xf32>
    %203 = vector.broadcast %202 : vector<1x1x1x32xf32> to vector<2x8x8x32xf32>
    %204 = arith.mulf %203, %170 : vector<2x8x8x32xf32>
    %205 = vector.extract_strided_slice %167 {offsets = [5, 0], sizes = [1, 32], strides = [1, 1]} : vector<9x32xf32> to vector<1x32xf32>
    %206 = vector.shape_cast %205 : vector<1x32xf32> to vector<1x1x1x32xf32>
    %207 = vector.broadcast %206 : vector<1x1x1x32xf32> to vector<2x8x8x32xf32>
    %208 = arith.mulf %207, %166 : vector<2x8x8x32xf32>
    %209 = arith.addf %204, %208 : vector<2x8x8x32xf32>
    %210 = vector.extract_strided_slice %167 {offsets = [8, 0], sizes = [1, 32], strides = [1, 1]} : vector<9x32xf32> to vector<1x32xf32>
    %211 = vector.shape_cast %210 : vector<1x32xf32> to vector<1x1x1x32xf32>
    %212 = vector.broadcast %211 : vector<1x1x1x32xf32> to vector<2x8x8x32xf32>
    %213 = arith.mulf %212, %172 : vector<2x8x8x32xf32>
    %214 = arith.addf %209, %213 : vector<2x8x8x32xf32>
    %cst_48 = arith.constant 0.000000e+00 : f32
    %215 = vector.broadcast %cst_48 : f32 to vector<2x8x1x32xf32>
    %216 = vector.extract_strided_slice %186 {offsets = [0, 0, 0, 0], sizes = [2, 8, 7, 32], strides = [1, 1, 1, 1]} : vector<2x8x8x32xf32> to vector<2x8x7x32xf32>
    %217 = tpu.concatenate %215, %216 in 2 : vector<2x8x1x32xf32>, vector<2x8x7x32xf32> -> vector<2x8x8x32xf32>
    %218 = vector.extract_strided_slice %214 {offsets = [0, 0, 1, 0], sizes = [2, 8, 7, 32], strides = [1, 1, 1, 1]} : vector<2x8x8x32xf32> to vector<2x8x7x32xf32>
    %219 = tpu.concatenate %218, %215 in 2 : vector<2x8x7x32xf32>, vector<2x8x1x32xf32> -> vector<2x8x8x32xf32>
    %220 = arith.addf %217, %200 : vector<2x8x8x32xf32>
    %221 = arith.addf %220, %219 : vector<2x8x8x32xf32>
    %c0_49 = arith.constant 0 : index
    %c0_50 = arith.constant 0 : index
    %c0_51 = arith.constant 0 : index
    %c0_52 = arith.constant 0 : index
    %222 = vector.load %arg14[%c0_49, %c0_50, %c0_51, %c0_52] : memref<2x8x8x32xf32, #tpu.memory_space<vmem>>, vector<2x8x8x32xf32>
    tpu.vector_store %arg14[%c0_49, %c0_50, %c0_51, %c0_52], %221 {strides = array<i32>} : memref<2x8x8x32xf32, #tpu.memory_space<vmem>>, vector<2x8x8x32xf32>,
    %223 = vector.shape_cast %221 : vector<2x8x8x32xf32> to vector<128x32xf32>
    %cst_53 = arith.constant dense<0.000000e+00> : vector<32xf32>
    %224 = vector.multi_reduction <add>, %223, %cst_53 [0] : vector<128x32xf32> to vector<32xf32>
    %225 = vector.shape_cast %224 : vector<32xf32> to vector<1x32xf32>
    %226 = arith.mulf %223, %223 : vector<128x32xf32>
    %cst_54 = arith.constant dense<0.000000e+00> : vector<32xf32>
    %227 = vector.multi_reduction <add>, %226, %cst_54 [0] : vector<128x32xf32> to vector<32xf32>
    %228 = vector.shape_cast %227 : vector<32xf32> to vector<1x32xf32>
    %229 = tpu.concatenate %225, %228 in 0 : vector<1x32xf32>, vector<1x32xf32> -> vector<2x32xf32>
    %c0_55 = arith.constant 0 : index
    %c0_56 = arith.constant 0 : index
    %c0_57 = arith.constant 0 : index
    %230 = vector.load %arg15[%c0_55, %c0_56, %c0_57] : memref<1x2x32xf32, #tpu.memory_space<vmem>>, vector<1x2x32xf32>
    %231 = vector.shape_cast %230 : vector<1x2x32xf32> to vector<2x32xf32>
    %232 = vector.shape_cast %229 : vector<2x32xf32> to vector<1x2x32xf32>
    tpu.vector_store %arg15[%c0_55, %c0_56, %c0_57], %232 {strides = array<i32>} : memref<1x2x32xf32, #tpu.memory_space<vmem>>, vector<1x2x32xf32>,
    return
  }
  func.func @transform_0(%arg0: i32) -> (i32, i32, i32, i32) {
    %c0_i32 = arith.constant 0 : i32
    %c0_i32_0 = arith.constant 0 : i32
    %c0_i32_1 = arith.constant 0 : i32
    %c0_i32_2 = arith.constant 0 : i32
    return %arg0, %c0_i32, %c0_i32_0, %c0_i32_1 : i32, i32, i32, i32
  }
  func.func @transform_1(%arg0: i32) -> (i32, i32) {
    %c0_i32 = arith.constant 0 : i32
    %c0_i32_0 = arith.constant 0 : i32
    %c0_i32_1 = arith.constant 0 : i32
    return %c0_i32, %c0_i32_0 : i32, i32
  }
  func.func @transform_2(%arg0: i32) -> (i32, i32) {
    %c0_i32 = arith.constant 0 : i32
    %c0_i32_0 = arith.constant 0 : i32
    %c0_i32_1 = arith.constant 0 : i32
    return %c0_i32, %c0_i32_0 : i32, i32
  }
  func.func @transform_3(%arg0: i32) -> (i32, i32) {
    %c0_i32 = arith.constant 0 : i32
    %c0_i32_0 = arith.constant 0 : i32
    %c0_i32_1 = arith.constant 0 : i32
    return %c0_i32, %c0_i32_0 : i32, i32
  }
  func.func @transform_4(%arg0: i32) -> (i32, i32) {
    %c0_i32 = arith.constant 0 : i32
    %c0_i32_0 = arith.constant 0 : i32
    %c0_i32_1 = arith.constant 0 : i32
    return %c0_i32, %c0_i32_0 : i32, i32
  }
  func.func @transform_5(%arg0: i32) -> (i32, i32) {
    %c0_i32 = arith.constant 0 : i32
    %c0_i32_0 = arith.constant 0 : i32
    %c0_i32_1 = arith.constant 0 : i32
    return %c0_i32, %c0_i32_0 : i32, i32
  }
  func.func @transform_6(%arg0: i32) -> (i32, i32) {
    %c0_i32 = arith.constant 0 : i32
    %c0_i32_0 = arith.constant 0 : i32
    %c0_i32_1 = arith.constant 0 : i32
    return %c0_i32, %c0_i32_0 : i32, i32
  }
  func.func @transform_7(%arg0: i32) -> (i32, i32) {
    %c0_i32 = arith.constant 0 : i32
    %c0_i32_0 = arith.constant 0 : i32
    %c0_i32_1 = arith.constant 0 : i32
    return %c0_i32, %c0_i32_0 : i32, i32
  }
  func.func @transform_8(%arg0: i32) -> (i32, i32) {
    %c0_i32 = arith.constant 0 : i32
    %c0_i32_0 = arith.constant 0 : i32
    %c0_i32_1 = arith.constant 0 : i32
    return %c0_i32, %c0_i32_0 : i32, i32
  }
  func.func @transform_9(%arg0: i32) -> (i32, i32) {
    %c0_i32 = arith.constant 0 : i32
    %c0_i32_0 = arith.constant 0 : i32
    %c0_i32_1 = arith.constant 0 : i32
    return %c0_i32, %c0_i32_0 : i32, i32
  }
  func.func @transform_10(%arg0: i32) -> (i32, i32) {
    %c0_i32 = arith.constant 0 : i32
    %c0_i32_0 = arith.constant 0 : i32
    %c0_i32_1 = arith.constant 0 : i32
    return %c0_i32, %c0_i32_0 : i32, i32
  }
  func.func @transform_11(%arg0: i32) -> (i32, i32) {
    %c0_i32 = arith.constant 0 : i32
    %c0_i32_0 = arith.constant 0 : i32
    %c0_i32_1 = arith.constant 0 : i32
    return %c0_i32, %c0_i32_0 : i32, i32
  }
  func.func @transform_12(%arg0: i32) -> (i32, i32, i32, i32) {
    %c0_i32 = arith.constant 0 : i32
    %c0_i32_0 = arith.constant 0 : i32
    %c0_i32_1 = arith.constant 0 : i32
    %c0_i32_2 = arith.constant 0 : i32
    return %arg0, %c0_i32, %c0_i32_0, %c0_i32_1 : i32, i32, i32, i32
  }
  func.func @transform_13(%arg0: i32) -> (i32, i32, i32, i32) {
    %c0_i32 = arith.constant 0 : i32
    %c0_i32_0 = arith.constant 0 : i32
    %c0_i32_1 = arith.constant 0 : i32
    %c0_i32_2 = arith.constant 0 : i32
    return %arg0, %c0_i32, %c0_i32_0, %c0_i32_1 : i32, i32, i32, i32
  }
  func.func @transform_14(%arg0: i32) -> (i32, i32, i32) {
    %c0_i32 = arith.constant 0 : i32
    %c0_i32_0 = arith.constant 0 : i32
    %c0_i32_1 = arith.constant 0 : i32
    return %arg0, %c0_i32, %c0_i32_0 : i32, i32, i32
  }
}

module attributes {stable_mosaic.version = 11 : i64} {
  func.func @kernel_ffn(%arg0: i32, %arg1: memref<2x8x8x32xf32, #tpu.memory_space<vmem>>, %arg2: memref<2x8x8x32xf32, #tpu.memory_space<vmem>>, %arg3: memref<32x128xbf16, #tpu.memory_space<vmem>>, %arg4: memref<1x128xf32, #tpu.memory_space<vmem>>, %arg5: memref<128x32xbf16, #tpu.memory_space<vmem>>, %arg6: memref<1x32xf32, #tpu.memory_space<vmem>>, %arg7: memref<2x8x8x32xf32, #tpu.memory_space<vmem>>) attributes {dimension_semantics = [#tpu.dimension_semantics<parallel>], iteration_bounds = array<i64: 1>, scalar_prefetch = 0 : i64, scratch_operands = 0 : i64, tpu.core_type = #tpu.core_type<tc>, window_params = [{transform_indices = @transform_0, window_bounds = array<i64: 2, 8, 8, 32>}, {transform_indices = @transform_1, window_bounds = array<i64: 2, 8, 8, 32>}, {pipeline_mode = #tpu.pipeline_mode<synchronous>, transform_indices = @transform_2, window_bounds = array<i64: 32, 128>}, {pipeline_mode = #tpu.pipeline_mode<synchronous>, transform_indices = @transform_3, window_bounds = array<i64: 1, 128>}, {pipeline_mode = #tpu.pipeline_mode<synchronous>, transform_indices = @transform_4, window_bounds = array<i64: 128, 32>}, {pipeline_mode = #tpu.pipeline_mode<synchronous>, transform_indices = @transform_5, window_bounds = array<i64: 1, 32>}, {transform_indices = @transform_6, window_bounds = array<i64: 2, 8, 8, 32>}]} {
    %c0 = arith.constant 0 : index
    %c0_0 = arith.constant 0 : index
    %c0_1 = arith.constant 0 : index
    %c0_2 = arith.constant 0 : index
    %0 = vector.load %arg1[%c0, %c0_0, %c0_1, %c0_2] : memref<2x8x8x32xf32, #tpu.memory_space<vmem>>, vector<2x8x8x32xf32>
    %c0_3 = arith.constant 0 : index
    %c0_4 = arith.constant 0 : index
    %c0_5 = arith.constant 0 : index
    %c0_6 = arith.constant 0 : index
    %1 = vector.load %arg2[%c0_3, %c0_4, %c0_5, %c0_6] : memref<2x8x8x32xf32, #tpu.memory_space<vmem>>, vector<2x8x8x32xf32>
    %2 = vector.shape_cast %1 : vector<2x8x8x32xf32> to vector<128x32xf32>
    %3 = arith.truncf %2 : vector<128x32xf32> to vector<128x32xbf16>
    %c0_7 = arith.constant 0 : index
    %c0_8 = arith.constant 0 : index
    %4 = vector.load %arg3[%c0_7, %c0_8] : memref<32x128xbf16, #tpu.memory_space<vmem>>, vector<32x128xbf16>
    %cst = arith.constant dense<0.000000e+00> : vector<128x128xf32>
    %5 = tpu.matmul %3, %4, %cst {dimension_numbers = #tpu.dot_dimension_numbers<[1], [0], [0], [1], [0, 0, 1, 1], [], []>} : vector<128x32xbf16>, vector<32x128xbf16>, vector<128x128xf32> -> vector<128x128xf32>
    %c0_9 = arith.constant 0 : index
    %c0_10 = arith.constant 0 : index
    %6 = vector.load %arg4[%c0_9, %c0_10] : memref<1x128xf32, #tpu.memory_space<vmem>>, vector<1x128xf32>
    %7 = vector.broadcast %6 : vector<1x128xf32> to vector<128x128xf32>
    %8 = arith.addf %5, %7 : vector<128x128xf32>
    %cst_11 = arith.constant 5.000000e-01 : f32
    %9 = vector.broadcast %cst_11 : f32 to vector<128x128xf32>
    %10 = arith.mulf %9, %8 : vector<128x128xf32>
    %cst_12 = arith.constant 4.471500e-02 : f32
    %11 = vector.broadcast %cst_12 : f32 to vector<128x128xf32>
    %12 = arith.mulf %11, %8 : vector<128x128xf32>
    %13 = arith.mulf %12, %8 : vector<128x128xf32>
    %14 = arith.mulf %13, %8 : vector<128x128xf32>
    %15 = arith.addf %8, %14 : vector<128x128xf32>
    %cst_13 = arith.constant 0.797884583 : f32
    %16 = vector.broadcast %cst_13 : f32 to vector<128x128xf32>
    %17 = arith.mulf %16, %15 : vector<128x128xf32>
    %18 = math.tanh %17 : vector<128x128xf32>
    %cst_14 = arith.constant 1.000000e+00 : f32
    %19 = vector.broadcast %cst_14 : f32 to vector<128x128xf32>
    %20 = arith.addf %19, %18 : vector<128x128xf32>
    %21 = arith.mulf %10, %20 : vector<128x128xf32>
    %22 = arith.truncf %21 : vector<128x128xf32> to vector<128x128xbf16>
    %c0_15 = arith.constant 0 : index
    %c0_16 = arith.constant 0 : index
    %23 = vector.load %arg5[%c0_15, %c0_16] : memref<128x32xbf16, #tpu.memory_space<vmem>>, vector<128x32xbf16>
    %cst_17 = arith.constant dense<0.000000e+00> : vector<128x32xf32>
    %24 = tpu.matmul %22, %23, %cst_17 {dimension_numbers = #tpu.dot_dimension_numbers<[1], [0], [0], [1], [0, 0, 1, 1], [], []>} : vector<128x128xbf16>, vector<128x32xbf16>, vector<128x32xf32> -> vector<128x32xf32>
    %c0_18 = arith.constant 0 : index
    %c0_19 = arith.constant 0 : index
    %25 = vector.load %arg6[%c0_18, %c0_19] : memref<1x32xf32, #tpu.memory_space<vmem>>, vector<1x32xf32>
    %26 = vector.broadcast %25 : vector<1x32xf32> to vector<128x32xf32>
    %27 = arith.addf %24, %26 : vector<128x32xf32>
    %28 = vector.shape_cast %27 : vector<128x32xf32> to vector<2x8x8x32xf32>
    %29 = arith.addf %0, %28 : vector<2x8x8x32xf32>
    %c0_20 = arith.constant 0 : index
    %c0_21 = arith.constant 0 : index
    %c0_22 = arith.constant 0 : index
    %c0_23 = arith.constant 0 : index
    %30 = vector.load %arg7[%c0_20, %c0_21, %c0_22, %c0_23] : memref<2x8x8x32xf32, #tpu.memory_space<vmem>>, vector<2x8x8x32xf32>
    tpu.vector_store %arg7[%c0_20, %c0_21, %c0_22, %c0_23], %29 {strides = array<i32>} : memref<2x8x8x32xf32, #tpu.memory_space<vmem>>, vector<2x8x8x32xf32>,
    return
  }
  func.func @transform_0(%arg0: i32) -> (i32, i32, i32, i32) {
    %c0_i32 = arith.constant 0 : i32
    %c0_i32_0 = arith.constant 0 : i32
    %c0_i32_1 = arith.constant 0 : i32
    %c0_i32_2 = arith.constant 0 : i32
    return %arg0, %c0_i32, %c0_i32_0, %c0_i32_1 : i32, i32, i32, i32
  }
  func.func @transform_1(%arg0: i32) -> (i32, i32, i32, i32) {
    %c0_i32 = arith.constant 0 : i32
    %c0_i32_0 = arith.constant 0 : i32
    %c0_i32_1 = arith.constant 0 : i32
    %c0_i32_2 = arith.constant 0 : i32
    return %arg0, %c0_i32, %c0_i32_0, %c0_i32_1 : i32, i32, i32, i32
  }
  func.func @transform_2(%arg0: i32) -> (i32, i32) {
    %c0_i32 = arith.constant 0 : i32
    %c0_i32_0 = arith.constant 0 : i32
    %c0_i32_1 = arith.constant 0 : i32
    return %c0_i32, %c0_i32_0 : i32, i32
  }
  func.func @transform_3(%arg0: i32) -> (i32, i32) {
    %c0_i32 = arith.constant 0 : i32
    %c0_i32_0 = arith.constant 0 : i32
    %c0_i32_1 = arith.constant 0 : i32
    return %c0_i32, %c0_i32_0 : i32, i32
  }
  func.func @transform_4(%arg0: i32) -> (i32, i32) {
    %c0_i32 = arith.constant 0 : i32
    %c0_i32_0 = arith.constant 0 : i32
    %c0_i32_1 = arith.constant 0 : i32
    return %c0_i32, %c0_i32_0 : i32, i32
  }
  func.func @transform_5(%arg0: i32) -> (i32, i32) {
    %c0_i32 = arith.constant 0 : i32
    %c0_i32_0 = arith.constant 0 : i32
    %c0_i32_1 = arith.constant 0 : i32
    return %c0_i32, %c0_i32_0 : i32, i32
  }
  func.func @transform_6(%arg0: i32) -> (i32, i32, i32, i32) {
    %c0_i32 = arith.constant 0 : i32
    %c0_i32_0 = arith.constant 0 : i32
    %c0_i32_1 = arith.constant 0 : i32
    %c0_i32_2 = arith.constant 0 : i32
    return %arg0, %c0_i32, %c0_i32_0, %c0_i32_1 : i32, i32, i32, i32
  }
}

</mosaic_0001>

<llo_original>
// kernel: s2block_forward.5
$region0: #{s2block_forward.5}
  #allocation0 [shape = 'u32[]', space=smem, size = 0x4, offset = 0x4, fixed_abs, tag = 'smem constant byte address 0x4 - core index']
  #allocation1 [shape = 'u32[72,128]{1,0:T(1,128)}', space=vmem, size = 0x9000, scoped, tag = 'internal scratch']
  %s0 = inlined_call_operand.vmem [shape: f32[2,8,8,32], index: 0, kind: input, shape index: {}, may-alias: {0,6}]
  %s1 = inlined_call_operand.vmem [shape: f32[2,8,8,32], index: 1, kind: input, shape index: {}]
  %s2 = inlined_call_operand.vmem [shape: bf16[32,128], index: 2, kind: input, shape index: {}]
  %s3 = inlined_call_operand.vmem [shape: f32[1,128], index: 3, kind: input, shape index: {}]
  %s4 = inlined_call_operand.vmem [shape: bf16[128,32], index: 4, kind: input, shape index: {}]
  %s5 = inlined_call_operand.vmem [shape: f32[1,32], index: 5, kind: input, shape index: {}]
  %s6 = inlined_call_operand.vmem [shape: f32[2,8,8,32], index: 6, kind: output, shape index: {}, may-alias: {0,6}]
  %s7 = sld [smem:[#allocation0]]
  $region34: #{s2block_forward.5} parent=0
    _
  %s9 = ssub.s32 1, %s7
  %s10 = scalar_select 0, %s9, %s7
  // Predicated region
  $region2: #{s2block_forward.5} parent=0 // pred_check
    _
  $region3: #{s2block_forward.5} parent=0 // pred_check_branch
    %12 = sbr.rel (0) target = $region5
  $region4: #{s2block_forward.5} parent=0 // pred_region
    _
  $region5: #{s2block_forward.5} parent=0 // pred_fallthru
    _
  // Predicated region
  $region6: #{s2block_forward.5} parent=0 // pred_check
    _
  $region7: #{s2block_forward.5} parent=0 // pred_check_branch
    %14 = sbr.rel (0) target = $region9
  $region8: #{s2block_forward.5} parent=0 // pred_region
    _
  $region9: #{s2block_forward.5} parent=0 // pred_fallthru
    _
  // Predicated region
  $region10: #{s2block_forward.5} parent=0 // pred_check
    _
  $region11: #{s2block_forward.5} parent=0 // pred_check_branch
    %16 = sbr.rel (0) target = $region13
  $region12: #{s2block_forward.5} parent=0 // pred_region
    _
  $region13: #{s2block_forward.5} parent=0 // pred_fallthru
    _
  // Predicated region
  $region14: #{s2block_forward.5} parent=0 // pred_check
    _
  $region15: #{s2block_forward.5} parent=0 // pred_check_branch
    %18 = sbr.rel (0) target = $region17
  $region16: #{s2block_forward.5} parent=0 // pred_region
    _
  $region17: #{s2block_forward.5} parent=0 // pred_fallthru
    _
  // Predicated region
  $region18: #{s2block_forward.5} parent=0 // pred_check
    _
  $region19: #{s2block_forward.5} parent=0 // pred_check_branch
    %20 = sbr.rel (0) target = $region21
  $region20: #{s2block_forward.5} parent=0 // pred_region
    _
  $region21: #{s2block_forward.5} parent=0 // pred_fallthru
    _
  // Predicated region
  $region22: #{s2block_forward.5} parent=0 // pred_check
    _
  $region23: #{s2block_forward.5} parent=0 // pred_check_branch
    %22 = sbr.rel (0) target = $region25
  $region24: #{s2block_forward.5} parent=0 // pred_region
    _
  $region25: #{s2block_forward.5} parent=0 // pred_fallthru
    _
  %v24 = vld [vmem:[%s0] sm:$0xff]
  %v25 = vld [vmem:[%s0 + $0x8] sm:$0xff]
  %v26 = vld [vmem:[%s0 + $0x10] sm:$0xff]
  %v27 = vld [vmem:[%s0 + $0x18] sm:$0xff]
  %v28 = vld [vmem:[%s0 + $0x20] sm:$0xff]
  %v29 = vld [vmem:[%s0 + $0x28] sm:$0xff]
  %v30 = vld [vmem:[%s0 + $0x30] sm:$0xff]
  %v31 = vld [vmem:[%s0 + $0x38] sm:$0xff]
  %v32 = vld [vmem:[%s0 + $0x40] sm:$0xff]
  %v33 = vld [vmem:[%s0 + $0x48] sm:$0xff]
  %v34 = vld [vmem:[%s0 + $0x50] sm:$0xff]
  %v35 = vld [vmem:[%s0 + $0x58] sm:$0xff]
  %v36 = vld [vmem:[%s0 + $0x60] sm:$0xff]
  %v37 = vld [vmem:[%s0 + $0x68] sm:$0xff]
  %v38 = vld [vmem:[%s0 + $0x70] sm:$0xff]
  %v39 = vld [vmem:[%s0 + $0x78] sm:$0xff]
  %v40 = vld [vmem:[%s1] sm:$0xff]
  %v41 = vld [vmem:[%s1 + $0x8] sm:$0xff]
  %v42 = vld [vmem:[%s1 + $0x10] sm:$0xff]
  %v43 = vld [vmem:[%s1 + $0x18] sm:$0xff]
  %v44 = vld [vmem:[%s1 + $0x20] sm:$0xff]
  %v45 = vld [vmem:[%s1 + $0x28] sm:$0xff]
  %v46 = vld [vmem:[%s1 + $0x30] sm:$0xff]
  %v47 = vld [vmem:[%s1 + $0x38] sm:$0xff]
  %v48 = vld [vmem:[%s1 + $0x40] sm:$0xff]
  %v49 = vld [vmem:[%s1 + $0x48] sm:$0xff]
  %v50 = vld [vmem:[%s1 + $0x50] sm:$0xff]
  %v51 = vld [vmem:[%s1 + $0x58] sm:$0xff]
  %v52 = vld [vmem:[%s1 + $0x60] sm:$0xff]
  %v53 = vld [vmem:[%s1 + $0x68] sm:$0xff]
  %v54 = vld [vmem:[%s1 + $0x70] sm:$0xff]
  %v55 = vld [vmem:[%s1 + $0x78] sm:$0xff]
  %v56 = vpack.c.bf16 %v41, %v40
  %v57 = vpack.c.bf16 %v43, %v42
  %v58 = vpack.c.bf16 %v45, %v44
  %v59 = vpack.c.bf16 %v47, %v46
  %v60 = vpack.c.bf16 %v49, %v48
  %v61 = vpack.c.bf16 %v51, %v50
  %v62 = vpack.c.bf16 %v53, %v52
  %v63 = vpack.c.bf16 %v55, %v54
  %v64 = vld [vmem:[%s2] sm:$0xf]
  %v65 = vld [vmem:[%s2 + $0x4] sm:$0xf]
  %v66 = vld [vmem:[%s2 + $0x8] sm:$0xf]
  %v67 = vld [vmem:[%s2 + $0xc] sm:$0xf]
  %v68 = vld [vmem:[%s3] sm:$0x1]
  %v70 = vperm.slane %v68, 0
  %v76 = vunpack.c.l.b16 %v64
  %v77 = vunpack.c.l.b16 %v65
  %v78 = vunpack.c.l.b16 %v66
  %v79 = vunpack.c.l.b16 %v67
  %v80 = vpack.c.b16 %v77, %v76
  %v81 = vpack.c.b16 %v79, %v78
  %vm84 = vcmask 261120
  %v86 = vsel %vm84, %v56, 0
  %v89 = vsel %vm84, %v57, 0
  %v92 = vsel %vm84, %v58, 0
  %v95 = vsel %vm84, %v59, 0
  %v98 = vsel %vm84, %v60, 0
  %v101 = vsel %vm84, %v61, 0
  %v104 = vsel %vm84, %v62, 0
  %v107 = vsel %vm84, %v63, 0
  %109 = vmatpush.bf16.msra.mxu0 0
  %110 = vmatpush.bf16.msra.mxu0 0
  %111 = vmatpush.bf16.msra.mxu0 0
  %112 = vmatpush.bf16.msra.mxu0 0
  %113 = vmatpush.bf16.msra.mxu0 0
  %114 = vmatpush.bf16.msra.mxu0 0
  %115 = vmatpush.bf16.msra.mxu0 %v81
  %116 = vmatpush.bf16.msra.mxu0 %v80
  %117 = vmatmul.bf16.gmra.mxu0 %v86
  %v118 = vpop.f32.mrf.mxu0
  %v119 = vadd.f32 %v70, %v118
  %v120 = vpop.f32.mrf.mxu0
  %v121 = vadd.f32 %v70, %v120
  %122 = vmatmul.bf16.gmra.mxu0 %v89
  %v123 = vpop.f32.mrf.mxu0
  %v124 = vadd.f32 %v70, %v123
  %v125 = vpop.f32.mrf.mxu0
  %v126 = vadd.f32 %v70, %v125
  %127 = vmatmul.bf16.gmra.mxu0 %v92
  %v128 = vpop.f32.mrf.mxu0
  %v129 = vadd.f32 %v70, %v128
  %v130 = vpop.f32.mrf.mxu0
  %v131 = vadd.f32 %v70, %v130
  %132 = vmatmul.bf16.gmra.mxu0 %v95
  %v133 = vpop.f32.mrf.mxu0
  %v134 = vadd.f32 %v70, %v133
  %v135 = vpop.f32.mrf.mxu0
  %v136 = vadd.f32 %v70, %v135
  %137 = vmatmul.bf16.gmra.mxu0 %v98
  %v138 = vpop.f32.mrf.mxu0
  %v139 = vadd.f32 %v70, %v138
  %v140 = vpop.f32.mrf.mxu0
  %v141 = vadd.f32 %v70, %v140
  %142 = vmatmul.bf16.gmra.mxu0 %v101
  %v143 = vpop.f32.mrf.mxu0
  %v144 = vadd.f32 %v70, %v143
  %v145 = vpop.f32.mrf.mxu0
  %v146 = vadd.f32 %v70, %v145
  %147 = vmatmul.bf16.gmra.mxu0 %v104
  %v148 = vpop.f32.mrf.mxu0
  %v149 = vadd.f32 %v70, %v148
  %v150 = vpop.f32.mrf.mxu0
  %v151 = vadd.f32 %v70, %v150
  %152 = vmatmul.bf16.gmra.mxu0 %v107
  %v153 = vpop.f32.mrf.mxu0
  %v154 = vadd.f32 %v70, %v153
  %v155 = vpop.f32.mrf.mxu0
  %v156 = vadd.f32 %v70, %v155
  %157 = vdwg.mxu0
  %v158 = vmul.f32 %v119, 0.5
  %v159 = vmul.f32 %v121, 0.5
  %v160 = vmul.f32 %v124, 0.5
  %v161 = vmul.f32 %v126, 0.5
  %v162 = vmul.f32 %v129, 0.5
  %v163 = vmul.f32 %v131, 0.5
  %v164 = vmul.f32 %v134, 0.5
  %v165 = vmul.f32 %v136, 0.5
  %v166 = vmul.f32 %v139, 0.5
  %v167 = vmul.f32 %v141, 0.5
  %v168 = vmul.f32 %v144, 0.5
  %v169 = vmul.f32 %v146, 0.5
  %v170 = vmul.f32 %v149, 0.5
  %v171 = vmul.f32 %v151, 0.5
  %v172 = vmul.f32 %v154, 0.5
  %v173 = vmul.f32 %v156, 0.5
  %v174 = vmul.f32 %v119, 0.044715
  %v175 = vmul.f32 %v121, 0.044715
  %v176 = vmul.f32 %v124, 0.044715
  %v177 = vmul.f32 %v126, 0.044715
  %v178 = vmul.f32 %v129, 0.044715
  %v179 = vmul.f32 %v131, 0.044715
  %v180 = vmul.f32 %v134, 0.044715
  %v181 = vmul.f32 %v136, 0.044715
  %v182 = vmul.f32 %v139, 0.044715
  %v183 = vmul.f32 %v141, 0.044715
  %v184 = vmul.f32 %v144, 0.044715
  %v185 = vmul.f32 %v146, 0.044715
  %v186 = vmul.f32 %v149, 0.044715
  %v187 = vmul.f32 %v151, 0.044715
  %v188 = vmul.f32 %v154, 0.044715
  %v189 = vmul.f32 %v156, 0.044715
  %v190 = vmul.f32 %v174, %v119
  %v191 = vmul.f32 %v175, %v121
  %v192 = vmul.f32 %v176, %v124
  %v193 = vmul.f32 %v177, %v126
  %v194 = vmul.f32 %v178, %v129
  %v195 = vmul.f32 %v179, %v131
  %v196 = vmul.f32 %v180, %v134
  %v197 = vmul.f32 %v181, %v136
  %v198 = vmul.f32 %v182, %v139
  %v199 = vmul.f32 %v183, %v141
  %v200 = vmul.f32 %v184, %v144
  %v201 = vmul.f32 %v185, %v146
  %v202 = vmul.f32 %v186, %v149
  %v203 = vmul.f32 %v187, %v151
  %v204 = vmul.f32 %v188, %v154
  %v205 = vmul.f32 %v189, %v156
  %v206 = vmul.f32 %v190, %v119
  %v207 = vmul.f32 %v191, %v121
  %v208 = vmul.f32 %v192, %v124
  %v209 = vmul.f32 %v193, %v126
  %v210 = vmul.f32 %v194, %v129
  %v211 = vmul.f32 %v195, %v131
  %v212 = vmul.f32 %v196, %v134
  %v213 = vmul.f32 %v197, %v136
  %v214 = vmul.f32 %v198, %v139
  %v215 = vmul.f32 %v199, %v141
  %v216 = vmul.f32 %v200, %v144
  %v217 = vmul.f32 %v201, %v146
  %v218 = vmul.f32 %v202, %v149
  %v219 = vmul.f32 %v203, %v151
  %v220 = vmul.f32 %v204, %v154
  %v221 = vmul.f32 %v205, %v156
  %v222 = vadd.f32 %v119, %v206
  %v223 = vadd.f32 %v121, %v207
  %v224 = vadd.f32 %v124, %v208
  %v225 = vadd.f32 %v126, %v209
  %v226 = vadd.f32 %v129, %v210
  %v227 = vadd.f32 %v131, %v211
  %v228 = vadd.f32 %v134, %v212
  %v229 = vadd.f32 %v136, %v213
  %v230 = vadd.f32 %v139, %v214
  %v231 = vadd.f32 %v141, %v215
  %v232 = vadd.f32 %v144, %v216
  %v233 = vadd.f32 %v146, %v217
  %v234 = vadd.f32 %v149, %v218
  %v235 = vadd.f32 %v151, %v219
  %v236 = vadd.f32 %v154, %v220
  %v237 = vadd.f32 %v156, %v221
  %v238 = vmul.f32 %v222, 0.7978846
  %v239 = vmul.f32 %v223, 0.7978846
  %v240 = vmul.f32 %v224, 0.7978846
  %v241 = vmul.f32 %v225, 0.7978846
  %v242 = vmul.f32 %v226, 0.7978846
  %v243 = vmul.f32 %v227, 0.7978846
  %v244 = vmul.f32 %v228, 0.7978846
  %v245 = vmul.f32 %v229, 0.7978846
  %v246 = vmul.f32 %v230, 0.7978846
  %v247 = vmul.f32 %v231, 0.7978846
  %v248 = vmul.f32 %v232, 0.7978846
  %v249 = vmul.f32 %v233, 0.7978846
  %v250 = vmul.f32 %v234, 0.7978846
  %v251 = vmul.f32 %v235, 0.7978846
  %v252 = vmul.f32 %v236, 0.7978846
  %v253 = vmul.f32 %v237, 0.7978846
  %v254 = vtanh.pop %v238
  %v255 = vtanh.pop %v239
  %v256 = vtanh.pop %v240
  %v257 = vtanh.pop %v241
  %v258 = vtanh.pop %v242
  %v259 = vtanh.pop %v243
  %v260 = vtanh.pop %v244
  %v261 = vtanh.pop %v245
  %v262 = vtanh.pop %v246
  %v263 = vtanh.pop %v247
  %v264 = vtanh.pop %v248
  %v265 = vtanh.pop %v249
  %v266 = vtanh.pop %v250
  %v267 = vtanh.pop %v251
  %v268 = vtanh.pop %v252
  %v269 = vtanh.pop %v253
  %v270 = vadd.f32 %v254, 1.0
  %v271 = vadd.f32 %v255, 1.0
  %v272 = vadd.f32 %v256, 1.0
  %v273 = vadd.f32 %v257, 1.0
  %v274 = vadd.f32 %v258, 1.0
  %v275 = vadd.f32 %v259, 1.0
  %v276 = vadd.f32 %v260, 1.0
  %v277 = vadd.f32 %v261, 1.0
  %v278 = vadd.f32 %v262, 1.0
  %v279 = vadd.f32 %v263, 1.0
  %v280 = vadd.f32 %v264, 1.0
  %v281 = vadd.f32 %v265, 1.0
  %v282 = vadd.f32 %v266, 1.0
  %v283 = vadd.f32 %v267, 1.0
  %v284 = vadd.f32 %v268, 1.0
  %v285 = vadd.f32 %v269, 1.0
  %v286 = vmul.f32 %v158, %v270
  %v287 = vmul.f32 %v159, %v271
  %v288 = vmul.f32 %v160, %v272
  %v289 = vmul.f32 %v161, %v273
  %v290 = vmul.f32 %v162, %v274
  %v291 = vmul.f32 %v163, %v275
  %v292 = vmul.f32 %v164, %v276
  %v293 = vmul.f32 %v165, %v277
  %v294 = vmul.f32 %v166, %v278
  %v295 = vmul.f32 %v167, %v279
  %v296 = vmul.f32 %v168, %v280
  %v297 = vmul.f32 %v169, %v281
  %v298 = vmul.f32 %v170, %v282
  %v299 = vmul.f32 %v171, %v283
  %v300 = vmul.f32 %v172, %v284
  %v301 = vmul.f32 %v173, %v285
  %v302 = vpack.c.bf16 %v287, %v286
  %v303 = vpack.c.bf16 %v289, %v288
  %v304 = vpack.c.bf16 %v291, %v290
  %v305 = vpack.c.bf16 %v293, %v292
  %v306 = vpack.c.bf16 %v295, %v294
  %v307 = vpack.c.bf16 %v297, %v296
  %v308 = vpack.c.bf16 %v299, %v298
  %v309 = vpack.c.bf16 %v301, %v300
  %v310 = vld [vmem:[%s4] sm:$0xf]
  %v311 = vld [vmem:[%s4 + $0x4] sm:$0xf]
  %v312 = vld [vmem:[%s4 + $0x8] sm:$0xf]
  %v313 = vld [vmem:[%s4 + $0xc] sm:$0xf]
  %v314 = vld [vmem:[%s4 + $0x10] sm:$0xf]
  %v315 = vld [vmem:[%s4 + $0x14] sm:$0xf]
  %v316 = vld [vmem:[%s4 + $0x18] sm:$0xf]
  %v317 = vld [vmem:[%s4 + $0x1c] sm:$0xf]
  %v318 = vld [vmem:[%s4 + $0x20] sm:$0xf]
  %v319 = vld [vmem:[%s4 + $0x24] sm:$0xf]
  %v320 = vld [vmem:[%s4 + $0x28] sm:$0xf]
  %v321 = vld [vmem:[%s4 + $0x2c] sm:$0xf]
  %v322 = vld [vmem:[%s4 + $0x30] sm:$0xf]
  %v323 = vld [vmem:[%s4 + $0x34] sm:$0xf]
  %v324 = vld [vmem:[%s4 + $0x38] sm:$0xf]
  %v325 = vld [vmem:[%s4 + $0x3c] sm:$0xf]
  %v326 = vld [vmem:[%s5] sm:$0x1]
  %v328 = vperm.slane %v326, 0
  %v346 = vunpack.c.l.b16 %v310
  %v347 = vunpack.c.l.b16 %v311
  %v348 = vunpack.c.l.b16 %v312
  %v349 = vunpack.c.l.b16 %v313
  %v350 = vunpack.c.l.b16 %v314
  %v351 = vunpack.c.l.b16 %v315
  %v352 = vunpack.c.l.b16 %v316
  %v353 = vunpack.c.l.b16 %v317
  %v354 = vunpack.c.l.b16 %v318
  %v355 = vunpack.c.l.b16 %v319
  %v356 = vunpack.c.l.b16 %v320
  %v357 = vunpack.c.l.b16 %v321
  %v358 = vunpack.c.l.b16 %v322
  %v359 = vunpack.c.l.b16 %v323
  %v360 = vunpack.c.l.b16 %v324
  %v361 = vunpack.c.l.b16 %v325
  %v362 = vpack.c.b16 %v347, %v346
  %v363 = vpack.c.b16 %v349, %v348
  %v364 = vpack.c.b16 %v351, %v350
  %v365 = vpack.c.b16 %v353, %v352
  %v366 = vpack.c.b16 %v355, %v354
  %v367 = vpack.c.b16 %v357, %v356
  %v368 = vpack.c.b16 %v359, %v358
  %v369 = vpack.c.b16 %v361, %v360
  %378 = vmatpush.bf16.msra.mxu0 %v369
  %379 = vmatpush.bf16.msra.mxu0 %v368
  %380 = vmatpush.bf16.msra.mxu0 %v367
  %381 = vmatpush.bf16.msra.mxu0 %v366
  %382 = vmatpush.bf16.msra.mxu0 %v365
  %383 = vmatpush.bf16.msra.mxu0 %v364
  %384 = vmatpush.bf16.msra.mxu0 %v363
  %385 = vmatpush.bf16.msra.mxu0 %v362
  %386 = vmatmul.bf16.gmra.mxu0 %v302
  %v387 = vpop.f32.mrf.mxu0
  %v388 = vadd.f32 %v328, %v387
  %v389 = vpop.f32.mrf.mxu0
  %v390 = vadd.f32 %v328, %v389
  %391 = vmatmul.bf16.gmra.mxu0 %v303
  %v392 = vpop.f32.mrf.mxu0
  %v393 = vadd.f32 %v328, %v392
  %v394 = vpop.f32.mrf.mxu0
  %v395 = vadd.f32 %v328, %v394
  %396 = vmatmul.bf16.gmra.mxu0 %v304
  %v397 = vpop.f32.mrf.mxu0
  %v398 = vadd.f32 %v328, %v397
  %v399 = vpop.f32.mrf.mxu0
  %v400 = vadd.f32 %v328, %v399
  %401 = vmatmul.bf16.gmra.mxu0 %v305
  %v402 = vpop.f32.mrf.mxu0
  %v403 = vadd.f32 %v328, %v402
  %v404 = vpop.f32.mrf.mxu0
  %v405 = vadd.f32 %v328, %v404
  %406 = vmatmul.bf16.gmra.mxu0 %v306
  %v407 = vpop.f32.mrf.mxu0
  %v408 = vadd.f32 %v328, %v407
  %v409 = vpop.f32.mrf.mxu0
  %v410 = vadd.f32 %v328, %v409
  %411 = vmatmul.bf16.gmra.mxu0 %v307
  %v412 = vpop.f32.mrf.mxu0
  %v413 = vadd.f32 %v328, %v412
  %v414 = vpop.f32.mrf.mxu0
  %v415 = vadd.f32 %v328, %v414
  %416 = vmatmul.bf16.gmra.mxu0 %v308
  %v417 = vpop.f32.mrf.mxu0
  %v418 = vadd.f32 %v328, %v417
  %v419 = vpop.f32.mrf.mxu0
  %v420 = vadd.f32 %v328, %v419
  %421 = vmatmul.bf16.gmra.mxu0 %v309
  %v422 = vpop.f32.mrf.mxu0
  %v423 = vadd.f32 %v328, %v422
  %v424 = vpop.f32.mrf.mxu0
  %v425 = vadd.f32 %v328, %v424
  %426 = vdwg.mxu0
  %v427 = vadd.f32 %v24, %v388
  %v428 = vadd.f32 %v25, %v390
  %v429 = vadd.f32 %v26, %v393
  %v430 = vadd.f32 %v27, %v395
  %v431 = vadd.f32 %v28, %v398
  %v432 = vadd.f32 %v29, %v400
  %v433 = vadd.f32 %v30, %v403
  %v434 = vadd.f32 %v31, %v405
  %v435 = vadd.f32 %v32, %v408
  %v436 = vadd.f32 %v33, %v410
  %v437 = vadd.f32 %v34, %v413
  %v438 = vadd.f32 %v35, %v415
  %v439 = vadd.f32 %v36, %v418
  %v440 = vadd.f32 %v37, %v420
  %v441 = vadd.f32 %v38, %v423
  %v442 = vadd.f32 %v39, %v425
  %443 = vst.msk [vmem:[%s6] sm:$0xff] %vm84, %v427
  %444 = vst.msk [vmem:[%s6 + $0x8] sm:$0xff] %vm84, %v428
  %445 = vst.msk [vmem:[%s6 + $0x10] sm:$0xff] %vm84, %v429
  %446 = vst.msk [vmem:[%s6 + $0x18] sm:$0xff] %vm84, %v430
  %447 = vst.msk [vmem:[%s6 + $0x20] sm:$0xff] %vm84, %v431
  %448 = vst.msk [vmem:[%s6 + $0x28] sm:$0xff] %vm84, %v432
  %449 = vst.msk [vmem:[%s6 + $0x30] sm:$0xff] %vm84, %v433
  %450 = vst.msk [vmem:[%s6 + $0x38] sm:$0xff] %vm84, %v434
  %451 = vst.msk [vmem:[%s6 + $0x40] sm:$0xff] %vm84, %v435
  %452 = vst.msk [vmem:[%s6 + $0x48] sm:$0xff] %vm84, %v436
  %453 = vst.msk [vmem:[%s6 + $0x50] sm:$0xff] %vm84, %v437
  %454 = vst.msk [vmem:[%s6 + $0x58] sm:$0xff] %vm84, %v438
  %455 = vst.msk [vmem:[%s6 + $0x60] sm:$0xff] %vm84, %v439
  %456 = vst.msk [vmem:[%s6 + $0x68] sm:$0xff] %vm84, %v440
  %457 = vst.msk [vmem:[%s6 + $0x70] sm:$0xff] %vm84, %v441
  %458 = vst.msk [vmem:[%s6 + $0x78] sm:$0xff] %vm84, %v442
  // Predicated region
  $region26: #{s2block_forward.5} parent=0 // pred_check
    _
  $region27: #{s2block_forward.5} parent=0 // pred_check_branch
    %460 = sbr.rel (0) target = $region29
  $region28: #{s2block_forward.5} parent=0 // pred_region
    _
  $region29: #{s2block_forward.5} parent=0 // pred_fallthru
    _
  // Predicated region
  $region30: #{s2block_forward.5} parent=0 // pred_check
    _
  $region31: #{s2block_forward.5} parent=0 // pred_check_branch
    %462 = sbr.rel (0) target = $region33
  $region32: #{s2block_forward.5} parent=0 // pred_region
    _
  $region33: #{s2block_forward.5} parent=0 // pred_fallthru
    _

// kernel: s2block_forward.4
$region0: #{s2block_forward.4}
  #allocation0 [shape = 'u32[]', space=smem, size = 0x4, offset = 0x4, fixed_abs, tag = 'smem constant byte address 0x4 - core index']
  #allocation1 [shape = 'u32[72,128]{1,0:T(1,128)}', space=vmem, size = 0x9000, scoped, tag = 'internal scratch']
  %s0 = inlined_call_operand.vmem [shape: f32[2,8,8,32], index: 0, kind: input, shape index: {}, may-alias: {0,12}]
  %s1 = inlined_call_operand.vmem [shape: f32[1,32], index: 1, kind: input, shape index: {}]
  %s2 = inlined_call_operand.vmem [shape: f32[1,32], index: 2, kind: input, shape index: {}]
  %s3 = inlined_call_operand.vmem [shape: bf16[32,96], index: 3, kind: input, shape index: {}]
  %s4 = inlined_call_operand.vmem [shape: f32[1,96], index: 4, kind: input, shape index: {}]
  %s5 = inlined_call_operand.vmem [shape: f32[32,32], index: 5, kind: input, shape index: {}]
  %s6 = inlined_call_operand.vmem [shape: f32[32,96], index: 6, kind: input, shape index: {}]
  %s7 = inlined_call_operand.vmem [shape: bf16[32,32], index: 7, kind: input, shape index: {}]
  %s8 = inlined_call_operand.vmem [shape: f32[1,32], index: 8, kind: input, shape index: {}]
  %s9 = inlined_call_operand.vmem [shape: f32[1,32], index: 9, kind: input, shape index: {}]
  %s10 = inlined_call_operand.vmem [shape: f32[1,32], index: 10, kind: input, shape index: {}]
  %s11 = inlined_call_operand.vmem [shape: f32[9,32], index: 11, kind: input, shape index: {}]
  %s12 = inlined_call_operand.vmem [shape: f32[2,8,8,32], index: 12, kind: output, shape index: {0}, may-alias: {0,12}]
  %s13 = inlined_call_operand.vmem [shape: f32[2,8,8,32], index: 13, kind: output, shape index: {1}]
  %s14 = inlined_call_operand.vmem [shape: f32[1,2,32], index: 14, kind: output, shape index: {2}]
  %15 = xla_tuple %s12, %s13, %s14
  %s16 = sld [smem:[#allocation0]]
  $region74: #{s2block_forward.4} parent=0
    _
  %s18 = ssub.s32 1, %s16
  %s19 = scalar_select 0, %s18, %s16
  // Predicated region
  $region2: #{s2block_forward.4} parent=0 // pred_check
    _
  $region3: #{s2block_forward.4} parent=0 // pred_check_branch
    %21 = sbr.rel (0) target = $region5
  $region4: #{s2block_forward.4} parent=0 // pred_region
    _
  $region5: #{s2block_forward.4} parent=0 // pred_fallthru
    _
  // Predicated region
  $region6: #{s2block_forward.4} parent=0 // pred_check
    _
  $region7: #{s2block_forward.4} parent=0 // pred_check_branch
    %23 = sbr.rel (0) target = $region9
  $region8: #{s2block_forward.4} parent=0 // pred_region
    _
  $region9: #{s2block_forward.4} parent=0 // pred_fallthru
    _
  // Predicated region
  $region10: #{s2block_forward.4} parent=0 // pred_check
    _
  $region11: #{s2block_forward.4} parent=0 // pred_check_branch
    %25 = sbr.rel (0) target = $region13
  $region12: #{s2block_forward.4} parent=0 // pred_region
    _
  $region13: #{s2block_forward.4} parent=0 // pred_fallthru
    _
  // Predicated region
  $region14: #{s2block_forward.4} parent=0 // pred_check
    _
  $region15: #{s2block_forward.4} parent=0 // pred_check_branch
    %27 = sbr.rel (0) target = $region17
  $region16: #{s2block_forward.4} parent=0 // pred_region
    _
  $region17: #{s2block_forward.4} parent=0 // pred_fallthru
    _
  // Predicated region
  $region18: #{s2block_forward.4} parent=0 // pred_check
    _
  $region19: #{s2block_forward.4} parent=0 // pred_check_branch
    %29 = sbr.rel (0) target = $region21
  $region20: #{s2block_forward.4} parent=0 // pred_region
    _
  $region21: #{s2block_forward.4} parent=0 // pred_fallthru
    _
  // Predicated region
  $region22: #{s2block_forward.4} parent=0 // pred_check
    _
  $region23: #{s2block_forward.4} parent=0 // pred_check_branch
    %31 = sbr.rel (0) target = $region25
  $region24: #{s2block_forward.4} parent=0 // pred_region
    _
  $region25: #{s2block_forward.4} parent=0 // pred_fallthru
    _
  // Predicated region
  $region26: #{s2block_forward.4} parent=0 // pred_check
    _
  $region27: #{s2block_forward.4} parent=0 // pred_check_branch
    %33 = sbr.rel (0) target = $region29
  $region28: #{s2block_forward.4} parent=0 // pred_region
    _
  $region29: #{s2block_forward.4} parent=0 // pred_fallthru
    _
  // Predicated region
  $region30: #{s2block_forward.4} parent=0 // pred_check
    _
  $region31: #{s2block_forward.4} parent=0 // pred_check_branch
    %35 = sbr.rel (0) target = $region33
  $region32: #{s2block_forward.4} parent=0 // pred_region
    _
  $region33: #{s2block_forward.4} parent=0 // pred_fallthru
    _
  // Predicated region
  $region34: #{s2block_forward.4} parent=0 // pred_check
    _
  $region35: #{s2block_forward.4} parent=0 // pred_check_branch
    %37 = sbr.rel (0) target = $region37
  $region36: #{s2block_forward.4} parent=0 // pred_region
    _
  $region37: #{s2block_forward.4} parent=0 // pred_fallthru
    _
  // Predicated region
  $region38: #{s2block_forward.4} parent=0 // pred_check
    _
  $region39: #{s2block_forward.4} parent=0 // pred_check_branch
    %39 = sbr.rel (0) target = $region41
  $region40: #{s2block_forward.4} parent=0 // pred_region
    _
  $region41: #{s2block_forward.4} parent=0 // pred_fallthru
    _
  // Predicated region
  $region42: #{s2block_forward.4} parent=0 // pred_check
    _
  $region43: #{s2block_forward.4} parent=0 // pred_check_branch
    %41 = sbr.rel (0) target = $region45
  $region44: #{s2block_forward.4} parent=0 // pred_region
    _
  $region45: #{s2block_forward.4} parent=0 // pred_fallthru
    _
  // Predicated region
  $region46: #{s2block_forward.4} parent=0 // pred_check
    _
  $region47: #{s2block_forward.4} parent=0 // pred_check_branch
    %43 = sbr.rel (0) target = $region49
  $region48: #{s2block_forward.4} parent=0 // pred_region
    _
  $region49: #{s2block_forward.4} parent=0 // pred_fallthru
    _
  %v45 = vld [vmem:[%s0] sm:$0xff]
  %v46 = vld [vmem:[%s0 + $0x8] sm:$0xff]
  %v47 = vld [vmem:[%s0 + $0x10] sm:$0xff]
  %v48 = vld [vmem:[%s0 + $0x18] sm:$0xff]
  %v49 = vld [vmem:[%s0 + $0x20] sm:$0xff]
  %v50 = vld [vmem:[%s0 + $0x28] sm:$0xff]
  %v51 = vld [vmem:[%s0 + $0x30] sm:$0xff]
  %v52 = vld [vmem:[%s0 + $0x38] sm:$0xff]
  %v53 = vld [vmem:[%s0 + $0x40] sm:$0xff]
  %v54 = vld [vmem:[%s0 + $0x48] sm:$0xff]
  %v55 = vld [vmem:[%s0 + $0x50] sm:$0xff]
  %v56 = vld [vmem:[%s0 + $0x58] sm:$0xff]
  %v57 = vld [vmem:[%s0 + $0x60] sm:$0xff]
  %v58 = vld [vmem:[%s0 + $0x68] sm:$0xff]
  %v59 = vld [vmem:[%s0 + $0x70] sm:$0xff]
  %v60 = vld [vmem:[%s0 + $0x78] sm:$0xff]
  %v61 = vlaneseq
  %v62 = vand.u32 %v61, 127
  %vm63 = vcmp.lt.s32.totalorder %v62, 8
  %vm64 = vcmp.lt.s32.totalorder %v62, 16
  %vm65 = vcmp.lt.s32.totalorder %v62, 24
  %vm66 = vcmask 261120
  %v67 = vsel %vm66, %v45, 0.0
  %68 = vadd.xlane.f32.xlu0 %v67
  %v69 = vpop.xlane.xlu0 %68
  %v70 = vsel %vm66, %v46, 0.0
  %71 = vadd.xlane.f32.xlu0 %v70
  %v72 = vpop.xlane.xlu0 %71
  %v73 = vsel %vm66, %v47, 0.0
  %74 = vadd.xlane.f32.xlu0 %v73
  %v75 = vpop.xlane.xlu0 %74
  %v76 = vsel %vm66, %v48, 0.0
  %77 = vadd.xlane.f32.xlu0 %v76
  %v78 = vpop.xlane.xlu0 %77
  %v79 = vsel %vm66, %v49, 0.0
  %80 = vadd.xlane.f32.xlu0 %v79
  %v81 = vpop.xlane.xlu0 %80
  %v82 = vsel %vm66, %v50, 0.0
  %83 = vadd.xlane.f32.xlu0 %v82
  %v84 = vpop.xlane.xlu0 %83
  %v85 = vsel %vm66, %v51, 0.0
  %86 = vadd.xlane.f32.xlu0 %v85
  %v87 = vpop.xlane.xlu0 %86
  %v88 = vsel %vm66, %v52, 0.0
  %89 = vadd.xlane.f32.xlu0 %v88
  %v90 = vpop.xlane.xlu0 %89
  %v91 = vsel %vm66, %v53, 0.0
  %92 = vadd.xlane.f32.xlu0 %v91
  %v93 = vpop.xlane.xlu0 %92
  %v94 = vsel %vm66, %v54, 0.0
  %95 = vadd.xlane.f32.xlu0 %v94
  %v96 = vpop.xlane.xlu0 %95
  %v97 = vsel %vm66, %v55, 0.0
  %98 = vadd.xlane.f32.xlu0 %v97
  %v99 = vpop.xlane.xlu0 %98
  %v100 = vsel %vm66, %v56, 0.0
  %101 = vadd.xlane.f32.xlu0 %v100
  %v102 = vpop.xlane.xlu0 %101
  %v103 = vsel %vm66, %v57, 0.0
  %104 = vadd.xlane.f32.xlu0 %v103
  %v105 = vpop.xlane.xlu0 %104
  %v106 = vsel %vm66, %v58, 0.0
  %107 = vadd.xlane.f32.xlu0 %v106
  %v108 = vpop.xlane.xlu0 %107
  %v109 = vsel %vm66, %v59, 0.0
  %110 = vadd.xlane.f32.xlu0 %v109
  %v111 = vpop.xlane.xlu0 %110
  %v112 = vsel %vm66, %v60, 0.0
  %113 = vadd.xlane.f32.xlu0 %v112
  %v114 = vpop.xlane.xlu0 %113
  %v115 = vrcp.pop 32.0
  %v116 = vmul.f32 32.0, %v115
  %v117 = vsub.f32 1.0, %v116
  %v118 = vmul.f32 %v115, %v117
  %v119 = vadd.f32 %v115, %v118
  %vm120 = vweird.f32 %v115
  %v121 = vsel %vm120, %v115, %v119
  %v122 = vmul.f32 %v69, %v121
  %v123 = vmul.f32 %v72, %v121
  %v124 = vmul.f32 %v75, %v121
  %v125 = vmul.f32 %v78, %v121
  %v126 = vmul.f32 %v81, %v121
  %v127 = vmul.f32 %v84, %v121
  %v128 = vmul.f32 %v87, %v121
  %v129 = vmul.f32 %v90, %v121
  %v130 = vmul.f32 %v93, %v121
  %v131 = vmul.f32 %v96, %v121
  %v132 = vmul.f32 %v99, %v121
  %v133 = vmul.f32 %v102, %v121
  %v134 = vmul.f32 %v105, %v121
  %v135 = vmul.f32 %v108, %v121
  %v136 = vmul.f32 %v111, %v121
  %v137 = vmul.f32 %v114, %v121
  %v138 = vsub.f32 %v45, %v122
  %v139 = vsub.f32 %v46, %v123
  %v140 = vsub.f32 %v47, %v124
  %v141 = vsub.f32 %v48, %v125
  %v142 = vsub.f32 %v49, %v126
  %v143 = vsub.f32 %v50, %v127
  %v144 = vsub.f32 %v51, %v128
  %v145 = vsub.f32 %v52, %v129
  %v146 = vsub.f32 %v53, %v130
  %v147 = vsub.f32 %v54, %v131
  %v148 = vsub.f32 %v55, %v132
  %v149 = vsub.f32 %v56, %v133
  %v150 = vsub.f32 %v57, %v134
  %v151 = vsub.f32 %v58, %v135
  %v152 = vsub.f32 %v59, %v136
  %v153 = vsub.f32 %v60, %v137
  %v154 = vmul.f32 %v138, %v138
  %v155 = vmul.f32 %v139, %v139
  %v156 = vmul.f32 %v140, %v140
  %v157 = vmul.f32 %v141, %v141
  %v158 = vmul.f32 %v142, %v142
  %v159 = vmul.f32 %v143, %v143
  %v160 = vmul.f32 %v144, %v144
  %v161 = vmul.f32 %v145, %v145
  %v162 = vmul.f32 %v146, %v146
  %v163 = vmul.f32 %v147, %v147
  %v164 = vmul.f32 %v148, %v148
  %v165 = vmul.f32 %v149, %v149
  %v166 = vmul.f32 %v150, %v150
  %v167 = vmul.f32 %v151, %v151
  %v168 = vmul.f32 %v152, %v152
  %v169 = vmul.f32 %v153, %v153
  %v170 = vsel %vm66, %v154, 0.0
  %171 = vadd.xlane.f32.xlu0 %v170
  %v172 = vpop.xlane.xlu0 %171
  %v173 = vsel %vm66, %v155, 0.0
  %174 = vadd.xlane.f32.xlu0 %v173
  %v175 = vpop.xlane.xlu0 %174
  %v176 = vsel %vm66, %v156, 0.0
  %177 = vadd.xlane.f32.xlu0 %v176
  %v178 = vpop.xlane.xlu0 %177
  %v179 = vsel %vm66, %v157, 0.0
  %180 = vadd.xlane.f32.xlu0 %v179
  %v181 = vpop.xlane.xlu0 %180
  %v182 = vsel %vm66, %v158, 0.0
  %183 = vadd.xlane.f32.xlu0 %v182
  %v184 = vpop.xlane.xlu0 %183
  %v185 = vsel %vm66, %v159, 0.0
  %186 = vadd.xlane.f32.xlu0 %v185
  %v187 = vpop.xlane.xlu0 %186
  %v188 = vsel %vm66, %v160, 0.0
  %189 = vadd.xlane.f32.xlu0 %v188
  %v190 = vpop.xlane.xlu0 %189
  %v191 = vsel %vm66, %v161, 0.0
  %192 = vadd.xlane.f32.xlu0 %v191
  %v193 = vpop.xlane.xlu0 %192
  %v194 = vsel %vm66, %v162, 0.0
  %195 = vadd.xlane.f32.xlu0 %v194
  %v196 = vpop.xlane.xlu0 %195
  %v197 = vsel %vm66, %v163, 0.0
  %198 = vadd.xlane.f32.xlu0 %v197
  %v199 = vpop.xlane.xlu0 %198
  %v200 = vsel %vm66, %v164, 0.0
  %201 = vadd.xlane.f32.xlu0 %v200
  %v202 = vpop.xlane.xlu0 %201
  %v203 = vsel %vm66, %v165, 0.0
  %204 = vadd.xlane.f32.xlu0 %v203
  %v205 = vpop.xlane.xlu0 %204
  %v206 = vsel %vm66, %v166, 0.0
  %207 = vadd.xlane.f32.xlu0 %v206
  %v208 = vpop.xlane.xlu0 %207
  %v209 = vsel %vm66, %v167, 0.0
  %210 = vadd.xlane.f32.xlu0 %v209
  %v211 = vpop.xlane.xlu0 %210
  %v212 = vsel %vm66, %v168, 0.0
  %213 = vadd.xlane.f32.xlu0 %v212
  %v214 = vpop.xlane.xlu0 %213
  %v215 = vsel %vm66, %v169, 0.0
  %216 = vadd.xlane.f32.xlu0 %v215
  %v217 = vpop.xlane.xlu0 %216
  %v218 = vmul.f32 %v172, %v121
  %v219 = vmul.f32 %v175, %v121
  %v220 = vmul.f32 %v178, %v121
  %v221 = vmul.f32 %v181, %v121
  %v222 = vmul.f32 %v184, %v121
  %v223 = vmul.f32 %v187, %v121
  %v224 = vmul.f32 %v190, %v121
  %v225 = vmul.f32 %v193, %v121
  %v226 = vmul.f32 %v196, %v121
  %v227 = vmul.f32 %v199, %v121
  %v228 = vmul.f32 %v202, %v121
  %v229 = vmul.f32 %v205, %v121
  %v230 = vmul.f32 %v208, %v121
  %v231 = vmul.f32 %v211, %v121
  %v232 = vmul.f32 %v214, %v121
  %v233 = vmul.f32 %v217, %v121
  %v234 = vadd.f32 %v218, 1e-05
  %v235 = vadd.f32 %v219, 1e-05
  %v236 = vadd.f32 %v220, 1e-05
  %v237 = vadd.f32 %v221, 1e-05
  %v238 = vadd.f32 %v222, 1e-05
  %v239 = vadd.f32 %v223, 1e-05
  %v240 = vadd.f32 %v224, 1e-05
  %v241 = vadd.f32 %v225, 1e-05
  %v242 = vadd.f32 %v226, 1e-05
  %v243 = vadd.f32 %v227, 1e-05
  %v244 = vadd.f32 %v228, 1e-05
  %v245 = vadd.f32 %v229, 1e-05
  %v246 = vadd.f32 %v230, 1e-05
  %v247 = vadd.f32 %v231, 1e-05
  %v248 = vadd.f32 %v232, 1e-05
  %v249 = vadd.f32 %v233, 1e-05
  %v250 = vrsqrt.pop %v234
  %v251 = vmul.f32 %v250, %v234
  %v252 = vmul.f32 %v251, %v250
  %v253 = vmul.f32 0.5, %v252
  %v254 = vsub.f32 1.5, %v253
  %v255 = vmul.f32 %v250, %v254
  %vm256 = vweird.f32 %v234
  %vm257 = vweird.f32 %v250
  %vm258 = vmor %vm256, %vm257
  %v259 = vsel %vm258, %v250, %v255
  %v260 = vrsqrt.pop %v235
  %v261 = vmul.f32 %v260, %v235
  %v262 = vmul.f32 %v261, %v260
  %v263 = vmul.f32 0.5, %v262
  %v264 = vsub.f32 1.5, %v263
  %v265 = vmul.f32 %v260, %v264
  %vm266 = vweird.f32 %v235
  %vm267 = vweird.f32 %v260
  %vm268 = vmor %vm266, %vm267
  %v269 = vsel %vm268, %v260, %v265
  %v270 = vrsqrt.pop %v236
  %v271 = vmul.f32 %v270, %v236
  %v272 = vmul.f32 %v271, %v270
  %v273 = vmul.f32 0.5, %v272
  %v274 = vsub.f32 1.5, %v273
  %v275 = vmul.f32 %v270, %v274
  %vm276 = vweird.f32 %v236
  %vm277 = vweird.f32 %v270
  %vm278 = vmor %vm276, %vm277
  %v279 = vsel %vm278, %v270, %v275
  %v280 = vrsqrt.pop %v237
  %v281 = vmul.f32 %v280, %v237
  %v282 = vmul.f32 %v281, %v280
  %v283 = vmul.f32 0.5, %v282
  %v284 = vsub.f32 1.5, %v283
  %v285 = vmul.f32 %v280, %v284
  %vm286 = vweird.f32 %v237
  %vm287 = vweird.f32 %v280
  %vm288 = vmor %vm286, %vm287
  %v289 = vsel %vm288, %v280, %v285
  %v290 = vrsqrt.pop %v238
  %v291 = vmul.f32 %v290, %v238
  %v292 = vmul.f32 %v291, %v290
  %v293 = vmul.f32 0.5, %v292
  %v294 = vsub.f32 1.5, %v293
  %v295 = vmul.f32 %v290, %v294
  %vm296 = vweird.f32 %v238
  %vm297 = vweird.f32 %v290
  %vm298 = vmor %vm296, %vm297
  %v299 = vsel %vm298, %v290, %v295
  %v300 = vrsqrt.pop %v239
  %v301 = vmul.f32 %v300, %v239
  %v302 = vmul.f32 %v301, %v300
  %v303 = vmul.f32 0.5, %v302
  %v304 = vsub.f32 1.5, %v303
  %v305 = vmul.f32 %v300, %v304
  %vm306 = vweird.f32 %v239
  %vm307 = vweird.f32 %v300
  %vm308 = vmor %vm306, %vm307
  %v309 = vsel %vm308, %v300, %v305
  %v310 = vrsqrt.pop %v240
  %v311 = vmul.f32 %v310, %v240
  %v312 = vmul.f32 %v311, %v310
  %v313 = vmul.f32 0.5, %v312
  %v314 = vsub.f32 1.5, %v313
  %v315 = vmul.f32 %v310, %v314
  %vm316 = vweird.f32 %v240
  %vm317 = vweird.f32 %v310
  %vm318 = vmor %vm316, %vm317
  %v319 = vsel %vm318, %v310, %v315
  %v320 = vrsqrt.pop %v241
  %v321 = vmul.f32 %v320, %v241
  %v322 = vmul.f32 %v321, %v320
  %v323 = vmul.f32 0.5, %v322
  %v324 = vsub.f32 1.5, %v323
  %v325 = vmul.f32 %v320, %v324
  %vm326 = vweird.f32 %v241
  %vm327 = vweird.f32 %v320
  %vm328 = vmor %vm326, %vm327
  %v329 = vsel %vm328, %v320, %v325
  %v330 = vrsqrt.pop %v242
  %v331 = vmul.f32 %v330, %v242
  %v332 = vmul.f32 %v331, %v330
  %v333 = vmul.f32 0.5, %v332
  %v334 = vsub.f32 1.5, %v333
  %v335 = vmul.f32 %v330, %v334
  %vm336 = vweird.f32 %v242
  %vm337 = vweird.f32 %v330
  %vm338 = vmor %vm336, %vm337
  %v339 = vsel %vm338, %v330, %v335
  %v340 = vrsqrt.pop %v243
  %v341 = vmul.f32 %v340, %v243
  %v342 = vmul.f32 %v341, %v340
  %v343 = vmul.f32 0.5, %v342
  %v344 = vsub.f32 1.5, %v343
  %v345 = vmul.f32 %v340, %v344
  %vm346 = vweird.f32 %v243
  %vm347 = vweird.f32 %v340
  %vm348 = vmor %vm346, %vm347
  %v349 = vsel %vm348, %v340, %v345
  %v350 = vrsqrt.pop %v244
  %v351 = vmul.f32 %v350, %v244
  %v352 = vmul.f32 %v351, %v350
  %v353 = vmul.f32 0.5, %v352
  %v354 = vsub.f32 1.5, %v353
  %v355 = vmul.f32 %v350, %v354
  %vm356 = vweird.f32 %v244
  %vm357 = vweird.f32 %v350
  %vm358 = vmor %vm356, %vm357
  %v359 = vsel %vm358, %v350, %v355
  %v360 = vrsqrt.pop %v245
  %v361 = vmul.f32 %v360, %v245
  %v362 = vmul.f32 %v361, %v360
  %v363 = vmul.f32 0.5, %v362
  %v364 = vsub.f32 1.5, %v363
  %v365 = vmul.f32 %v360, %v364
  %vm366 = vweird.f32 %v245
  %vm367 = vweird.f32 %v360
  %vm368 = vmor %vm366, %vm367
  %v369 = vsel %vm368, %v360, %v365
  %v370 = vrsqrt.pop %v246
  %v371 = vmul.f32 %v370, %v246
  %v372 = vmul.f32 %v371, %v370
  %v373 = vmul.f32 0.5, %v372
  %v374 = vsub.f32 1.5, %v373
  %v375 = vmul.f32 %v370, %v374
  %vm376 = vweird.f32 %v246
  %vm377 = vweird.f32 %v370
  %vm378 = vmor %vm376, %vm377
  %v379 = vsel %vm378, %v370, %v375
  %v380 = vrsqrt.pop %v247
  %v381 = vmul.f32 %v380, %v247
  %v382 = vmul.f32 %v381, %v380
  %v383 = vmul.f32 0.5, %v382
  %v384 = vsub.f32 1.5, %v383
  %v385 = vmul.f32 %v380, %v384
  %vm386 = vweird.f32 %v247
  %vm387 = vweird.f32 %v380
  %vm388 = vmor %vm386, %vm387
  %v389 = vsel %vm388, %v380, %v385
  %v390 = vrsqrt.pop %v248
  %v391 = vmul.f32 %v390, %v248
  %v392 = vmul.f32 %v391, %v390
  %v393 = vmul.f32 0.5, %v392
  %v394 = vsub.f32 1.5, %v393
  %v395 = vmul.f32 %v390, %v394
  %vm396 = vweird.f32 %v248
  %vm397 = vweird.f32 %v390
  %vm398 = vmor %vm396, %vm397
  %v399 = vsel %vm398, %v390, %v395
  %v400 = vrsqrt.pop %v249
  %v401 = vmul.f32 %v400, %v249
  %v402 = vmul.f32 %v401, %v400
  %v403 = vmul.f32 0.5, %v402
  %v404 = vsub.f32 1.5, %v403
  %v405 = vmul.f32 %v400, %v404
  %vm406 = vweird.f32 %v249
  %vm407 = vweird.f32 %v400
  %vm408 = vmor %vm406, %vm407
  %v409 = vsel %vm408, %v400, %v405
  %v410 = vmul.f32 %v138, %v259
  %v411 = vmul.f32 %v139, %v269
  %v412 = vmul.f32 %v140, %v279
  %v413 = vmul.f32 %v141, %v289
  %v414 = vmul.f32 %v142, %v299
  %v415 = vmul.f32 %v143, %v309
  %v416 = vmul.f32 %v144, %v319
  %v417 = vmul.f32 %v145, %v329
  %v418 = vmul.f32 %v146, %v339
  %v419 = vmul.f32 %v147, %v349
  %v420 = vmul.f32 %v148, %v359
  %v421 = vmul.f32 %v149, %v369
  %v422 = vmul.f32 %v150, %v379
  %v423 = vmul.f32 %v151, %v389
  %v424 = vmul.f32 %v152, %v399
  %v425 = vmul.f32 %v153, %v409
  %v426 = vld [vmem:[%s1] sm:$0x1]
  %v428 = vperm.slane %v426, 0
  %v430 = vmul.f32 %v410, %v428
  %v431 = vmul.f32 %v411, %v428
  %v432 = vmul.f32 %v412, %v428
  %v433 = vmul.f32 %v413, %v428
  %v434 = vmul.f32 %v414, %v428
  %v435 = vmul.f32 %v415, %v428
  %v436 = vmul.f32 %v416, %v428
  %v437 = vmul.f32 %v417, %v428
  %v438 = vmul.f32 %v418, %v428
  %v439 = vmul.f32 %v419, %v428
  %v440 = vmul.f32 %v420, %v428
  %v441 = vmul.f32 %v421, %v428
  %v442 = vmul.f32 %v422, %v428
  %v443 = vmul.f32 %v423, %v428
  %v444 = vmul.f32 %v424, %v428
  %v445 = vmul.f32 %v425, %v428
  %v446 = vld [vmem:[%s2] sm:$0x1]
  %v448 = vperm.slane %v446, 0
  %v450 = vadd.f32 %v430, %v448
  %v451 = vadd.f32 %v431, %v448
  %v452 = vadd.f32 %v432, %v448
  %v453 = vadd.f32 %v433, %v448
  %v454 = vadd.f32 %v434, %v448
  %v455 = vadd.f32 %v435, %v448
  %v456 = vadd.f32 %v436, %v448
  %v457 = vadd.f32 %v437, %v448
  %v458 = vadd.f32 %v438, %v448
  %v459 = vadd.f32 %v439, %v448
  %v460 = vadd.f32 %v440, %v448
  %v461 = vadd.f32 %v441, %v448
  %v462 = vadd.f32 %v442, %v448
  %v463 = vadd.f32 %v443, %v448
  %v464 = vadd.f32 %v444, %v448
  %v465 = vadd.f32 %v445, %v448
  %v466 = vpack.c.bf16 %v451, %v450
  %v467 = vpack.c.bf16 %v453, %v452
  %v468 = vpack.c.bf16 %v455, %v454
  %v469 = vpack.c.bf16 %v457, %v456
  %v470 = vpack.c.bf16 %v459, %v458
  %v471 = vpack.c.bf16 %v461, %v460
  %v472 = vpack.c.bf16 %v463, %v462
  %v473 = vpack.c.bf16 %v465, %v464
  %v474 = vld [vmem:[%s3] sm:$0xf]
  %v475 = vld [vmem:[%s3 + $0x4] sm:$0xf]
  %v476 = vld [vmem:[%s3 + $0x8] sm:$0xf]
  %v477 = vld [vmem:[%s3 + $0xc] sm:$0xf]
  %v478 = vld [vmem:[%s4] sm:$0x1]
  %v480 = vperm.slane %v478, 0
  %v486 = vunpack.c.l.b16 %v474
  %v487 = vunpack.c.l.b16 %v475
  %v488 = vunpack.c.l.b16 %v476
  %v489 = vunpack.c.l.b16 %v477
  %v490 = vpack.c.b16 %v487, %v486
  %v491 = vpack.c.b16 %v489, %v488
  %v495 = vsel %vm66, %v466, 0
  %v498 = vsel %vm66, %v467, 0
  %v501 = vsel %vm66, %v468, 0
  %v504 = vsel %vm66, %v469, 0
  %v507 = vsel %vm66, %v470, 0
  %v510 = vsel %vm66, %v471, 0
  %v513 = vsel %vm66, %v472, 0
  %v516 = vsel %vm66, %v473, 0
  %518 = vmatpush.bf16.msra.mxu0 0
  %519 = vmatpush.bf16.msra.mxu0 0
  %520 = vmatpush.bf16.msra.mxu0 0
  %521 = vmatpush.bf16.msra.mxu0 0
  %522 = vmatpush.bf16.msra.mxu0 0
  %523 = vmatpush.bf16.msra.mxu0 0
  %524 = vmatpush.bf16.msra.mxu0 %v491
  %525 = vmatpush.bf16.msra.mxu0 %v490
  %526 = vmatmul.bf16.gmra.mxu0 %v495
  %v527 = vpop.f32.mrf.mxu0
  %v528 = vadd.f32 %v480, %v527
  %v529 = vpop.f32.mrf.mxu0
  %v530 = vadd.f32 %v480, %v529
  %531 = vmatmul.bf16.gmra.mxu0 %v498
  %v532 = vpop.f32.mrf.mxu0
  %v533 = vadd.f32 %v480, %v532
  %v534 = vpop.f32.mrf.mxu0
  %v535 = vadd.f32 %v480, %v534
  %536 = vmatmul.bf16.gmra.mxu0 %v501
  %v537 = vpop.f32.mrf.mxu0
  %v538 = vadd.f32 %v480, %v537
  %v539 = vpop.f32.mrf.mxu0
  %v540 = vadd.f32 %v480, %v539
  %541 = vmatmul.bf16.gmra.mxu0 %v504
  %v542 = vpop.f32.mrf.mxu0
  %v543 = vadd.f32 %v480, %v542
  %v544 = vpop.f32.mrf.mxu0
  %v545 = vadd.f32 %v480, %v544
  %546 = vmatmul.bf16.gmra.mxu0 %v507
  %v547 = vpop.f32.mrf.mxu0
  %v548 = vadd.f32 %v480, %v547
  %v549 = vpop.f32.mrf.mxu0
  %v550 = vadd.f32 %v480, %v549
  %551 = vmatmul.bf16.gmra.mxu0 %v510
  %v552 = vpop.f32.mrf.mxu0
  %v553 = vadd.f32 %v480, %v552
  %v554 = vpop.f32.mrf.mxu0
  %v555 = vadd.f32 %v480, %v554
  %556 = vmatmul.bf16.gmra.mxu0 %v513
  %v557 = vpop.f32.mrf.mxu0
  %v558 = vadd.f32 %v480, %v557
  %v559 = vpop.f32.mrf.mxu0
  %v560 = vadd.f32 %v480, %v559
  %561 = vmatmul.bf16.gmra.mxu0 %v516
  %v562 = vpop.f32.mrf.mxu0
  %v563 = vadd.f32 %v480, %v562
  %v564 = vpop.f32.mrf.mxu0
  %v565 = vadd.f32 %v480, %v564
  %566 = vdwg.mxu0
  %v583 = vrot.slane %v528, 7
  %v584 = vrot.slane %v530, 7
  %v585 = vrot.slane %v533, 7
  %v586 = vrot.slane %v535, 7
  %v587 = vrot.slane %v538, 7
  %v588 = vrot.slane %v540, 7
  %v589 = vrot.slane %v543, 7
  %v590 = vrot.slane %v545, 7
  %v591 = vrot.slane %v548, 7
  %v592 = vrot.slane %v550, 7
  %v593 = vrot.slane %v553, 7
  %v594 = vrot.slane %v555, 7
  %v595 = vrot.slane %v558, 7
  %v596 = vrot.slane %v560, 7
  %v597 = vrot.slane %v563, 7
  %v598 = vrot.slane %v565, 7
  %vm615 = vcmask 1040384
  %v616 = vsel %vm615, %v528, %v583
  %v617 = vsel %vm615, %v530, %v584
  %v618 = vsel %vm615, %v533, %v585
  %v619 = vsel %vm615, %v535, %v586
  %v620 = vsel %vm615, %v538, %v587
  %v621 = vsel %vm615, %v540, %v588
  %v622 = vsel %vm615, %v543, %v589
  %v623 = vsel %vm615, %v545, %v590
  %v624 = vsel %vm615, %v548, %v591
  %v625 = vsel %vm615, %v550, %v592
  %v626 = vsel %vm615, %v553, %v593
  %v627 = vsel %vm615, %v555, %v594
  %v628 = vsel %vm615, %v558, %v595
  %v629 = vsel %vm615, %v560, %v596
  %v630 = vsel %vm615, %v563, %v597
  %v631 = vsel %vm615, %v565, %v598
  %v632 = vrot.slane %v528, 1
  %v633 = vrot.slane %v530, 1
  %v634 = vrot.slane %v533, 1
  %v635 = vrot.slane %v535, 1
  %v636 = vrot.slane %v538, 1
  %v637 = vrot.slane %v540, 1
  %v638 = vrot.slane %v543, 1
  %v639 = vrot.slane %v545, 1
  %v640 = vrot.slane %v548, 1
  %v641 = vrot.slane %v550, 1
  %v642 = vrot.slane %v553, 1
  %v643 = vrot.slane %v555, 1
  %v644 = vrot.slane %v558, 1
  %v645 = vrot.slane %v560, 1
  %v646 = vrot.slane %v563, 1
  %v647 = vrot.slane %v565, 1
  %vm664 = vcmask 1046528
  %v665 = vsel %vm664, %v632, %v528
  %v666 = vsel %vm664, %v633, %v530
  %v667 = vsel %vm664, %v634, %v533
  %v668 = vsel %vm664, %v635, %v535
  %v669 = vsel %vm664, %v636, %v538
  %v670 = vsel %vm664, %v637, %v540
  %v671 = vsel %vm664, %v638, %v543
  %v672 = vsel %vm664, %v639, %v545
  %v673 = vsel %vm664, %v640, %v548
  %v674 = vsel %vm664, %v641, %v550
  %v675 = vsel %vm664, %v642, %v553
  %v676 = vsel %vm664, %v643, %v555
  %v677 = vsel %vm664, %v644, %v558
  %v678 = vsel %vm664, %v645, %v560
  %v679 = vsel %vm664, %v646, %v563
  %v680 = vsel %vm664, %v647, %v565
  %v681 = vsel %vm65, 1, 0
  %vm682 = vcmp.eq.s32.totalorder %v681, 1
  %v683 = vsel %vm682, %v616, %v665
  %v684 = vsel %vm682, %v617, %v666
  %v685 = vsel %vm682, %v618, %v667
  %v686 = vsel %vm682, %v619, %v668
  %v687 = vsel %vm682, %v620, %v669
  %v688 = vsel %vm682, %v621, %v670
  %v689 = vsel %vm682, %v622, %v671
  %v690 = vsel %vm682, %v623, %v672
  %v691 = vsel %vm682, %v624, %v673
  %v692 = vsel %vm682, %v625, %v674
  %v693 = vsel %vm682, %v626, %v675
  %v694 = vsel %vm682, %v627, %v676
  %v695 = vsel %vm682, %v628, %v677
  %v696 = vsel %vm682, %v629, %v678
  %v697 = vsel %vm682, %v630, %v679
  %v698 = vsel %vm682, %v631, %v680
  %v699 = vsel %vm64, 1, 0
  %vm700 = vcmp.eq.s32.totalorder %v699, 1
  %v701 = vsel %vm700, %v530, %v683
  %v702 = vsel %vm700, %v533, %v684
  %v703 = vsel %vm700, %v535, %v685
  %v704 = vsel %vm700, %v538, %v686
  %v705 = vsel %vm700, %v540, %v687
  %v706 = vsel %vm700, %v543, %v688
  %v707 = vsel %vm700, %v545, %v689
  %v708 = vsel %vm700, %v545, %v690
  %v709 = vsel %vm700, %v550, %v691
  %v710 = vsel %vm700, %v553, %v692
  %v711 = vsel %vm700, %v555, %v693
  %v712 = vsel %vm700, %v558, %v694
  %v713 = vsel %vm700, %v560, %v695
  %v714 = vsel %vm700, %v563, %v696
  %v715 = vsel %vm700, %v565, %v697
  %v716 = vsel %vm700, %v565, %v698
  %v717 = vsel %vm63, 1, 0
  %vm718 = vcmp.eq.s32.totalorder %v717, 1
  %v719 = vsel %vm718, %v528, %v701
  %v720 = vsel %vm718, %v528, %v702
  %v721 = vsel %vm718, %v530, %v703
  %v722 = vsel %vm718, %v533, %v704
  %v723 = vsel %vm718, %v535, %v705
  %v724 = vsel %vm718, %v538, %v706
  %v725 = vsel %vm718, %v540, %v707
  %v726 = vsel %vm718, %v543, %v708
  %v727 = vsel %vm718, %v548, %v709
  %v728 = vsel %vm718, %v548, %v710
  %v729 = vsel %vm718, %v550, %v711
  %v730 = vsel %vm718, %v553, %v712
  %v731 = vsel %vm718, %v555, %v713
  %v732 = vsel %vm718, %v558, %v714
  %v733 = vsel %vm718, %v560, %v715
  %v734 = vsel %vm718, %v563, %v716
  %735 = vrot.lane.b32.xlu0 %v528, 96
  %v736 = vpop.permute.xlu0 %735
  %737 = vrot.lane.b32.xlu0 %v530, 96
  %v738 = vpop.permute.xlu0 %737
  %739 = vrot.lane.b32.xlu0 %v533, 96
  %v740 = vpop.permute.xlu0 %739
  %741 = vrot.lane.b32.xlu0 %v535, 96
  %v742 = vpop.permute.xlu0 %741
  %743 = vrot.lane.b32.xlu0 %v538, 96
  %v744 = vpop.permute.xlu0 %743
  %745 = vrot.lane.b32.xlu0 %v540, 96
  %v746 = vpop.permute.xlu0 %745
  %747 = vrot.lane.b32.xlu0 %v543, 96
  %v748 = vpop.permute.xlu0 %747
  %749 = vrot.lane.b32.xlu0 %v548, 96
  %v750 = vpop.permute.xlu0 %749
  %751 = vrot.lane.b32.xlu0 %v550, 96
  %v752 = vpop.permute.xlu0 %751
  %753 = vrot.lane.b32.xlu0 %v553, 96
  %v754 = vpop.permute.xlu0 %753
  %755 = vrot.lane.b32.xlu0 %v555, 96
  %v756 = vpop.permute.xlu0 %755
  %757 = vrot.lane.b32.xlu0 %v558, 96
  %v758 = vpop.permute.xlu0 %757
  %759 = vrot.lane.b32.xlu0 %v560, 96
  %v760 = vpop.permute.xlu0 %759
  %761 = vrot.lane.b32.xlu0 %v563, 96
  %v762 = vpop.permute.xlu0 %761
  %777 = vrot.lane.b32.xlu0 %v545, 96
  %v778 = vpop.permute.xlu0 %777
  %779 = vrot.lane.b32.xlu0 %v565, 96
  %v780 = vpop.permute.xlu0 %779
  %v783 = vsel %vm682, %v736, %v738
  %v784 = vsel %vm682, %v736, %v740
  %v785 = vsel %vm682, %v738, %v742
  %v786 = vsel %vm682, %v740, %v744
  %v787 = vsel %vm682, %v742, %v746
  %v788 = vsel %vm682, %v744, %v748
  %v789 = vsel %vm682, %v746, %v778
  %v790 = vsel %vm682, %v748, %v778
  %v791 = vsel %vm682, %v750, %v752
  %v792 = vsel %vm682, %v750, %v754
  %v793 = vsel %vm682, %v752, %v756
  %v794 = vsel %vm682, %v754, %v758
  %v795 = vsel %vm682, %v756, %v760
  %v796 = vsel %vm682, %v758, %v762
  %v797 = vsel %vm682, %v760, %v780
  %v798 = vsel %vm682, %v762, %v780
  %815 = vrot.lane.b32.xlu0 %v665, 96
  %v816 = vpop.permute.xlu0 %815
  %817 = vrot.lane.b32.xlu0 %v666, 96
  %v818 = vpop.permute.xlu0 %817
  %819 = vrot.lane.b32.xlu0 %v667, 96
  %v820 = vpop.permute.xlu0 %819
  %821 = vrot.lane.b32.xlu0 %v668, 96
  %v822 = vpop.permute.xlu0 %821
  %823 = vrot.lane.b32.xlu0 %v669, 96
  %v824 = vpop.permute.xlu0 %823
  %825 = vrot.lane.b32.xlu0 %v670, 96
  %v826 = vpop.permute.xlu0 %825
  %827 = vrot.lane.b32.xlu0 %v671, 96
  %v828 = vpop.permute.xlu0 %827
  %829 = vrot.lane.b32.xlu0 %v672, 96
  %v830 = vpop.permute.xlu0 %829
  %831 = vrot.lane.b32.xlu0 %v673, 96
  %v832 = vpop.permute.xlu0 %831
  %833 = vrot.lane.b32.xlu0 %v674, 96
  %v834 = vpop.permute.xlu0 %833
  %835 = vrot.lane.b32.xlu0 %v675, 96
  %v836 = vpop.permute.xlu0 %835
  %837 = vrot.lane.b32.xlu0 %v676, 96
  %v838 = vpop.permute.xlu0 %837
  %839 = vrot.lane.b32.xlu0 %v677, 96
  %v840 = vpop.permute.xlu0 %839
  %841 = vrot.lane.b32.xlu0 %v678, 96
  %v842 = vpop.permute.xlu0 %841
  %843 = vrot.lane.b32.xlu0 %v679, 96
  %v844 = vpop.permute.xlu0 %843
  %845 = vrot.lane.b32.xlu0 %v680, 96
  %v846 = vpop.permute.xlu0 %845
  %v863 = vsel %vm700, %v816, %v783
  %v864 = vsel %vm700, %v818, %v784
  %v865 = vsel %vm700, %v820, %v785
  %v866 = vsel %vm700, %v822, %v786
  %v867 = vsel %vm700, %v824, %v787
  %v868 = vsel %vm700, %v826, %v788
  %v869 = vsel %vm700, %v828, %v789
  %v870 = vsel %vm700, %v830, %v790
  %v871 = vsel %vm700, %v832, %v791
  %v872 = vsel %vm700, %v834, %v792
  %v873 = vsel %vm700, %v836, %v793
  %v874 = vsel %vm700, %v838, %v794
  %v875 = vsel %vm700, %v840, %v795
  %v876 = vsel %vm700, %v842, %v796
  %v877 = vsel %vm700, %v844, %v797
  %v878 = vsel %vm700, %v846, %v798
  %895 = vrot.lane.b32.xlu0 %v616, 96
  %v896 = vpop.permute.xlu0 %895
  %897 = vrot.lane.b32.xlu0 %v617, 96
  %v898 = vpop.permute.xlu0 %897
  %899 = vrot.lane.b32.xlu0 %v618, 96
  %v900 = vpop.permute.xlu0 %899
  %901 = vrot.lane.b32.xlu0 %v619, 96
  %v902 = vpop.permute.xlu0 %901
  %903 = vrot.lane.b32.xlu0 %v620, 96
  %v904 = vpop.permute.xlu0 %903
  %905 = vrot.lane.b32.xlu0 %v621, 96
  %v906 = vpop.permute.xlu0 %905
  %907 = vrot.lane.b32.xlu0 %v622, 96
  %v908 = vpop.permute.xlu0 %907
  %909 = vrot.lane.b32.xlu0 %v623, 96
  %v910 = vpop.permute.xlu0 %909
  %911 = vrot.lane.b32.xlu0 %v624, 96
  %v912 = vpop.permute.xlu0 %911
  %913 = vrot.lane.b32.xlu0 %v625, 96
  %v914 = vpop.permute.xlu0 %913
  %915 = vrot.lane.b32.xlu0 %v626, 96
  %v916 = vpop.permute.xlu0 %915
  %917 = vrot.lane.b32.xlu0 %v627, 96
  %v918 = vpop.permute.xlu0 %917
  %919 = vrot.lane.b32.xlu0 %v628, 96
  %v920 = vpop.permute.xlu0 %919
  %921 = vrot.lane.b32.xlu0 %v629, 96
  %v922 = vpop.permute.xlu0 %921
  %923 = vrot.lane.b32.xlu0 %v630, 96
  %v924 = vpop.permute.xlu0 %923
  %925 = vrot.lane.b32.xlu0 %v631, 96
  %v926 = vpop.permute.xlu0 %925
  %v943 = vsel %vm718, %v896, %v863
  %v944 = vsel %vm718, %v898, %v864
  %v945 = vsel %vm718, %v900, %v865
  %v946 = vsel %vm718, %v902, %v866
  %v947 = vsel %vm718, %v904, %v867
  %v948 = vsel %vm718, %v906, %v868
  %v949 = vsel %vm718, %v908, %v869
  %v950 = vsel %vm718, %v910, %v870
  %v951 = vsel %vm718, %v912, %v871
  %v952 = vsel %vm718, %v914, %v872
  %v953 = vsel %vm718, %v916, %v873
  %v954 = vsel %vm718, %v918, %v874
  %v955 = vsel %vm718, %v920, %v875
  %v956 = vsel %vm718, %v922, %v876
  %v957 = vsel %vm718, %v924, %v877
  %v958 = vsel %vm718, %v926, %v878
  %v959 = vadd.f32 %v719, %v943
  %v960 = vadd.f32 %v720, %v944
  %v961 = vadd.f32 %v721, %v945
  %v962 = vadd.f32 %v722, %v946
  %v963 = vadd.f32 %v723, %v947
  %v964 = vadd.f32 %v724, %v948
  %v965 = vadd.f32 %v725, %v949
  %v966 = vadd.f32 %v726, %v950
  %v967 = vadd.f32 %v727, %v951
  %v968 = vadd.f32 %v728, %v952
  %v969 = vadd.f32 %v729, %v953
  %v970 = vadd.f32 %v730, %v954
  %v971 = vadd.f32 %v731, %v955
  %v972 = vadd.f32 %v732, %v956
  %v973 = vadd.f32 %v733, %v957
  %v974 = vadd.f32 %v734, %v958
  %975 = vrot.lane.b32.xlu0 %v528, 64
  %v976 = vpop.permute.xlu0 %975
  %977 = vrot.lane.b32.xlu0 %v530, 64
  %v978 = vpop.permute.xlu0 %977
  %979 = vrot.lane.b32.xlu0 %v533, 64
  %v980 = vpop.permute.xlu0 %979
  %981 = vrot.lane.b32.xlu0 %v535, 64
  %v982 = vpop.permute.xlu0 %981
  %983 = vrot.lane.b32.xlu0 %v538, 64
  %v984 = vpop.permute.xlu0 %983
  %985 = vrot.lane.b32.xlu0 %v540, 64
  %v986 = vpop.permute.xlu0 %985
  %987 = vrot.lane.b32.xlu0 %v543, 64
  %v988 = vpop.permute.xlu0 %987
  %989 = vrot.lane.b32.xlu0 %v545, 64
  %v990 = vpop.permute.xlu0 %989
  %991 = vrot.lane.b32.xlu0 %v548, 64
  %v992 = vpop.permute.xlu0 %991
  %993 = vrot.lane.b32.xlu0 %v550, 64
  %v994 = vpop.permute.xlu0 %993
  %995 = vrot.lane.b32.xlu0 %v553, 64
  %v996 = vpop.permute.xlu0 %995
  %997 = vrot.lane.b32.xlu0 %v555, 64
  %v998 = vpop.permute.xlu0 %997
  %999 = vrot.lane.b32.xlu0 %v558, 64
  %v1000 = vpop.permute.xlu0 %999
  %1001 = vrot.lane.b32.xlu0 %v560, 64
  %v1002 = vpop.permute.xlu0 %1001
  %1003 = vrot.lane.b32.xlu0 %v563, 64
  %v1004 = vpop.permute.xlu0 %1003
  %1005 = vrot.lane.b32.xlu0 %v565, 64
  %v1006 = vpop.permute.xlu0 %1005
  %v1023 = vadd.f32 %v959, %v976
  %v1024 = vadd.f32 %v960, %v978
  %v1025 = vadd.f32 %v961, %v980
  %v1026 = vadd.f32 %v962, %v982
  %v1027 = vadd.f32 %v963, %v984
  %v1028 = vadd.f32 %v964, %v986
  %v1029 = vadd.f32 %v965, %v988
  %v1030 = vadd.f32 %v966, %v990
  %v1031 = vadd.f32 %v967, %v992
  %v1032 = vadd.f32 %v968, %v994
  %v1033 = vadd.f32 %v969, %v996
  %v1034 = vadd.f32 %v970, %v998
  %v1035 = vadd.f32 %v971, %v1000
  %v1036 = vadd.f32 %v972, %v1002
  %v1037 = vadd.f32 %v973, %v1004
  %v1038 = vadd.f32 %v974, %v1006
  %v1039 = vsel %vm66, %v1023, 0.0
  %v1040 = vsel %vm66, %v1024, 0.0
  %v1041 = vadd.f32 %v1039, %v1040
  %v1042 = vsel %vm66, %v1025, 0.0
  %v1043 = vadd.f32 %v1041, %v1042
  %v1044 = vsel %vm66, %v1026, 0.0
  %v1045 = vadd.f32 %v1043, %v1044
  %v1046 = vsel %vm66, %v1027, 0.0
  %v1047 = vadd.f32 %v1045, %v1046
  %v1048 = vsel %vm66, %v1028, 0.0
  %v1049 = vadd.f32 %v1047, %v1048
  %v1050 = vsel %vm66, %v1029, 0.0
  %v1051 = vadd.f32 %v1049, %v1050
  %v1052 = vsel %vm66, %v1030, 0.0
  %v1053 = vadd.f32 %v1051, %v1052
  %v1054 = vrot.slane %v1053, 4
  %v1055 = vadd.f32 %v1053, %v1054
  %v1056 = vrot.slane %v1055, 2
  %v1057 = vadd.f32 %v1055, %v1056
  %v1058 = vrot.slane %v1057, 1
  %v1059 = vadd.f32 %v1057, %v1058
  %v1060 = vsel %vm66, %v1031, 0.0
  %v1061 = vsel %vm66, %v1032, 0.0
  %v1062 = vadd.f32 %v1060, %v1061
  %v1063 = vsel %vm66, %v1033, 0.0
  %v1064 = vadd.f32 %v1062, %v1063
  %v1065 = vsel %vm66, %v1034, 0.0
  %v1066 = vadd.f32 %v1064, %v1065
  %v1067 = vsel %vm66, %v1035, 0.0
  %v1068 = vadd.f32 %v1066, %v1067
  %v1069 = vsel %vm66, %v1036, 0.0
  %v1070 = vadd.f32 %v1068, %v1069
  %v1071 = vsel %vm66, %v1037, 0.0
  %v1072 = vadd.f32 %v1070, %v1071
  %v1073 = vsel %vm66, %v1038, 0.0
  %v1074 = vadd.f32 %v1072, %v1073
  %v1075 = vrot.slane %v1074, 4
  %v1076 = vadd.f32 %v1074, %v1075
  %v1077 = vrot.slane %v1076, 2
  %v1078 = vadd.f32 %v1076, %v1077
  %v1079 = vrot.slane %v1078, 1
  %v1080 = vadd.f32 %v1078, %v1079
  %v1081 = vld [vmem:[%s5] sm:$0xff]
  %v1082 = vld [vmem:[%s5 + $0x8] sm:$0xff]
  %v1083 = vld [vmem:[%s5 + $0x10] sm:$0xff]
  %v1084 = vld [vmem:[%s5 + $0x18] sm:$0xff]
  %vm1087 = vcmask 1041409
  %v1088 = vsel %vm1087, %v1080, %v1059
  %v1089 = vsel %vm66, %v1088, 0
  %1091 = vmatpush.msra.mxu0 0.0
  %1092 = vmatpush.msra.mxu0 0.0
  %1093 = vmatpush.msra.mxu0 0.0
  %1094 = vmatpush.msra.mxu0 0.0
  %1095 = vmatpush.msra.mxu0 0.0
  %1096 = vmatpush.msra.mxu0 0.0
  %1097 = vmatpush.msra.mxu0 0.0
  %1098 = vmatpush.msra.mxu0 0.0
  %1099 = vmatpush.msra.mxu0 0.0
  %1100 = vmatpush.msra.mxu0 0.0
  %1101 = vmatpush.msra.mxu0 0.0
  %1102 = vmatpush.msra.mxu0 0.0
  %1103 = vmatpush.msra.mxu0 %v1084
  %1104 = vmatpush.msra.mxu0 %v1083
  %1105 = vmatpush.msra.mxu0 %v1082
  %1106 = vmatpush.msra.mxu0 %v1081
  %1107 = vmatmul.f32.gmra.mxu0 %v1089
  %v1108 = vpop.f32.mrf.mxu0
  %v1109 = vadd.f32 0.0, %v1108
  %1110 = vdwg.mxu0
  %v1111 = vmul.f32 %v1109, 0.5
  %v1112 = vmul.f32 %v1109, 0.044715
  %v1113 = vmul.f32 %v1112, %v1109
  %v1114 = vmul.f32 %v1113, %v1109
  %v1115 = vadd.f32 %v1109, %v1114
  %v1116 = vmul.f32 %v1115, 0.7978846
  %v1117 = vtanh.pop %v1116
  %v1118 = vadd.f32 %v1117, 1.0
  %v1119 = vmul.f32 %v1111, %v1118
  %v1120 = vld [vmem:[%s6] sm:$0xff]
  %v1121 = vld [vmem:[%s6 + $0x8] sm:$0xff]
  %v1122 = vld [vmem:[%s6 + $0x10] sm:$0xff]
  %v1123 = vld [vmem:[%s6 + $0x18] sm:$0xff]
  %v1125 = vsel %vm66, %v1119, 0
  %1127 = vmatpush.msra.mxu0 0.0
  %1128 = vmatpush.msra.mxu0 0.0
  %1129 = vmatpush.msra.mxu0 0.0
  %1130 = vmatpush.msra.mxu0 0.0
  %1131 = vmatpush.msra.mxu0 0.0
  %1132 = vmatpush.msra.mxu0 0.0
  %1133 = vmatpush.msra.mxu0 0.0
  %1134 = vmatpush.msra.mxu0 0.0
  %1135 = vmatpush.msra.mxu0 0.0
  %1136 = vmatpush.msra.mxu0 0.0
  %1137 = vmatpush.msra.mxu0 0.0
  %1138 = vmatpush.msra.mxu0 0.0
  %1139 = vmatpush.msra.mxu0 %v1123
  %1140 = vmatpush.msra.mxu0 %v1122
  %1141 = vmatpush.msra.mxu0 %v1121
  %1142 = vmatpush.msra.mxu0 %v1120
  %1143 = vmatmul.f32.gmra.mxu0 %v1125
  %v1144 = vpop.f32.mrf.mxu0
  %v1145 = vadd.f32 0.0, %v1144
  %1146 = vdwg.mxu0
  %1148 = vrot.lane.b32.xlu0 %v1145, 96
  %v1149 = vpop.permute.xlu0 %1148
  %v1151 = vmax.f32 %v1145, %v1149
  %1152 = vrot.lane.b32.xlu0 %v1145, 64
  %v1153 = vpop.permute.xlu0 %1152
  %v1155 = vmax.f32 %v1151, %v1153
  %v1156 = vsub.f32 %v1145, %v1155
  %v1157 = vmul.f32 %v1156, 1.442695
  %v1158 = vpow.pop %v1157
  %1160 = vrot.lane.b32.xlu0 %v1155, 32
  %v1161 = vpop.permute.xlu0 %1160
  %v1163 = vsub.f32 %v1145, %v1161
  %v1164 = vmul.f32 %v1163, 1.442695
  %v1165 = vpow.pop %v1164
  %1166 = vrot.lane.b32.xlu0 %v1155, 64
  %v1167 = vpop.permute.xlu0 %1166
  %v1169 = vsub.f32 %v1145, %v1167
  %v1170 = vmul.f32 %v1169, 1.442695
  %v1171 = vpow.pop %v1170
  %1173 = vrot.lane.b32.xlu0 %v1165, 96
  %v1174 = vpop.permute.xlu0 %1173
  %v1176 = vadd.f32 %v1158, %v1174
  %1178 = vrot.lane.b32.xlu0 %v1171, 64
  %v1179 = vpop.permute.xlu0 %1178
  %v1181 = vadd.f32 %v1176, %v1179
  %v1182 = vrcp.pop %v1181
  %v1183 = vmul.f32 %v1181, %v1182
  %v1184 = vsub.f32 1.0, %v1183
  %v1185 = vmul.f32 %v1182, %v1184
  %v1186 = vadd.f32 %v1182, %v1185
  %vm1187 = vweird.f32 %v1181
  %vm1188 = vweird.f32 %v1182
  %vm1189 = vmor %vm1187, %vm1188
  %v1190 = vsel %vm1189, %v1182, %v1186
  %v1191 = vand.u32 2147483647, %v1181
  %vm1192 = vcmp.eq.f32.partialorder %v1191, 8.507059e+37
  %v1193 = vand.u32 %v1181, 2147483648
  %v1194 = vor.u32 1.1754944e-38, %v1193
  %v1195 = vsel %vm1192, %v1194, %v1190
  %v1196 = vmul.f32 %v1158, %v1195
  %v1198 = vrot.slane %v1196, 1
  %1200 = vrot.lane.b32.xlu0 %v1181, 32
  %v1201 = vpop.permute.xlu0 %1200
  %v1203 = vrcp.pop %v1201
  %v1204 = vmul.f32 %v1201, %v1203
  %v1205 = vsub.f32 1.0, %v1204
  %v1206 = vmul.f32 %v1203, %v1205
  %v1207 = vadd.f32 %v1203, %v1206
  %vm1208 = vweird.f32 %v1201
  %vm1209 = vweird.f32 %v1203
  %vm1210 = vmor %vm1208, %vm1209
  %v1211 = vsel %vm1210, %v1203, %v1207
  %v1212 = vand.u32 2147483647, %v1201
  %vm1213 = vcmp.eq.f32.partialorder %v1212, 8.507059e+37
  %v1214 = vand.u32 %v1201, 2147483648
  %v1215 = vor.u32 1.1754944e-38, %v1214
  %v1216 = vsel %vm1213, %v1215, %v1211
  %v1217 = vmul.f32 %v1165, %v1216
  %v1219 = vrot.slane %v1217, 1
  %1220 = vrot.lane.b32.xlu0 %v1181, 64
  %v1221 = vpop.permute.xlu0 %1220
  %v1223 = vrcp.pop %v1221
  %v1224 = vmul.f32 %v1221, %v1223
  %v1225 = vsub.f32 1.0, %v1224
  %v1226 = vmul.f32 %v1223, %v1225
  %v1227 = vadd.f32 %v1223, %v1226
  %vm1228 = vweird.f32 %v1221
  %vm1229 = vweird.f32 %v1223
  %vm1230 = vmor %vm1228, %vm1229
  %v1231 = vsel %vm1230, %v1223, %v1227
  %v1232 = vand.u32 2147483647, %v1221
  %vm1233 = vcmp.eq.f32.partialorder %v1232, 8.507059e+37
  %v1234 = vand.u32 %v1221, 2147483648
  %v1235 = vor.u32 1.1754944e-38, %v1234
  %v1236 = vsel %vm1233, %v1235, %v1231
  %v1237 = vmul.f32 %v1171, %v1236
  %v1239 = vrot.slane %v1237, 1
  %v1240 = vperm.slane %v1196, 0
  %v1241 = vperm.slane %v1198, 0
  %v1244 = vmul.f32 %v1240, %v719
  %v1245 = vmul.f32 %v1240, %v720
  %v1246 = vmul.f32 %v1240, %v721
  %v1247 = vmul.f32 %v1240, %v722
  %v1248 = vmul.f32 %v1240, %v723
  %v1249 = vmul.f32 %v1240, %v724
  %v1250 = vmul.f32 %v1240, %v725
  %v1251 = vmul.f32 %v1240, %v726
  %v1252 = vmul.f32 %v1241, %v727
  %v1253 = vmul.f32 %v1241, %v728
  %v1254 = vmul.f32 %v1241, %v729
  %v1255 = vmul.f32 %v1241, %v730
  %v1256 = vmul.f32 %v1241, %v731
  %v1257 = vmul.f32 %v1241, %v732
  %v1258 = vmul.f32 %v1241, %v733
  %v1259 = vmul.f32 %v1241, %v734
  %v1260 = vperm.slane %v1217, 0
  %v1261 = vperm.slane %v1219, 0
  %1280 = vrot.lane.b32.xlu0 %v943, 32
  %v1281 = vpop.permute.xlu0 %1280
  %1282 = vrot.lane.b32.xlu0 %v944, 32
  %v1283 = vpop.permute.xlu0 %1282
  %1284 = vrot.lane.b32.xlu0 %v945, 32
  %v1285 = vpop.permute.xlu0 %1284
  %1286 = vrot.lane.b32.xlu0 %v946, 32
  %v1287 = vpop.permute.xlu0 %1286
  %1288 = vrot.lane.b32.xlu0 %v947, 32
  %v1289 = vpop.permute.xlu0 %1288
  %1290 = vrot.lane.b32.xlu0 %v948, 32
  %v1291 = vpop.permute.xlu0 %1290
  %1292 = vrot.lane.b32.xlu0 %v949, 32
  %v1293 = vpop.permute.xlu0 %1292
  %1294 = vrot.lane.b32.xlu0 %v950, 32
  %v1295 = vpop.permute.xlu0 %1294
  %1296 = vrot.lane.b32.xlu0 %v951, 32
  %v1297 = vpop.permute.xlu0 %1296
  %1298 = vrot.lane.b32.xlu0 %v952, 32
  %v1299 = vpop.permute.xlu0 %1298
  %1300 = vrot.lane.b32.xlu0 %v953, 32
  %v1301 = vpop.permute.xlu0 %1300
  %1302 = vrot.lane.b32.xlu0 %v954, 32
  %v1303 = vpop.permute.xlu0 %1302
  %1304 = vrot.lane.b32.xlu0 %v955, 32
  %v1305 = vpop.permute.xlu0 %1304
  %1306 = vrot.lane.b32.xlu0 %v956, 32
  %v1307 = vpop.permute.xlu0 %1306
  %1308 = vrot.lane.b32.xlu0 %v957, 32
  %v1309 = vpop.permute.xlu0 %1308
  %1310 = vrot.lane.b32.xlu0 %v958, 32
  %v1311 = vpop.permute.xlu0 %1310
  %v1328 = vmul.f32 %v1260, %v1281
  %v1329 = vmul.f32 %v1260, %v1283
  %v1330 = vmul.f32 %v1260, %v1285
  %v1331 = vmul.f32 %v1260, %v1287
  %v1332 = vmul.f32 %v1260, %v1289
  %v1333 = vmul.f32 %v1260, %v1291
  %v1334 = vmul.f32 %v1260, %v1293
  %v1335 = vmul.f32 %v1260, %v1295
  %v1336 = vmul.f32 %v1261, %v1297
  %v1337 = vmul.f32 %v1261, %v1299
  %v1338 = vmul.f32 %v1261, %v1301
  %v1339 = vmul.f32 %v1261, %v1303
  %v1340 = vmul.f32 %v1261, %v1305
  %v1341 = vmul.f32 %v1261, %v1307
  %v1342 = vmul.f32 %v1261, %v1309
  %v1343 = vmul.f32 %v1261, %v1311
  %1360 = vrot.lane.b32.xlu0 %v1328, 96
  %v1361 = vpop.permute.xlu0 %1360
  %1362 = vrot.lane.b32.xlu0 %v1329, 96
  %v1363 = vpop.permute.xlu0 %1362
  %1364 = vrot.lane.b32.xlu0 %v1330, 96
  %v1365 = vpop.permute.xlu0 %1364
  %1366 = vrot.lane.b32.xlu0 %v1331, 96
  %v1367 = vpop.permute.xlu0 %1366
  %1368 = vrot.lane.b32.xlu0 %v1332, 96
  %v1369 = vpop.permute.xlu0 %1368
  %1370 = vrot.lane.b32.xlu0 %v1333, 96
  %v1371 = vpop.permute.xlu0 %1370
  %1372 = vrot.lane.b32.xlu0 %v1334, 96
  %v1373 = vpop.permute.xlu0 %1372
  %1374 = vrot.lane.b32.xlu0 %v1335, 96
  %v1375 = vpop.permute.xlu0 %1374
  %1376 = vrot.lane.b32.xlu0 %v1336, 96
  %v1377 = vpop.permute.xlu0 %1376
  %1378 = vrot.lane.b32.xlu0 %v1337, 96
  %v1379 = vpop.permute.xlu0 %1378
  %1380 = vrot.lane.b32.xlu0 %v1338, 96
  %v1381 = vpop.permute.xlu0 %1380
  %1382 = vrot.lane.b32.xlu0 %v1339, 96
  %v1383 = vpop.permute.xlu0 %1382
  %1384 = vrot.lane.b32.xlu0 %v1340, 96
  %v1385 = vpop.permute.xlu0 %1384
  %1386 = vrot.lane.b32.xlu0 %v1341, 96
  %v1387 = vpop.permute.xlu0 %1386
  %1388 = vrot.lane.b32.xlu0 %v1342, 96
  %v1389 = vpop.permute.xlu0 %1388
  %1390 = vrot.lane.b32.xlu0 %v1343, 96
  %v1391 = vpop.permute.xlu0 %1390
  %v1408 = vadd.f32 %v1244, %v1361
  %v1409 = vadd.f32 %v1245, %v1363
  %v1410 = vadd.f32 %v1246, %v1365
  %v1411 = vadd.f32 %v1247, %v1367
  %v1412 = vadd.f32 %v1248, %v1369
  %v1413 = vadd.f32 %v1249, %v1371
  %v1414 = vadd.f32 %v1250, %v1373
  %v1415 = vadd.f32 %v1251, %v1375
  %v1416 = vadd.f32 %v1252, %v1377
  %v1417 = vadd.f32 %v1253, %v1379
  %v1418 = vadd.f32 %v1254, %v1381
  %v1419 = vadd.f32 %v1255, %v1383
  %v1420 = vadd.f32 %v1256, %v1385
  %v1421 = vadd.f32 %v1257, %v1387
  %v1422 = vadd.f32 %v1258, %v1389
  %v1423 = vadd.f32 %v1259, %v1391
  %v1424 = vperm.slane %v1237, 0
  %v1425 = vperm.slane %v1239, 0
  %v1428 = vmul.f32 %v1424, %v528
  %v1429 = vmul.f32 %v1424, %v530
  %v1430 = vmul.f32 %v1424, %v533
  %v1431 = vmul.f32 %v1424, %v535
  %v1432 = vmul.f32 %v1424, %v538
  %v1433 = vmul.f32 %v1424, %v540
  %v1434 = vmul.f32 %v1424, %v543
  %v1435 = vmul.f32 %v1424, %v545
  %v1436 = vmul.f32 %v1425, %v548
  %v1437 = vmul.f32 %v1425, %v550
  %v1438 = vmul.f32 %v1425, %v553
  %v1439 = vmul.f32 %v1425, %v555
  %v1440 = vmul.f32 %v1425, %v558
  %v1441 = vmul.f32 %v1425, %v560
  %v1442 = vmul.f32 %v1425, %v563
  %v1443 = vmul.f32 %v1425, %v565
  %1460 = vrot.lane.b32.xlu0 %v1428, 64
  %v1461 = vpop.permute.xlu0 %1460
  %1462 = vrot.lane.b32.xlu0 %v1429, 64
  %v1463 = vpop.permute.xlu0 %1462
  %1464 = vrot.lane.b32.xlu0 %v1430, 64
  %v1465 = vpop.permute.xlu0 %1464
  %1466 = vrot.lane.b32.xlu0 %v1431, 64
  %v1467 = vpop.permute.xlu0 %1466
  %1468 = vrot.lane.b32.xlu0 %v1432, 64
  %v1469 = vpop.permute.xlu0 %1468
  %1470 = vrot.lane.b32.xlu0 %v1433, 64
  %v1471 = vpop.permute.xlu0 %1470
  %1472 = vrot.lane.b32.xlu0 %v1434, 64
  %v1473 = vpop.permute.xlu0 %1472
  %1474 = vrot.lane.b32.xlu0 %v1435, 64
  %v1475 = vpop.permute.xlu0 %1474
  %1476 = vrot.lane.b32.xlu0 %v1436, 64
  %v1477 = vpop.permute.xlu0 %1476
  %1478 = vrot.lane.b32.xlu0 %v1437, 64
  %v1479 = vpop.permute.xlu0 %1478
  %1480 = vrot.lane.b32.xlu0 %v1438, 64
  %v1481 = vpop.permute.xlu0 %1480
  %1482 = vrot.lane.b32.xlu0 %v1439, 64
  %v1483 = vpop.permute.xlu0 %1482
  %1484 = vrot.lane.b32.xlu0 %v1440, 64
  %v1485 = vpop.permute.xlu0 %1484
  %1486 = vrot.lane.b32.xlu0 %v1441, 64
  %v1487 = vpop.permute.xlu0 %1486
  %1488 = vrot.lane.b32.xlu0 %v1442, 64
  %v1489 = vpop.permute.xlu0 %1488
  %1490 = vrot.lane.b32.xlu0 %v1443, 64
  %v1491 = vpop.permute.xlu0 %1490
  %v1508 = vadd.f32 %v1408, %v1461
  %v1509 = vadd.f32 %v1409, %v1463
  %v1510 = vadd.f32 %v1410, %v1465
  %v1511 = vadd.f32 %v1411, %v1467
  %v1512 = vadd.f32 %v1412, %v1469
  %v1513 = vadd.f32 %v1413, %v1471
  %v1514 = vadd.f32 %v1414, %v1473
  %v1515 = vadd.f32 %v1415, %v1475
  %v1516 = vadd.f32 %v1416, %v1477
  %v1517 = vadd.f32 %v1417, %v1479
  %v1518 = vadd.f32 %v1418, %v1481
  %v1519 = vadd.f32 %v1419, %v1483
  %v1520 = vadd.f32 %v1420, %v1485
  %v1521 = vadd.f32 %v1421, %v1487
  %v1522 = vadd.f32 %v1422, %v1489
  %v1523 = vadd.f32 %v1423, %v1491
  %v1524 = vpack.c.bf16 %v1509, %v1508
  %v1525 = vpack.c.bf16 %v1511, %v1510
  %v1526 = vpack.c.bf16 %v1513, %v1512
  %v1527 = vpack.c.bf16 %v1515, %v1514
  %v1528 = vpack.c.bf16 %v1517, %v1516
  %v1529 = vpack.c.bf16 %v1519, %v1518
  %v1530 = vpack.c.bf16 %v1521, %v1520
  %v1531 = vpack.c.bf16 %v1523, %v1522
  %v1532 = vld [vmem:[%s7] sm:$0xf]
  %v1533 = vld [vmem:[%s7 + $0x4] sm:$0xf]
  %v1534 = vld [vmem:[%s7 + $0x8] sm:$0xf]
  %v1535 = vld [vmem:[%s7 + $0xc] sm:$0xf]
  %v1536 = vld [vmem:[%s8] sm:$0x1]
  %v1538 = vperm.slane %v1536, 0
  %v1544 = vunpack.c.l.b16 %v1532
  %v1545 = vunpack.c.l.b16 %v1533
  %v1546 = vunpack.c.l.b16 %v1534
  %v1547 = vunpack.c.l.b16 %v1535
  %v1548 = vpack.c.b16 %v1545, %v1544
  %v1549 = vpack.c.b16 %v1547, %v1546
  %v1553 = vsel %vm66, %v1524, 0
  %v1556 = vsel %vm66, %v1525, 0
  %v1559 = vsel %vm66, %v1526, 0
  %v1562 = vsel %vm66, %v1527, 0
  %v1565 = vsel %vm66, %v1528, 0
  %v1568 = vsel %vm66, %v1529, 0
  %v1571 = vsel %vm66, %v1530, 0
  %v1574 = vsel %vm66, %v1531, 0
  %1576 = vmatpush.bf16.msra.mxu0 0
  %1577 = vmatpush.bf16.msra.mxu0 0
  %1578 = vmatpush.bf16.msra.mxu0 0
  %1579 = vmatpush.bf16.msra.mxu0 0
  %1580 = vmatpush.bf16.msra.mxu0 0
  %1581 = vmatpush.bf16.msra.mxu0 0
  %1582 = vmatpush.bf16.msra.mxu0 %v1549
  %1583 = vmatpush.bf16.msra.mxu0 %v1548
  %1584 = vmatmul.bf16.gmra.mxu0 %v1553
  %v1585 = vpop.f32.mrf.mxu0
  %v1586 = vadd.f32 %v1538, %v1585
  %v1587 = vpop.f32.mrf.mxu0
  %v1588 = vadd.f32 %v1538, %v1587
  %1589 = vmatmul.bf16.gmra.mxu0 %v1556
  %v1590 = vpop.f32.mrf.mxu0
  %v1591 = vadd.f32 %v1538, %v1590
  %v1592 = vpop.f32.mrf.mxu0
  %v1593 = vadd.f32 %v1538, %v1592
  %1594 = vmatmul.bf16.gmra.mxu0 %v1559
  %v1595 = vpop.f32.mrf.mxu0
  %v1596 = vadd.f32 %v1538, %v1595
  %v1597 = vpop.f32.mrf.mxu0
  %v1598 = vadd.f32 %v1538, %v1597
  %1599 = vmatmul.bf16.gmra.mxu0 %v1562
  %v1600 = vpop.f32.mrf.mxu0
  %v1601 = vadd.f32 %v1538, %v1600
  %v1602 = vpop.f32.mrf.mxu0
  %v1603 = vadd.f32 %v1538, %v1602
  %1604 = vmatmul.bf16.gmra.mxu0 %v1565
  %v1605 = vpop.f32.mrf.mxu0
  %v1606 = vadd.f32 %v1538, %v1605
  %v1607 = vpop.f32.mrf.mxu0
  %v1608 = vadd.f32 %v1538, %v1607
  %1609 = vmatmul.bf16.gmra.mxu0 %v1568
  %v1610 = vpop.f32.mrf.mxu0
  %v1611 = vadd.f32 %v1538, %v1610
  %v1612 = vpop.f32.mrf.mxu0
  %v1613 = vadd.f32 %v1538, %v1612
  %1614 = vmatmul.bf16.gmra.mxu0 %v1571
  %v1615 = vpop.f32.mrf.mxu0
  %v1616 = vadd.f32 %v1538, %v1615
  %v1617 = vpop.f32.mrf.mxu0
  %v1618 = vadd.f32 %v1538, %v1617
  %1619 = vmatmul.bf16.gmra.mxu0 %v1574
  %v1620 = vpop.f32.mrf.mxu0
  %v1621 = vadd.f32 %v1538, %v1620
  %v1622 = vpop.f32.mrf.mxu0
  %v1623 = vadd.f32 %v1538, %v1622
  %1624 = vdwg.mxu0
  %v1625 = vadd.f32 %v45, %v1586
  %v1626 = vadd.f32 %v46, %v1588
  %v1627 = vadd.f32 %v47, %v1591
  %v1628 = vadd.f32 %v48, %v1593
  %v1629 = vadd.f32 %v49, %v1596
  %v1630 = vadd.f32 %v50, %v1598
  %v1631 = vadd.f32 %v51, %v1601
  %v1632 = vadd.f32 %v52, %v1603
  %v1633 = vadd.f32 %v53, %v1606
  %v1634 = vadd.f32 %v54, %v1608
  %v1635 = vadd.f32 %v55, %v1611
  %v1636 = vadd.f32 %v56, %v1613
  %v1637 = vadd.f32 %v57, %v1616
  %v1638 = vadd.f32 %v58, %v1618
  %v1639 = vadd.f32 %v59, %v1621
  %v1640 = vadd.f32 %v60, %v1623
  %1641 = vst.msk [vmem:[%s12] sm:$0xff] %vm66, %v1625
  %1642 = vst.msk [vmem:[%s12 + $0x8] sm:$0xff] %vm66, %v1626
  %1643 = vst.msk [vmem:[%s12 + $0x10] sm:$0xff] %vm66, %v1627
  %1644 = vst.msk [vmem:[%s12 + $0x18] sm:$0xff] %vm66, %v1628
  %1645 = vst.msk [vmem:[%s12 + $0x20] sm:$0xff] %vm66, %v1629
  %1646 = vst.msk [vmem:[%s12 + $0x28] sm:$0xff] %vm66, %v1630
  %1647 = vst.msk [vmem:[%s12 + $0x30] sm:$0xff] %vm66, %v1631
  %1648 = vst.msk [vmem:[%s12 + $0x38] sm:$0xff] %vm66, %v1632
  %1649 = vst.msk [vmem:[%s12 + $0x40] sm:$0xff] %vm66, %v1633
  %1650 = vst.msk [vmem:[%s12 + $0x48] sm:$0xff] %vm66, %v1634
  %1651 = vst.msk [vmem:[%s12 + $0x50] sm:$0xff] %vm66, %v1635
  %1652 = vst.msk [vmem:[%s12 + $0x58] sm:$0xff] %vm66, %v1636
  %1653 = vst.msk [vmem:[%s12 + $0x60] sm:$0xff] %vm66, %v1637
  %1654 = vst.msk [vmem:[%s12 + $0x68] sm:$0xff] %vm66, %v1638
  %1655 = vst.msk [vmem:[%s12 + $0x70] sm:$0xff] %vm66, %v1639
  %1656 = vst.msk [vmem:[%s12 + $0x78] sm:$0xff] %vm66, %v1640
  %v1657 = vsel %vm66, %v1625, 0.0
  %1658 = vadd.xlane.f32.xlu0 %v1657
  %v1659 = vpop.xlane.xlu0 %1658
  %v1660 = vsel %vm66, %v1626, 0.0
  %1661 = vadd.xlane.f32.xlu0 %v1660
  %v1662 = vpop.xlane.xlu0 %1661
  %v1663 = vsel %vm66, %v1627, 0.0
  %1664 = vadd.xlane.f32.xlu0 %v1663
  %v1665 = vpop.xlane.xlu0 %1664
  %v1666 = vsel %vm66, %v1628, 0.0
  %1667 = vadd.xlane.f32.xlu0 %v1666
  %v1668 = vpop.xlane.xlu0 %1667
  %v1669 = vsel %vm66, %v1629, 0.0
  %1670 = vadd.xlane.f32.xlu0 %v1669
  %v1671 = vpop.xlane.xlu0 %1670
  %v1672 = vsel %vm66, %v1630, 0.0
  %1673 = vadd.xlane.f32.xlu0 %v1672
  %v1674 = vpop.xlane.xlu0 %1673
  %v1675 = vsel %vm66, %v1631, 0.0
  %1676 = vadd.xlane.f32.xlu0 %v1675
  %v1677 = vpop.xlane.xlu0 %1676
  %v1678 = vsel %vm66, %v1632, 0.0
  %1679 = vadd.xlane.f32.xlu0 %v1678
  %v1680 = vpop.xlane.xlu0 %1679
  %v1681 = vsel %vm66, %v1633, 0.0
  %1682 = vadd.xlane.f32.xlu0 %v1681
  %v1683 = vpop.xlane.xlu0 %1682
  %v1684 = vsel %vm66, %v1634, 0.0
  %1685 = vadd.xlane.f32.xlu0 %v1684
  %v1686 = vpop.xlane.xlu0 %1685
  %v1687 = vsel %vm66, %v1635, 0.0
  %1688 = vadd.xlane.f32.xlu0 %v1687
  %v1689 = vpop.xlane.xlu0 %1688
  %v1690 = vsel %vm66, %v1636, 0.0
  %1691 = vadd.xlane.f32.xlu0 %v1690
  %v1692 = vpop.xlane.xlu0 %1691
  %v1693 = vsel %vm66, %v1637, 0.0
  %1694 = vadd.xlane.f32.xlu0 %v1693
  %v1695 = vpop.xlane.xlu0 %1694
  %v1696 = vsel %vm66, %v1638, 0.0
  %1697 = vadd.xlane.f32.xlu0 %v1696
  %v1698 = vpop.xlane.xlu0 %1697
  %v1699 = vsel %vm66, %v1639, 0.0
  %1700 = vadd.xlane.f32.xlu0 %v1699
  %v1701 = vpop.xlane.xlu0 %1700
  %v1702 = vsel %vm66, %v1640, 0.0
  %1703 = vadd.xlane.f32.xlu0 %v1702
  %v1704 = vpop.xlane.xlu0 %1703
  %v1705 = vmul.f32 %v1659, %v121
  %v1706 = vmul.f32 %v1662, %v121
  %v1707 = vmul.f32 %v1665, %v121
  %v1708 = vmul.f32 %v1668, %v121
  %v1709 = vmul.f32 %v1671, %v121
  %v1710 = vmul.f32 %v1674, %v121
  %v1711 = vmul.f32 %v1677, %v121
  %v1712 = vmul.f32 %v1680, %v121
  %v1713 = vmul.f32 %v1683, %v121
  %v1714 = vmul.f32 %v1686, %v121
  %v1715 = vmul.f32 %v1689, %v121
  %v1716 = vmul.f32 %v1692, %v121
  %v1717 = vmul.f32 %v1695, %v121
  %v1718 = vmul.f32 %v1698, %v121
  %v1719 = vmul.f32 %v1701, %v121
  %v1720 = vmul.f32 %v1704, %v121
  %v1721 = vsub.f32 %v1625, %v1705
  %v1722 = vsub.f32 %v1626, %v1706
  %v1723 = vsub.f32 %v1627, %v1707
  %v1724 = vsub.f32 %v1628, %v1708
  %v1725 = vsub.f32 %v1629, %v1709
  %v1726 = vsub.f32 %v1630, %v1710
  %v1727 = vsub.f32 %v1631, %v1711
  %v1728 = vsub.f32 %v1632, %v1712
  %v1729 = vsub.f32 %v1633, %v1713
  %v1730 = vsub.f32 %v1634, %v1714
  %v1731 = vsub.f32 %v1635, %v1715
  %v1732 = vsub.f32 %v1636, %v1716
  %v1733 = vsub.f32 %v1637, %v1717
  %v1734 = vsub.f32 %v1638, %v1718
  %v1735 = vsub.f32 %v1639, %v1719
  %v1736 = vsub.f32 %v1640, %v1720
  %v1737 = vmul.f32 %v1721, %v1721
  %v1738 = vmul.f32 %v1722, %v1722
  %v1739 = vmul.f32 %v1723, %v1723
  %v1740 = vmul.f32 %v1724, %v1724
  %v1741 = vmul.f32 %v1725, %v1725
  %v1742 = vmul.f32 %v1726, %v1726
  %v1743 = vmul.f32 %v1727, %v1727
  %v1744 = vmul.f32 %v1728, %v1728
  %v1745 = vmul.f32 %v1729, %v1729
  %v1746 = vmul.f32 %v1730, %v1730
  %v1747 = vmul.f32 %v1731, %v1731
  %v1748 = vmul.f32 %v1732, %v1732
  %v1749 = vmul.f32 %v1733, %v1733
  %v1750 = vmul.f32 %v1734, %v1734
  %v1751 = vmul.f32 %v1735, %v1735
  %v1752 = vmul.f32 %v1736, %v1736
  %v1753 = vsel %vm66, %v1737, 0.0
  %1754 = vadd.xlane.f32.xlu0 %v1753
  %v1755 = vpop.xlane.xlu0 %1754
  %v1756 = vsel %vm66, %v1738, 0.0
  %1757 = vadd.xlane.f32.xlu0 %v1756
  %v1758 = vpop.xlane.xlu0 %1757
  %v1759 = vsel %vm66, %v1739, 0.0
  %1760 = vadd.xlane.f32.xlu0 %v1759
  %v1761 = vpop.xlane.xlu0 %1760
  %v1762 = vsel %vm66, %v1740, 0.0
  %1763 = vadd.xlane.f32.xlu0 %v1762
  %v1764 = vpop.xlane.xlu0 %1763
  %v1765 = vsel %vm66, %v1741, 0.0
  %1766 = vadd.xlane.f32.xlu0 %v1765
  %v1767 = vpop.xlane.xlu0 %1766
  %v1768 = vsel %vm66, %v1742, 0.0
  %1769 = vadd.xlane.f32.xlu0 %v1768
  %v1770 = vpop.xlane.xlu0 %1769
  %v1771 = vsel %vm66, %v1743, 0.0
  %1772 = vadd.xlane.f32.xlu0 %v1771
  %v1773 = vpop.xlane.xlu0 %1772
  %v1774 = vsel %vm66, %v1744, 0.0
  %1775 = vadd.xlane.f32.xlu0 %v1774
  %v1776 = vpop.xlane.xlu0 %1775
  %v1777 = vsel %vm66, %v1745, 0.0
  %1778 = vadd.xlane.f32.xlu0 %v1777
  %v1779 = vpop.xlane.xlu0 %1778
  %v1780 = vsel %vm66, %v1746, 0.0
  %1781 = vadd.xlane.f32.xlu0 %v1780
  %v1782 = vpop.xlane.xlu0 %1781
  %v1783 = vsel %vm66, %v1747, 0.0
  %1784 = vadd.xlane.f32.xlu0 %v1783
  %v1785 = vpop.xlane.xlu0 %1784
  %v1786 = vsel %vm66, %v1748, 0.0
  %1787 = vadd.xlane.f32.xlu0 %v1786
  %v1788 = vpop.xlane.xlu0 %1787
  %v1789 = vsel %vm66, %v1749, 0.0
  %1790 = vadd.xlane.f32.xlu0 %v1789
  %v1791 = vpop.xlane.xlu0 %1790
  %v1792 = vsel %vm66, %v1750, 0.0
  %1793 = vadd.xlane.f32.xlu0 %v1792
  %v1794 = vpop.xlane.xlu0 %1793
  %v1795 = vsel %vm66, %v1751, 0.0
  %1796 = vadd.xlane.f32.xlu0 %v1795
  %v1797 = vpop.xlane.xlu0 %1796
  %v1798 = vsel %vm66, %v1752, 0.0
  %1799 = vadd.xlane.f32.xlu0 %v1798
  %v1800 = vpop.xlane.xlu0 %1799
  %v1801 = vmul.f32 %v1755, %v121
  %v1802 = vmul.f32 %v1758, %v121
  %v1803 = vmul.f32 %v1761, %v121
  %v1804 = vmul.f32 %v1764, %v121
  %v1805 = vmul.f32 %v1767, %v121
  %v1806 = vmul.f32 %v1770, %v121
  %v1807 = vmul.f32 %v1773, %v121
  %v1808 = vmul.f32 %v1776, %v121
  %v1809 = vmul.f32 %v1779, %v121
  %v1810 = vmul.f32 %v1782, %v121
  %v1811 = vmul.f32 %v1785, %v121
  %v1812 = vmul.f32 %v1788, %v121
  %v1813 = vmul.f32 %v1791, %v121
  %v1814 = vmul.f32 %v1794, %v121
  %v1815 = vmul.f32 %v1797, %v121
  %v1816 = vmul.f32 %v1800, %v121
  %v1817 = vadd.f32 %v1801, 1e-05
  %v1818 = vadd.f32 %v1802, 1e-05
  %v1819 = vadd.f32 %v1803, 1e-05
  %v1820 = vadd.f32 %v1804, 1e-05
  %v1821 = vadd.f32 %v1805, 1e-05
  %v1822 = vadd.f32 %v1806, 1e-05
  %v1823 = vadd.f32 %v1807, 1e-05
  %v1824 = vadd.f32 %v1808, 1e-05
  %v1825 = vadd.f32 %v1809, 1e-05
  %v1826 = vadd.f32 %v1810, 1e-05
  %v1827 = vadd.f32 %v1811, 1e-05
  %v1828 = vadd.f32 %v1812, 1e-05
  %v1829 = vadd.f32 %v1813, 1e-05
  %v1830 = vadd.f32 %v1814, 1e-05
  %v1831 = vadd.f32 %v1815, 1e-05
  %v1832 = vadd.f32 %v1816, 1e-05
  %v1833 = vrsqrt.pop %v1817
  %v1834 = vmul.f32 %v1833, %v1817
  %v1835 = vmul.f32 %v1834, %v1833
  %v1836 = vmul.f32 0.5, %v1835
  %v1837 = vsub.f32 1.5, %v1836
  %v1838 = vmul.f32 %v1833, %v1837
  %vm1839 = vweird.f32 %v1817
  %vm1840 = vweird.f32 %v1833
  %vm1841 = vmor %vm1839, %vm1840
  %v1842 = vsel %vm1841, %v1833, %v1838
  %v1843 = vrsqrt.pop %v1818
  %v1844 = vmul.f32 %v1843, %v1818
  %v1845 = vmul.f32 %v1844, %v1843
  %v1846 = vmul.f32 0.5, %v1845
  %v1847 = vsub.f32 1.5, %v1846
  %v1848 = vmul.f32 %v1843, %v1847
  %vm1849 = vweird.f32 %v1818
  %vm1850 = vweird.f32 %v1843
  %vm1851 = vmor %vm1849, %vm1850
  %v1852 = vsel %vm1851, %v1843, %v1848
  %v1853 = vrsqrt.pop %v1819
  %v1854 = vmul.f32 %v1853, %v1819
  %v1855 = vmul.f32 %v1854, %v1853
  %v1856 = vmul.f32 0.5, %v1855
  %v1857 = vsub.f32 1.5, %v1856
  %v1858 = vmul.f32 %v1853, %v1857
  %vm1859 = vweird.f32 %v1819
  %vm1860 = vweird.f32 %v1853
  %vm1861 = vmor %vm1859, %vm1860
  %v1862 = vsel %vm1861, %v1853, %v1858
  %v1863 = vrsqrt.pop %v1820
  %v1864 = vmul.f32 %v1863, %v1820
  %v1865 = vmul.f32 %v1864, %v1863
  %v1866 = vmul.f32 0.5, %v1865
  %v1867 = vsub.f32 1.5, %v1866
  %v1868 = vmul.f32 %v1863, %v1867
  %vm1869 = vweird.f32 %v1820
  %vm1870 = vweird.f32 %v1863
  %vm1871 = vmor %vm1869, %vm1870
  %v1872 = vsel %vm1871, %v1863, %v1868
  %v1873 = vrsqrt.pop %v1821
  %v1874 = vmul.f32 %v1873, %v1821
  %v1875 = vmul.f32 %v1874, %v1873
  %v1876 = vmul.f32 0.5, %v1875
  %v1877 = vsub.f32 1.5, %v1876
  %v1878 = vmul.f32 %v1873, %v1877
  %vm1879 = vweird.f32 %v1821
  %vm1880 = vweird.f32 %v1873
  %vm1881 = vmor %vm1879, %vm1880
  %v1882 = vsel %vm1881, %v1873, %v1878
  %v1883 = vrsqrt.pop %v1822
  %v1884 = vmul.f32 %v1883, %v1822
  %v1885 = vmul.f32 %v1884, %v1883
  %v1886 = vmul.f32 0.5, %v1885
  %v1887 = vsub.f32 1.5, %v1886
  %v1888 = vmul.f32 %v1883, %v1887
  %vm1889 = vweird.f32 %v1822
  %vm1890 = vweird.f32 %v1883
  %vm1891 = vmor %vm1889, %vm1890
  %v1892 = vsel %vm1891, %v1883, %v1888
  %v1893 = vrsqrt.pop %v1823
  %v1894 = vmul.f32 %v1893, %v1823
  %v1895 = vmul.f32 %v1894, %v1893
  %v1896 = vmul.f32 0.5, %v1895
  %v1897 = vsub.f32 1.5, %v1896
  %v1898 = vmul.f32 %v1893, %v1897
  %vm1899 = vweird.f32 %v1823
  %vm1900 = vweird.f32 %v1893
  %vm1901 = vmor %vm1899, %vm1900
  %v1902 = vsel %vm1901, %v1893, %v1898
  %v1903 = vrsqrt.pop %v1824
  %v1904 = vmul.f32 %v1903, %v1824
  %v1905 = vmul.f32 %v1904, %v1903
  %v1906 = vmul.f32 0.5, %v1905
  %v1907 = vsub.f32 1.5, %v1906
  %v1908 = vmul.f32 %v1903, %v1907
  %vm1909 = vweird.f32 %v1824
  %vm1910 = vweird.f32 %v1903
  %vm1911 = vmor %vm1909, %vm1910
  %v1912 = vsel %vm1911, %v1903, %v1908
  %v1913 = vrsqrt.pop %v1825
  %v1914 = vmul.f32 %v1913, %v1825
  %v1915 = vmul.f32 %v1914, %v1913
  %v1916 = vmul.f32 0.5, %v1915
  %v1917 = vsub.f32 1.5, %v1916
  %v1918 = vmul.f32 %v1913, %v1917
  %vm1919 = vweird.f32 %v1825
  %vm1920 = vweird.f32 %v1913
  %vm1921 = vmor %vm1919, %vm1920
  %v1922 = vsel %vm1921, %v1913, %v1918
  %v1923 = vrsqrt.pop %v1826
  %v1924 = vmul.f32 %v1923, %v1826
  %v1925 = vmul.f32 %v1924, %v1923
  %v1926 = vmul.f32 0.5, %v1925
  %v1927 = vsub.f32 1.5, %v1926
  %v1928 = vmul.f32 %v1923, %v1927
  %vm1929 = vweird.f32 %v1826
  %vm1930 = vweird.f32 %v1923
  %vm1931 = vmor %vm1929, %vm1930
  %v1932 = vsel %vm1931, %v1923, %v1928
  %v1933 = vrsqrt.pop %v1827
  %v1934 = vmul.f32 %v1933, %v1827
  %v1935 = vmul.f32 %v1934, %v1933
  %v1936 = vmul.f32 0.5, %v1935
  %v1937 = vsub.f32 1.5, %v1936
  %v1938 = vmul.f32 %v1933, %v1937
  %vm1939 = vweird.f32 %v1827
  %vm1940 = vweird.f32 %v1933
  %vm1941 = vmor %vm1939, %vm1940
  %v1942 = vsel %vm1941, %v1933, %v1938
  %v1943 = vrsqrt.pop %v1828
  %v1944 = vmul.f32 %v1943, %v1828
  %v1945 = vmul.f32 %v1944, %v1943
  %v1946 = vmul.f32 0.5, %v1945
  %v1947 = vsub.f32 1.5, %v1946
  %v1948 = vmul.f32 %v1943, %v1947
  %vm1949 = vweird.f32 %v1828
  %vm1950 = vweird.f32 %v1943
  %vm1951 = vmor %vm1949, %vm1950
  %v1952 = vsel %vm1951, %v1943, %v1948
  %v1953 = vrsqrt.pop %v1829
  %v1954 = vmul.f32 %v1953, %v1829
  %v1955 = vmul.f32 %v1954, %v1953
  %v1956 = vmul.f32 0.5, %v1955
  %v1957 = vsub.f32 1.5, %v1956
  %v1958 = vmul.f32 %v1953, %v1957
  %vm1959 = vweird.f32 %v1829
  %vm1960 = vweird.f32 %v1953
  %vm1961 = vmor %vm1959, %vm1960
  %v1962 = vsel %vm1961, %v1953, %v1958
  %v1963 = vrsqrt.pop %v1830
  %v1964 = vmul.f32 %v1963, %v1830
  %v1965 = vmul.f32 %v1964, %v1963
  %v1966 = vmul.f32 0.5, %v1965
  %v1967 = vsub.f32 1.5, %v1966
  %v1968 = vmul.f32 %v1963, %v1967
  %vm1969 = vweird.f32 %v1830
  %vm1970 = vweird.f32 %v1963
  %vm1971 = vmor %vm1969, %vm1970
  %v1972 = vsel %vm1971, %v1963, %v1968
  %v1973 = vrsqrt.pop %v1831
  %v1974 = vmul.f32 %v1973, %v1831
  %v1975 = vmul.f32 %v1974, %v1973
  %v1976 = vmul.f32 0.5, %v1975
  %v1977 = vsub.f32 1.5, %v1976
  %v1978 = vmul.f32 %v1973, %v1977
  %vm1979 = vweird.f32 %v1831
  %vm1980 = vweird.f32 %v1973
  %vm1981 = vmor %vm1979, %vm1980
  %v1982 = vsel %vm1981, %v1973, %v1978
  %v1983 = vrsqrt.pop %v1832
  %v1984 = vmul.f32 %v1983, %v1832
  %v1985 = vmul.f32 %v1984, %v1983
  %v1986 = vmul.f32 0.5, %v1985
  %v1987 = vsub.f32 1.5, %v1986
  %v1988 = vmul.f32 %v1983, %v1987
  %vm1989 = vweird.f32 %v1832
  %vm1990 = vweird.f32 %v1983
  %vm1991 = vmor %vm1989, %vm1990
  %v1992 = vsel %vm1991, %v1983, %v1988
  %v1993 = vmul.f32 %v1721, %v1842
  %v1994 = vmul.f32 %v1722, %v1852
  %v1995 = vmul.f32 %v1723, %v1862
  %v1996 = vmul.f32 %v1724, %v1872
  %v1997 = vmul.f32 %v1725, %v1882
  %v1998 = vmul.f32 %v1726, %v1892
  %v1999 = vmul.f32 %v1727, %v1902
  %v2000 = vmul.f32 %v1728, %v1912
  %v2001 = vmul.f32 %v1729, %v1922
  %v2002 = vmul.f32 %v1730, %v1932
  %v2003 = vmul.f32 %v1731, %v1942
  %v2004 = vmul.f32 %v1732, %v1952
  %v2005 = vmul.f32 %v1733, %v1962
  %v2006 = vmul.f32 %v1734, %v1972
  %v2007 = vmul.f32 %v1735, %v1982
  %v2008 = vmul.f32 %v1736, %v1992
  %v2009 = vld [vmem:[%s9] sm:$0x1]
  %v2011 = vperm.slane %v2009, 0
  %v2013 = vmul.f32 %v1993, %v2011
  %v2014 = vmul.f32 %v1994, %v2011
  %v2015 = vmul.f32 %v1995, %v2011
  %v2016 = vmul.f32 %v1996, %v2011
  %v2017 = vmul.f32 %v1997, %v2011
  %v2018 = vmul.f32 %v1998, %v2011
  %v2019 = vmul.f32 %v1999, %v2011
  %v2020 = vmul.f32 %v2000, %v2011
  %v2021 = vmul.f32 %v2001, %v2011
  %v2022 = vmul.f32 %v2002, %v2011
  %v2023 = vmul.f32 %v2003, %v2011
  %v2024 = vmul.f32 %v2004, %v2011
  %v2025 = vmul.f32 %v2005, %v2011
  %v2026 = vmul.f32 %v2006, %v2011
  %v2027 = vmul.f32 %v2007, %v2011
  %v2028 = vmul.f32 %v2008, %v2011
  %v2029 = vld [vmem:[%s10] sm:$0x1]
  %v2031 = vperm.slane %v2029, 0
  %v2033 = vadd.f32 %v2013, %v2031
  %v2034 = vadd.f32 %v2014, %v2031
  %v2035 = vadd.f32 %v2015, %v2031
  %v2036 = vadd.f32 %v2016, %v2031
  %v2037 = vadd.f32 %v2017, %v2031
  %v2038 = vadd.f32 %v2018, %v2031
  %v2039 = vadd.f32 %v2019, %v2031
  %v2040 = vadd.f32 %v2020, %v2031
  %v2041 = vadd.f32 %v2021, %v2031
  %v2042 = vadd.f32 %v2022, %v2031
  %v2043 = vadd.f32 %v2023, %v2031
  %v2044 = vadd.f32 %v2024, %v2031
  %v2045 = vadd.f32 %v2025, %v2031
  %v2046 = vadd.f32 %v2026, %v2031
  %v2047 = vadd.f32 %v2027, %v2031
  %v2048 = vadd.f32 %v2028, %v2031
  %v2049 = vld [vmem:[%s11] sm:$0xff]
  %v2050 = vld [vmem:[%s11 + $0x8] sm:$0x1]
  %v2051 = vperm.slane %v2049, 0
  %v2052 = vmul.f32 %v2051, 0.0
  %v2053 = vmul.f32 %v2051, %v2033
  %v2054 = vmul.f32 %v2051, %v2034
  %v2055 = vmul.f32 %v2051, %v2035
  %v2056 = vmul.f32 %v2051, %v2036
  %v2057 = vmul.f32 %v2051, %v2037
  %v2058 = vmul.f32 %v2051, %v2038
  %v2059 = vmul.f32 %v2051, %v2039
  %v2060 = vmul.f32 %v2051, %v2041
  %v2061 = vmul.f32 %v2051, %v2042
  %v2062 = vmul.f32 %v2051, %v2043
  %v2063 = vmul.f32 %v2051, %v2044
  %v2064 = vmul.f32 %v2051, %v2045
  %v2065 = vmul.f32 %v2051, %v2046
  %v2066 = vmul.f32 %v2051, %v2047
  %v2067 = vperm.slane %v2049, 3
  %v2068 = vmul.f32 %v2067, %v2033
  %v2069 = vmul.f32 %v2067, %v2034
  %v2070 = vmul.f32 %v2067, %v2035
  %v2071 = vmul.f32 %v2067, %v2036
  %v2072 = vmul.f32 %v2067, %v2037
  %v2073 = vmul.f32 %v2067, %v2038
  %v2074 = vmul.f32 %v2067, %v2039
  %v2075 = vmul.f32 %v2067, %v2040
  %v2076 = vmul.f32 %v2067, %v2041
  %v2077 = vmul.f32 %v2067, %v2042
  %v2078 = vmul.f32 %v2067, %v2043
  %v2079 = vmul.f32 %v2067, %v2044
  %v2080 = vmul.f32 %v2067, %v2045
  %v2081 = vmul.f32 %v2067, %v2046
  %v2082 = vmul.f32 %v2067, %v2047
  %v2083 = vmul.f32 %v2067, %v2048
  %v2084 = vadd.f32 %v2052, %v2068
  %v2085 = vadd.f32 %v2053, %v2069
  %v2086 = vadd.f32 %v2054, %v2070
  %v2087 = vadd.f32 %v2055, %v2071
  %v2088 = vadd.f32 %v2056, %v2072
  %v2089 = vadd.f32 %v2057, %v2073
  %v2090 = vadd.f32 %v2058, %v2074
  %v2091 = vadd.f32 %v2059, %v2075
  %v2092 = vadd.f32 %v2052, %v2076
  %v2093 = vadd.f32 %v2060, %v2077
  %v2094 = vadd.f32 %v2061, %v2078
  %v2095 = vadd.f32 %v2062, %v2079
  %v2096 = vadd.f32 %v2063, %v2080
  %v2097 = vadd.f32 %v2064, %v2081
  %v2098 = vadd.f32 %v2065, %v2082
  %v2099 = vadd.f32 %v2066, %v2083
  %v2100 = vperm.slane %v2049, 6
  %v2101 = vmul.f32 %v2100, %v2034
  %v2102 = vmul.f32 %v2100, %v2035
  %v2103 = vmul.f32 %v2100, %v2036
  %v2104 = vmul.f32 %v2100, %v2037
  %v2105 = vmul.f32 %v2100, %v2038
  %v2106 = vmul.f32 %v2100, %v2039
  %v2107 = vmul.f32 %v2100, %v2040
  %v2108 = vmul.f32 %v2100, 0.0
  %v2109 = vmul.f32 %v2100, %v2042
  %v2110 = vmul.f32 %v2100, %v2043
  %v2111 = vmul.f32 %v2100, %v2044
  %v2112 = vmul.f32 %v2100, %v2045
  %v2113 = vmul.f32 %v2100, %v2046
  %v2114 = vmul.f32 %v2100, %v2047
  %v2115 = vmul.f32 %v2100, %v2048
  %v2116 = vadd.f32 %v2084, %v2101
  %v2117 = vadd.f32 %v2085, %v2102
  %v2118 = vadd.f32 %v2086, %v2103
  %v2119 = vadd.f32 %v2087, %v2104
  %v2120 = vadd.f32 %v2088, %v2105
  %v2121 = vadd.f32 %v2089, %v2106
  %v2122 = vadd.f32 %v2090, %v2107
  %v2123 = vadd.f32 %v2091, %v2108
  %v2124 = vadd.f32 %v2092, %v2109
  %v2125 = vadd.f32 %v2093, %v2110
  %v2126 = vadd.f32 %v2094, %v2111
  %v2127 = vadd.f32 %v2095, %v2112
  %v2128 = vadd.f32 %v2096, %v2113
  %v2129 = vadd.f32 %v2097, %v2114
  %v2130 = vadd.f32 %v2098, %v2115
  %v2131 = vadd.f32 %v2099, %v2108
  %v2132 = vperm.slane %v2049, 1
  %v2133 = vmul.f32 %v2132, 0.0
  %v2134 = vmul.f32 %v2132, %v2033
  %v2135 = vmul.f32 %v2132, %v2034
  %v2136 = vmul.f32 %v2132, %v2035
  %v2137 = vmul.f32 %v2132, %v2036
  %v2138 = vmul.f32 %v2132, %v2037
  %v2139 = vmul.f32 %v2132, %v2038
  %v2140 = vmul.f32 %v2132, %v2039
  %v2141 = vmul.f32 %v2132, %v2041
  %v2142 = vmul.f32 %v2132, %v2042
  %v2143 = vmul.f32 %v2132, %v2043
  %v2144 = vmul.f32 %v2132, %v2044
  %v2145 = vmul.f32 %v2132, %v2045
  %v2146 = vmul.f32 %v2132, %v2046
  %v2147 = vmul.f32 %v2132, %v2047
  %v2148 = vperm.slane %v2049, 4
  %v2149 = vmul.f32 %v2148, %v2033
  %v2150 = vmul.f32 %v2148, %v2034
  %v2151 = vmul.f32 %v2148, %v2035
  %v2152 = vmul.f32 %v2148, %v2036
  %v2153 = vmul.f32 %v2148, %v2037
  %v2154 = vmul.f32 %v2148, %v2038
  %v2155 = vmul.f32 %v2148, %v2039
  %v2156 = vmul.f32 %v2148, %v2040
  %v2157 = vmul.f32 %v2148, %v2041
  %v2158 = vmul.f32 %v2148, %v2042
  %v2159 = vmul.f32 %v2148, %v2043
  %v2160 = vmul.f32 %v2148, %v2044
  %v2161 = vmul.f32 %v2148, %v2045
  %v2162 = vmul.f32 %v2148, %v2046
  %v2163 = vmul.f32 %v2148, %v2047
  %v2164 = vmul.f32 %v2148, %v2048
  %v2165 = vadd.f32 %v2133, %v2149
  %v2166 = vadd.f32 %v2134, %v2150
  %v2167 = vadd.f32 %v2135, %v2151
  %v2168 = vadd.f32 %v2136, %v2152
  %v2169 = vadd.f32 %v2137, %v2153
  %v2170 = vadd.f32 %v2138, %v2154
  %v2171 = vadd.f32 %v2139, %v2155
  %v2172 = vadd.f32 %v2140, %v2156
  %v2173 = vadd.f32 %v2133, %v2157
  %v2174 = vadd.f32 %v2141, %v2158
  %v2175 = vadd.f32 %v2142, %v2159
  %v2176 = vadd.f32 %v2143, %v2160
  %v2177 = vadd.f32 %v2144, %v2161
  %v2178 = vadd.f32 %v2145, %v2162
  %v2179 = vadd.f32 %v2146, %v2163
  %v2180 = vadd.f32 %v2147, %v2164
  %v2181 = vperm.slane %v2049, 7
  %v2182 = vmul.f32 %v2181, %v2034
  %v2183 = vmul.f32 %v2181, %v2035
  %v2184 = vmul.f32 %v2181, %v2036
  %v2185 = vmul.f32 %v2181, %v2037
  %v2186 = vmul.f32 %v2181, %v2038
  %v2187 = vmul.f32 %v2181, %v2039
  %v2188 = vmul.f32 %v2181, %v2040
  %v2189 = vmul.f32 %v2181, 0.0
  %v2190 = vmul.f32 %v2181, %v2042
  %v2191 = vmul.f32 %v2181, %v2043
  %v2192 = vmul.f32 %v2181, %v2044
  %v2193 = vmul.f32 %v2181, %v2045
  %v2194 = vmul.f32 %v2181, %v2046
  %v2195 = vmul.f32 %v2181, %v2047
  %v2196 = vmul.f32 %v2181, %v2048
  %v2197 = vadd.f32 %v2165, %v2182
  %v2198 = vadd.f32 %v2166, %v2183
  %v2199 = vadd.f32 %v2167, %v2184
  %v2200 = vadd.f32 %v2168, %v2185
  %v2201 = vadd.f32 %v2169, %v2186
  %v2202 = vadd.f32 %v2170, %v2187
  %v2203 = vadd.f32 %v2171, %v2188
  %v2204 = vadd.f32 %v2172, %v2189
  %v2205 = vadd.f32 %v2173, %v2190
  %v2206 = vadd.f32 %v2174, %v2191
  %v2207 = vadd.f32 %v2175, %v2192
  %v2208 = vadd.f32 %v2176, %v2193
  %v2209 = vadd.f32 %v2177, %v2194
  %v2210 = vadd.f32 %v2178, %v2195
  %v2211 = vadd.f32 %v2179, %v2196
  %v2212 = vadd.f32 %v2180, %v2189
  %v2213 = vperm.slane %v2049, 2
  %v2214 = vmul.f32 %v2213, 0.0
  %v2215 = vmul.f32 %v2213, %v2033
  %v2216 = vmul.f32 %v2213, %v2034
  %v2217 = vmul.f32 %v2213, %v2035
  %v2218 = vmul.f32 %v2213, %v2036
  %v2219 = vmul.f32 %v2213, %v2037
  %v2220 = vmul.f32 %v2213, %v2038
  %v2221 = vmul.f32 %v2213, %v2039
  %v2222 = vmul.f32 %v2213, %v2041
  %v2223 = vmul.f32 %v2213, %v2042
  %v2224 = vmul.f32 %v2213, %v2043
  %v2225 = vmul.f32 %v2213, %v2044
  %v2226 = vmul.f32 %v2213, %v2045
  %v2227 = vmul.f32 %v2213, %v2046
  %v2228 = vmul.f32 %v2213, %v2047
  %v2229 = vperm.slane %v2049, 5
  %v2230 = vmul.f32 %v2229, %v2033
  %v2231 = vmul.f32 %v2229, %v2034
  %v2232 = vmul.f32 %v2229, %v2035
  %v2233 = vmul.f32 %v2229, %v2036
  %v2234 = vmul.f32 %v2229, %v2037
  %v2235 = vmul.f32 %v2229, %v2038
  %v2236 = vmul.f32 %v2229, %v2039
  %v2237 = vmul.f32 %v2229, %v2040
  %v2238 = vmul.f32 %v2229, %v2041
  %v2239 = vmul.f32 %v2229, %v2042
  %v2240 = vmul.f32 %v2229, %v2043
  %v2241 = vmul.f32 %v2229, %v2044
  %v2242 = vmul.f32 %v2229, %v2045
  %v2243 = vmul.f32 %v2229, %v2046
  %v2244 = vmul.f32 %v2229, %v2047
  %v2245 = vmul.f32 %v2229, %v2048
  %v2246 = vadd.f32 %v2214, %v2230
  %v2247 = vadd.f32 %v2215, %v2231
  %v2248 = vadd.f32 %v2216, %v2232
  %v2249 = vadd.f32 %v2217, %v2233
  %v2250 = vadd.f32 %v2218, %v2234
  %v2251 = vadd.f32 %v2219, %v2235
  %v2252 = vadd.f32 %v2220, %v2236
  %v2253 = vadd.f32 %v2221, %v2237
  %v2254 = vadd.f32 %v2214, %v2238
  %v2255 = vadd.f32 %v2222, %v2239
  %v2256 = vadd.f32 %v2223, %v2240
  %v2257 = vadd.f32 %v2224, %v2241
  %v2258 = vadd.f32 %v2225, %v2242
  %v2259 = vadd.f32 %v2226, %v2243
  %v2260 = vadd.f32 %v2227, %v2244
  %v2261 = vadd.f32 %v2228, %v2245
  %v2262 = vperm.slane %v2050, 0
  %v2263 = vmul.f32 %v2262, %v2034
  %v2264 = vmul.f32 %v2262, %v2035
  %v2265 = vmul.f32 %v2262, %v2036
  %v2266 = vmul.f32 %v2262, %v2037
  %v2267 = vmul.f32 %v2262, %v2038
  %v2268 = vmul.f32 %v2262, %v2039
  %v2269 = vmul.f32 %v2262, %v2040
  %v2270 = vmul.f32 %v2262, 0.0
  %v2271 = vmul.f32 %v2262, %v2042
  %v2272 = vmul.f32 %v2262, %v2043
  %v2273 = vmul.f32 %v2262, %v2044
  %v2274 = vmul.f32 %v2262, %v2045
  %v2275 = vmul.f32 %v2262, %v2046
  %v2276 = vmul.f32 %v2262, %v2047
  %v2277 = vmul.f32 %v2262, %v2048
  %v2278 = vadd.f32 %v2246, %v2263
  %v2279 = vadd.f32 %v2247, %v2264
  %v2280 = vadd.f32 %v2248, %v2265
  %v2281 = vadd.f32 %v2249, %v2266
  %v2282 = vadd.f32 %v2250, %v2267
  %v2283 = vadd.f32 %v2251, %v2268
  %v2284 = vadd.f32 %v2252, %v2269
  %v2285 = vadd.f32 %v2253, %v2270
  %v2286 = vadd.f32 %v2254, %v2271
  %v2287 = vadd.f32 %v2255, %v2272
  %v2288 = vadd.f32 %v2256, %v2273
  %v2289 = vadd.f32 %v2257, %v2274
  %v2290 = vadd.f32 %v2258, %v2275
  %v2291 = vadd.f32 %v2259, %v2276
  %v2292 = vadd.f32 %v2260, %v2277
  %v2293 = vadd.f32 %v2261, %v2270
  %v2310 = vrot.slane %v2116, 7
  %v2311 = vrot.slane %v2117, 7
  %v2312 = vrot.slane %v2118, 7
  %v2313 = vrot.slane %v2119, 7
  %v2314 = vrot.slane %v2120, 7
  %v2315 = vrot.slane %v2121, 7
  %v2316 = vrot.slane %v2122, 7
  %v2317 = vrot.slane %v2123, 7
  %v2318 = vrot.slane %v2124, 7
  %v2319 = vrot.slane %v2125, 7
  %v2320 = vrot.slane %v2126, 7
  %v2321 = vrot.slane %v2127, 7
  %v2322 = vrot.slane %v2128, 7
  %v2323 = vrot.slane %v2129, 7
  %v2324 = vrot.slane %v2130, 7
  %v2325 = vrot.slane %v2131, 7
  %v2342 = vsel %vm615, 0.0, %v2310
  %v2343 = vsel %vm615, 0.0, %v2311
  %v2344 = vsel %vm615, 0.0, %v2312
  %v2345 = vsel %vm615, 0.0, %v2313
  %v2346 = vsel %vm615, 0.0, %v2314
  %v2347 = vsel %vm615, 0.0, %v2315
  %v2348 = vsel %vm615, 0.0, %v2316
  %v2349 = vsel %vm615, 0.0, %v2317
  %v2350 = vsel %vm615, 0.0, %v2318
  %v2351 = vsel %vm615, 0.0, %v2319
  %v2352 = vsel %vm615, 0.0, %v2320
  %v2353 = vsel %vm615, 0.0, %v2321
  %v2354 = vsel %vm615, 0.0, %v2322
  %v2355 = vsel %vm615, 0.0, %v2323
  %v2356 = vsel %vm615, 0.0, %v2324
  %v2357 = vsel %vm615, 0.0, %v2325
  %v2374 = vrot.slane %v2278, 1
  %v2375 = vrot.slane %v2279, 1
  %v2376 = vrot.slane %v2280, 1
  %v2377 = vrot.slane %v2281, 1
  %v2378 = vrot.slane %v2282, 1
  %v2379 = vrot.slane %v2283, 1
  %v2380 = vrot.slane %v2284, 1
  %v2381 = vrot.slane %v2285, 1
  %v2382 = vrot.slane %v2286, 1
  %v2383 = vrot.slane %v2287, 1
  %v2384 = vrot.slane %v2288, 1
  %v2385 = vrot.slane %v2289, 1
  %v2386 = vrot.slane %v2290, 1
  %v2387 = vrot.slane %v2291, 1
  %v2388 = vrot.slane %v2292, 1
  %v2389 = vrot.slane %v2293, 1
  %v2406 = vsel %vm664, %v2374, 0.0
  %v2407 = vsel %vm664, %v2375, 0.0
  %v2408 = vsel %vm664, %v2376, 0.0
  %v2409 = vsel %vm664, %v2377, 0.0
  %v2410 = vsel %vm664, %v2378, 0.0
  %v2411 = vsel %vm664, %v2379, 0.0
  %v2412 = vsel %vm664, %v2380, 0.0
  %v2413 = vsel %vm664, %v2381, 0.0
  %v2414 = vsel %vm664, %v2382, 0.0
  %v2415 = vsel %vm664, %v2383, 0.0
  %v2416 = vsel %vm664, %v2384, 0.0
  %v2417 = vsel %vm664, %v2385, 0.0
  %v2418 = vsel %vm664, %v2386, 0.0
  %v2419 = vsel %vm664, %v2387, 0.0
  %v2420 = vsel %vm664, %v2388, 0.0
  %v2421 = vsel %vm664, %v2389, 0.0
  %v2422 = vadd.f32 %v2342, %v2197
  %v2423 = vadd.f32 %v2343, %v2198
  %v2424 = vadd.f32 %v2344, %v2199
  %v2425 = vadd.f32 %v2345, %v2200
  %v2426 = vadd.f32 %v2346, %v2201
  %v2427 = vadd.f32 %v2347, %v2202
  %v2428 = vadd.f32 %v2348, %v2203
  %v2429 = vadd.f32 %v2349, %v2204
  %v2430 = vadd.f32 %v2350, %v2205
  %v2431 = vadd.f32 %v2351, %v2206
  %v2432 = vadd.f32 %v2352, %v2207
  %v2433 = vadd.f32 %v2353, %v2208
  %v2434 = vadd.f32 %v2354, %v2209
  %v2435 = vadd.f32 %v2355, %v2210
  %v2436 = vadd.f32 %v2356, %v2211
  %v2437 = vadd.f32 %v2357, %v2212
  %v2438 = vadd.f32 %v2422, %v2406
  %v2439 = vadd.f32 %v2423, %v2407
  %v2440 = vadd.f32 %v2424, %v2408
  %v2441 = vadd.f32 %v2425, %v2409
  %v2442 = vadd.f32 %v2426, %v2410
  %v2443 = vadd.f32 %v2427, %v2411
  %v2444 = vadd.f32 %v2428, %v2412
  %v2445 = vadd.f32 %v2429, %v2413
  %v2446 = vadd.f32 %v2430, %v2414
  %v2447 = vadd.f32 %v2431, %v2415
  %v2448 = vadd.f32 %v2432, %v2416
  %v2449 = vadd.f32 %v2433, %v2417
  %v2450 = vadd.f32 %v2434, %v2418
  %v2451 = vadd.f32 %v2435, %v2419
  %v2452 = vadd.f32 %v2436, %v2420
  %v2453 = vadd.f32 %v2437, %v2421
  %2454 = vst.msk [vmem:[%s13] sm:$0xff] %vm66, %v2438
  %2455 = vst.msk [vmem:[%s13 + $0x8] sm:$0xff] %vm66, %v2439
  %2456 = vst.msk [vmem:[%s13 + $0x10] sm:$0xff] %vm66, %v2440
  %2457 = vst.msk [vmem:[%s13 + $0x18] sm:$0xff] %vm66, %v2441
  %2458 = vst.msk [vmem:[%s13 + $0x20] sm:$0xff] %vm66, %v2442
  %2459 = vst.msk [vmem:[%s13 + $0x28] sm:$0xff] %vm66, %v2443
  %2460 = vst.msk [vmem:[%s13 + $0x30] sm:$0xff] %vm66, %v2444
  %2461 = vst.msk [vmem:[%s13 + $0x38] sm:$0xff] %vm66, %v2445
  %2462 = vst.msk [vmem:[%s13 + $0x40] sm:$0xff] %vm66, %v2446
  %2463 = vst.msk [vmem:[%s13 + $0x48] sm:$0xff] %vm66, %v2447
  %2464 = vst.msk [vmem:[%s13 + $0x50] sm:$0xff] %vm66, %v2448
  %2465 = vst.msk [vmem:[%s13 + $0x58] sm:$0xff] %vm66, %v2449
  %2466 = vst.msk [vmem:[%s13 + $0x60] sm:$0xff] %vm66, %v2450
  %2467 = vst.msk [vmem:[%s13 + $0x68] sm:$0xff] %vm66, %v2451
  %2468 = vst.msk [vmem:[%s13 + $0x70] sm:$0xff] %vm66, %v2452
  %2469 = vst.msk [vmem:[%s13 + $0x78] sm:$0xff] %vm66, %v2453
  %v2470 = vsel %vm66, %v2438, 0.0
  %v2471 = vsel %vm66, %v2439, 0.0
  %v2472 = vadd.f32 %v2470, %v2471
  %v2473 = vsel %vm66, %v2440, 0.0
  %v2474 = vadd.f32 %v2472, %v2473
  %v2475 = vsel %vm66, %v2441, 0.0
  %v2476 = vadd.f32 %v2474, %v2475
  %v2477 = vsel %vm66, %v2442, 0.0
  %v2478 = vadd.f32 %v2476, %v2477
  %v2479 = vsel %vm66, %v2443, 0.0
  %v2480 = vadd.f32 %v2478, %v2479
  %v2481 = vsel %vm66, %v2444, 0.0
  %v2482 = vadd.f32 %v2480, %v2481
  %v2483 = vsel %vm66, %v2445, 0.0
  %v2484 = vadd.f32 %v2482, %v2483
  %v2485 = vsel %vm66, %v2446, 0.0
  %v2486 = vadd.f32 %v2484, %v2485
  %v2487 = vsel %vm66, %v2447, 0.0
  %v2488 = vadd.f32 %v2486, %v2487
  %v2489 = vsel %vm66, %v2448, 0.0
  %v2490 = vadd.f32 %v2488, %v2489
  %v2491 = vsel %vm66, %v2449, 0.0
  %v2492 = vadd.f32 %v2490, %v2491
  %v2493 = vsel %vm66, %v2450, 0.0
  %v2494 = vadd.f32 %v2492, %v2493
  %v2495 = vsel %vm66, %v2451, 0.0
  %v2496 = vadd.f32 %v2494, %v2495
  %v2497 = vsel %vm66, %v2452, 0.0
  %v2498 = vadd.f32 %v2496, %v2497
  %v2499 = vsel %vm66, %v2453, 0.0
  %v2500 = vadd.f32 %v2498, %v2499
  %v2501 = vrot.slane %v2500, 4
  %v2502 = vadd.f32 %v2500, %v2501
  %v2503 = vrot.slane %v2502, 2
  %v2504 = vadd.f32 %v2502, %v2503
  %v2505 = vrot.slane %v2504, 1
  %v2506 = vadd.f32 %v2504, %v2505
  %v2507 = vmul.f32 %v2438, %v2438
  %v2508 = vmul.f32 %v2439, %v2439
  %v2509 = vmul.f32 %v2440, %v2440
  %v2510 = vmul.f32 %v2441, %v2441
  %v2511 = vmul.f32 %v2442, %v2442
  %v2512 = vmul.f32 %v2443, %v2443
  %v2513 = vmul.f32 %v2444, %v2444
  %v2514 = vmul.f32 %v2445, %v2445
  %v2515 = vmul.f32 %v2446, %v2446
  %v2516 = vmul.f32 %v2447, %v2447
  %v2517 = vmul.f32 %v2448, %v2448
  %v2518 = vmul.f32 %v2449, %v2449
  %v2519 = vmul.f32 %v2450, %v2450
  %v2520 = vmul.f32 %v2451, %v2451
  %v2521 = vmul.f32 %v2452, %v2452
  %v2522 = vmul.f32 %v2453, %v2453
  %v2523 = vsel %vm66, %v2507, 0.0
  %v2524 = vsel %vm66, %v2508, 0.0
  %v2525 = vadd.f32 %v2523, %v2524
  %v2526 = vsel %vm66, %v2509, 0.0
  %v2527 = vadd.f32 %v2525, %v2526
  %v2528 = vsel %vm66, %v2510, 0.0
  %v2529 = vadd.f32 %v2527, %v2528
  %v2530 = vsel %vm66, %v2511, 0.0
  %v2531 = vadd.f32 %v2529, %v2530
  %v2532 = vsel %vm66, %v2512, 0.0
  %v2533 = vadd.f32 %v2531, %v2532
  %v2534 = vsel %vm66, %v2513, 0.0
  %v2535 = vadd.f32 %v2533, %v2534
  %v2536 = vsel %vm66, %v2514, 0.0
  %v2537 = vadd.f32 %v2535, %v2536
  %v2538 = vsel %vm66, %v2515, 0.0
  %v2539 = vadd.f32 %v2537, %v2538
  %v2540 = vsel %vm66, %v2516, 0.0
  %v2541 = vadd.f32 %v2539, %v2540
  %v2542 = vsel %vm66, %v2517, 0.0
  %v2543 = vadd.f32 %v2541, %v2542
  %v2544 = vsel %vm66, %v2518, 0.0
  %v2545 = vadd.f32 %v2543, %v2544
  %v2546 = vsel %vm66, %v2519, 0.0
  %v2547 = vadd.f32 %v2545, %v2546
  %v2548 = vsel %vm66, %v2520, 0.0
  %v2549 = vadd.f32 %v2547, %v2548
  %v2550 = vsel %vm66, %v2521, 0.0
  %v2551 = vadd.f32 %v2549, %v2550
  %v2552 = vsel %vm66, %v2522, 0.0
  %v2553 = vadd.f32 %v2551, %v2552
  %v2554 = vrot.slane %v2553, 4
  %v2555 = vadd.f32 %v2553, %v2554
  %v2556 = vrot.slane %v2555, 2
  %v2557 = vadd.f32 %v2555, %v2556
  %v2558 = vrot.slane %v2557, 1
  %v2559 = vadd.f32 %v2557, %v2558
  %v2560 = vsel %vm615, %v2506, %v2559
  %vm2561 = vcmask 254976
  %2562 = vst.msk [vmem:[%s14] sm:$0x3] %vm2561, %v2560
  // Predicated region
  $region50: #{s2block_forward.4} parent=0 // pred_check
    _
  $region51: #{s2block_forward.4} parent=0 // pred_check_branch
    %2564 = sbr.rel (0) target = $region53
  $region52: #{s2block_forward.4} parent=0 // pred_region
    _
  $region53: #{s2block_forward.4} parent=0 // pred_fallthru
    _
  // Predicated region
  $region54: #{s2block_forward.4} parent=0 // pred_check
    _
  $region55: #{s2block_forward.4} parent=0 // pred_check_branch
    %2566 = sbr.rel (0) target = $region57
  $region56: #{s2block_forward.4} parent=0 // pred_region
    _
  $region57: #{s2block_forward.4} parent=0 // pred_fallthru
    _
  // Predicated region
  $region58: #{s2block_forward.4} parent=0 // pred_check
    _
  $region59: #{s2block_forward.4} parent=0 // pred_check_branch
    %2568 = sbr.rel (0) target = $region61
  $region60: #{s2block_forward.4} parent=0 // pred_region
    _
  $region61: #{s2block_forward.4} parent=0 // pred_fallthru
    _
  // Predicated region
  $region62: #{s2block_forward.4} parent=0 // pred_check
    _
  $region63: #{s2block_forward.4} parent=0 // pred_check_branch
    %2570 = sbr.rel (0) target = $region65
  $region64: #{s2block_forward.4} parent=0 // pred_region
    _
  $region65: #{s2block_forward.4} parent=0 // pred_fallthru
    _
  // Predicated region
  $region66: #{s2block_forward.4} parent=0 // pred_check
    _
  $region67: #{s2block_forward.4} parent=0 // pred_check_branch
    %2572 = sbr.rel (0) target = $region69
  $region68: #{s2block_forward.4} parent=0 // pred_region
    _
  $region69: #{s2block_forward.4} parent=0 // pred_fallthru
    _
  // Predicated region
  $region70: #{s2block_forward.4} parent=0 // pred_check
    _
  $region71: #{s2block_forward.4} parent=0 // pred_check_branch
    %2574 = sbr.rel (0) target = $region73
  $region72: #{s2block_forward.4} parent=0 // pred_region
    _
  $region73: #{s2block_forward.4} parent=0 // pred_fallthru
    _

</llo_original>
